<compile_context>
chip_gen: v6e
topology: v6e:2x2x1
jax: 0.10.0
libtpu: 0.0.40
codegen_flags: <defaults>
</compile_context>

<pallas_src>
import math

import jax
import jax.numpy as jnp
from jax.experimental import pallas as pl
from jax.experimental.pallas import tpu as pltpu

# ----------------------------- config ---------------------------------------
VOCAB_SIZE  = 50
VOCAB_PAD   = 64            # embedding table padded to a layout-friendly size
NUM_CLASSES = 8
EMBED_DIM   = 32
NUM_HEADS   = 4
NUM_BLOCKS  = 2
FF_DIM      = 64
MAX_SEQ_LEN = 16
BATCH       = 2
SEQ_LEN     = 8
HEAD_DIM    = EMBED_DIM // NUM_HEADS
TOKENS      = BATCH * SEQ_LEN
LN_EPS      = 1e-5

# misc-slab row layout (built once in pack_params, sliced statically in-kernel)
PE_OFF     = 0                       # rows [0, T):        PE tiled over batch
MASK_OFF   = PE_OFF + TOKENS         # rows [T, 2T):       additive batch mask (T,T)
POOL_OFF   = MASK_OFF + TOKENS       # rows [2T, 2T+B):    mean-pool matrix (B,T)
FCW_OFF    = POOL_OFF + BATCH        # rows [.., ..+E):    fc weight (E,C)
FCB_OFF    = FCW_OFF + EMBED_DIM     # row  FCB_OFF:       fc bias (C,)
MISC_ROWS  = FCB_OFF + 1
MISC_LANES = 128

# bias-slab row layout, per block: (NB, 8, 128) f32
ROW_BQKV, ROW_BO, ROW_LN1W, ROW_LN1B, ROW_B1, ROW_B2, ROW_LN2W, ROW_LN2B = range(8)


# ----------------------------- kernel ---------------------------------------
def _layernorm(y, w, b):
    mu = jnp.mean(y, axis=-1, keepdims=True)
    var = jnp.mean((y - mu) ** 2, axis=-1, keepdims=True)
    return (y - mu) * jax.lax.rsqrt(var + LN_EPS) * w + b


def transformer_kernel(tok_ref, emb_ref, misc_ref, we_ref, w2_ref, bias_ref,
                       out_ref):
    B, S, T = BATCH, SEQ_LEN, TOKENS
    E, F, H, dh, C = EMBED_DIM, FF_DIM, NUM_HEADS, HEAD_DIM, NUM_CLASSES
    Vp = VOCAB_PAD
    scale = 1.0 / math.sqrt(dh)

    # ---- fused embedding gather (one-hot matmul on MXU) + positional enc ----
    tok = tok_ref[...]                                              # (T, 1) i32
    vocab_ids = jax.lax.broadcasted_iota(jnp.int32, (T, Vp), 1)     # (T, Vp)
    onehot = jnp.where(vocab_ids == tok, 1.0, 0.0).astype(jnp.bfloat16)
    pe = misc_ref[PE_OFF:PE_OFF + T, 0:E]                           # (T, E) f32
    x = jnp.dot(onehot, emb_ref[...],
                preferred_element_type=jnp.float32) + pe            # (T, E) f32

    # additive block-diagonal batch mask: 0 within same example, -1e30 across
    amask = misc_ref[MASK_OFF:MASK_OFF + T, 0:T]                    # (T, T)

    # per-head lane masks (built once, reused across blocks)
    lane = jax.lax.broadcasted_iota(jnp.int32, (1, E), 1)
    head_masks = [((lane >= h * dh) & (lane < (h + 1) * dh)).astype(jnp.float32)
                  for h in range(H)]

    for blk in range(NUM_BLOCKS):
        wqkv = we_ref[blk, :, 0:3 * E]                # (E, 3E) bf16
        wo   = we_ref[blk, :, 3 * E:4 * E]            # (E, E)  bf16
        w1   = we_ref[blk, :, 4 * E:4 * E + F]        # (E, F)  bf16
        w2   = w2_ref[blk]                            # (F, E)  bf16
        bias = bias_ref[blk]                          # (8, 128) f32

        # ---- fused qkv projection: one 96-wide matmul over all B*S rows ----
        qkv = jnp.dot(x.astype(jnp.bfloat16), wqkv,
                      preferred_element_type=jnp.float32) + bias[ROW_BQKV:ROW_BQKV + 1, 0:3 * E]
        q2 = qkv[:, 0:E]
        k2 = qkv[:, E:2 * E]
        v2 = qkv[:, 2 * E:3 * E]

        # ---- per-head attention on flattened rows with batch mask ----------
        o = jnp.zeros((T, E), jnp.float32)
        for h in range(H):
            qh = q2[:, h * dh:(h + 1) * dh] * scale               # (T, dh)
            kh = k2[:, h * dh:(h + 1) * dh]                       # (T, dh)
            sh = jax.lax.dot_general(
                qh, kh, (((1,), (1,)), ((), ())),
                preferred_element_type=jnp.float32)               # (T, T)
            sh = sh + amask
            sh = sh - jnp.max(sh, axis=-1, keepdims=True)
            ph = jnp.exp(sh)
            ph = ph * pl.reciprocal(jnp.sum(ph, axis=-1, keepdims=True),
                                    approx=True)
            # writes only this head's lane range of the output
            o = o + jnp.dot(ph, v2 * head_masks[h],
                            preferred_element_type=jnp.float32)   # (T, E)

        attn = jnp.dot(o.astype(jnp.bfloat16), wo,
                       preferred_element_type=jnp.float32) + bias[ROW_BO:ROW_BO + 1, 0:E]

        # ---- residual + layernorm 1 ----
        y = _layernorm(x + attn,
                       bias[ROW_LN1W:ROW_LN1W + 1, 0:E],
                       bias[ROW_LN1B:ROW_LN1B + 1, 0:E])

        # ---- feed-forward (dropout = identity in eval) ----
        hmid = jnp.dot(y.astype(jnp.bfloat16), w1,
                       preferred_element_type=jnp.float32) + bias[ROW_B1:ROW_B1 + 1, 0:F]
        hmid = jnp.maximum(hmid, 0.0)
        ffn = jnp.dot(hmid.astype(jnp.bfloat16), w2,
                      preferred_element_type=jnp.float32) + bias[ROW_B2:ROW_B2 + 1, 0:E]

        # ---- residual + layernorm 2 ----
        x = _layernorm(y + ffn,
                       bias[ROW_LN2W:ROW_LN2W + 1, 0:E],
                       bias[ROW_LN2B:ROW_LN2B + 1, 0:E])

    # ---- mean-pool per example via one (B, T) @ (T, E) matmul + classifier ----
    pool = misc_ref[POOL_OFF:POOL_OFF + B, 0:T]                     # (B, T)
    fcw  = misc_ref[FCW_OFF:FCW_OFF + E, 0:C]                       # (E, C)
    fcb  = misc_ref[FCB_OFF:FCB_OFF + 1, 0:C]                       # (1, C)
    pooled = jnp.dot(pool, x, preferred_element_type=jnp.float32)   # (B, E)
    out_ref[...] = jnp.dot(pooled, fcw,
                           preferred_element_type=jnp.float32) + fcb


# ----------------------------- wrapper ---------------------------------------
@jax.jit
def simple_transformer_forward(tokens, packed):
    """tokens: (B, S) int32 token ids.  Returns (B, num_classes) logits."""
    B, S = tokens.shape
    tok2 = tokens.reshape(B * S, 1).astype(jnp.int32)

    vmem = pl.BlockSpec(memory_space=pltpu.MemorySpace.VMEM)
    return pl.pallas_call(
        transformer_kernel,
        out_shape=jax.ShapeDtypeStruct((B, NUM_CLASSES), jnp.float32),
        in_specs=[vmem] * 6,          # whole arrays resident in VMEM, no grid,
        out_specs=vmem,               # no 1-step pipeline / double buffering
    )(tok2, packed["emb"], packed["misc"], packed["we"], packed["w2"],
      packed["bias"])


# ----------------------------- params / packing -------------------------------
def sinusoidal_pos_encoding(max_len, embed_dim):
    position = jnp.arange(max_len, dtype=jnp.float32)[:, None]
    div_term = jnp.exp(jnp.arange(0, embed_dim, 2, dtype=jnp.float32)
                       * -(math.log(10000.0) / embed_dim))
    pe = jnp.zeros((max_len, embed_dim), jnp.float32)
    pe = pe.at[:, 0::2].set(jnp.sin(position * div_term))
    pe = pe.at[:, 1::2].set(jnp.cos(position * div_term))
    return pe                                                     # (L, E)


def make_params(key):
    ks = jax.random.split(key, 16)

    def nrm(k, shape, s=0.05):
        return jax.random.normal(k, shape, dtype=jnp.float32) * s

    NB, E, F = NUM_BLOCKS, EMBED_DIM, FF_DIM
    return dict(
        embedding=nrm(ks[0], (VOCAB_SIZE, E), 1.0),
        # per-block stacked weights, stored (in, out)
        wq=nrm(ks[1], (NB, E, E)), bq=nrm(ks[2], (NB, 1, E)),
        wk=nrm(ks[3], (NB, E, E)), bk=nrm(ks[4], (NB, 1, E)),
        wv=nrm(ks[5], (NB, E, E)), bv=nrm(ks[6], (NB, 1, E)),
        wo=nrm(ks[7], (NB, E, E)), bo=nrm(ks[8], (NB, 1, E)),
        ln1w=jnp.ones((NB, 1, E), jnp.float32),
        ln1b=jnp.zeros((NB, 1, E), jnp.float32),
        w1=nrm(ks[9], (NB, E, F)), b1=nrm(ks[10], (NB, 1, F)),
        w2=nrm(ks[11], (NB, F, E)), b2=nrm(ks[12], (NB, 1, E)),
        ln2w=jnp.ones((NB, 1, E), jnp.float32),
        ln2b=jnp.zeros((NB, 1, E), jnp.float32),
        fc_w=nrm(ks[13], (E, NUM_CLASSES)),
        fc_b=nrm(ks[14], (1, NUM_CLASSES)),
    )


def pack_params(params):
    """One-time (outside jit) packing of all parameters/constants into a few
    lane-dense slabs so the kernel prologue issues only a handful of DMAs."""
    B, S, T = BATCH, SEQ_LEN, TOKENS
    E, F, NB, C = EMBED_DIM, FF_DIM, NUM_BLOCKS, NUM_CLASSES

    # padded embedding table (bf16 matmul operand)
    emb = jnp.zeros((VOCAB_PAD, E), jnp.float32)
    emb = emb.at[:VOCAB_SIZE].set(params["embedding"]).astype(jnp.bfloat16)

    # per-block weight slab: Wq|Wk|Wv|Wo|W1 along the out (lane) dim, bf16
    we = jnp.concatenate(
        [params["wq"], params["wk"], params["wv"], params["wo"], params["w1"]],
        axis=-1).astype(jnp.bfloat16)                             # (NB, E, 4E+F)
    w2 = params["w2"].astype(jnp.bfloat16)                        # (NB, F, E)

    # per-block bias / LN slab: (NB, 8, 128) f32
    bias = jnp.zeros((NB, 8, 128), jnp.float32)
    bqkv = jnp.concatenate([params["bq"], params["bk"], params["bv"]],
                           axis=-1)[:, 0, :]                      # (NB, 3E)
    bias = bias.at[:, ROW_BQKV, :3 * E].set(bqkv)
    bias = bias.at[:, ROW_BO,   :E].set(params["bo"][:, 0, :])
    bias = bias.at[:, ROW_LN1W, :E].set(params["ln1w"][:, 0, :])
    bias = bias.at[:, ROW_LN1B, :E].set(params["ln1b"][:, 0, :])
    bias = bias.at[:, ROW_B1,   :F].set(params["b1"][:, 0, :])
    bias = bias.at[:, ROW_B2,   :E].set(params["b2"][:, 0, :])
    bias = bias.at[:, ROW_LN2W, :E].set(params["ln2w"][:, 0, :])
    bias = bias.at[:, ROW_LN2B, :E].set(params["ln2b"][:, 0, :])

    # misc const slab: PE (tiled over batch) | attention batch mask | pooling
    # matrix | fc weight | fc bias
    misc = jnp.zeros((MISC_ROWS, MISC_LANES), jnp.float32)
    pe = sinusoidal_pos_encoding(MAX_SEQ_LEN, E)[:S, :]           # (S, E)
    misc = misc.at[PE_OFF:PE_OFF + T, :E].set(jnp.tile(pe, (B, 1)))
    rb = jnp.arange(T)[:, None] // S
    cb = jnp.arange(T)[None, :] // S
    amask = jnp.where(rb == cb, 0.0, -1e30)                       # (T, T)
    misc = misc.at[MASK_OFF:MASK_OFF + T, :T].set(amask)
    pool = jnp.where(jnp.arange(B)[:, None] == cb[:1, :], 1.0 / S, 0.0)
    misc = misc.at[POOL_OFF:POOL_OFF + B, :T].set(pool)           # (B, T)
    misc = misc.at[FCW_OFF:FCW_OFF + E, :C].set(params["fc_w"])
    misc = misc.at[FCB_OFF, :C].set(params["fc_b"][0])

    return dict(emb=emb, misc=misc, we=we, w2=w2, bias=bias)


# ----------------------------- main -------------------------------------------
if __name__ == "__main__":
    key = jax.random.PRNGKey(0)
    k_tok, k_params = jax.random.split(key)

    params = make_params(k_params)
    packed = pack_params(params)          # one-time packing, outside jit
    tokens = jax.random.randint(k_tok, (BATCH, SEQ_LEN), 0, VOCAB_SIZE,
                                dtype=jnp.int32)

    # TODO(synk): key_padding_mask / dropout paths are not implemented
    # (mask=None and eval mode, matching the default forward call).
    logits = simple_transformer_forward(tokens, packed)
    jax.block_until_ready(logits)

    assert logits.shape == (BATCH, NUM_CLASSES)
    assert bool(jnp.all(jnp.isfinite(logits)))
    print("KERNEL_OK")
</pallas_src>

<mosaic_0001>
module attributes {stable_mosaic.version = 11 : i64} {
  func.func @transformer_kernel(%arg0: memref<16x1xi32, #tpu.memory_space<vmem>>, %arg1: memref<64x32xbf16, #tpu.memory_space<vmem>>, %arg2: memref<67x128xf32, #tpu.memory_space<vmem>>, %arg3: memref<2x32x192xbf16, #tpu.memory_space<vmem>>, %arg4: memref<2x64x32xbf16, #tpu.memory_space<vmem>>, %arg5: memref<2x8x128xf32, #tpu.memory_space<vmem>>, %arg6: memref<2x8xf32, #tpu.memory_space<vmem>>) attributes {dimension_semantics = [], scalar_prefetch = 0 : i64, scratch_operands = 0 : i64, tpu.core_type = #tpu.core_type<tc>} {
    %c0 = arith.constant 0 : index
    %c0_0 = arith.constant 0 : index
    %0 = vector.load %arg0[%c0, %c0_0] : memref<16x1xi32, #tpu.memory_space<vmem>>, vector<16x1xi32>
    %1 = tpu.iota {dimensions = array<i32: 1>} : vector<16x64xi32>
    %2 = vector.broadcast %0 : vector<16x1xi32> to vector<16x64xi32>
    %3 = arith.cmpi eq, %1, %2 : vector<16x64xi32>
    %cst = arith.constant 1.000000e+00 : f32
    %cst_1 = arith.constant 0.000000e+00 : f32
    %4 = vector.broadcast %cst : f32 to vector<16x64xf32>
    %5 = vector.broadcast %cst_1 : f32 to vector<16x64xf32>
    %6 = arith.select %3, %4, %5 : vector<16x64xi1>, vector<16x64xf32>
    %7 = arith.truncf %6 : vector<16x64xf32> to vector<16x64xbf16>
    %c0_2 = arith.constant 0 : index
    %c0_3 = arith.constant 0 : index
    %8 = vector.load %arg2[%c0_2, %c0_3] : memref<67x128xf32, #tpu.memory_space<vmem>>, vector<16x32xf32>
    %c0_4 = arith.constant 0 : index
    %c0_5 = arith.constant 0 : index
    %9 = vector.load %arg1[%c0_4, %c0_5] : memref<64x32xbf16, #tpu.memory_space<vmem>>, vector<64x32xbf16>
    %cst_6 = arith.constant dense<0.000000e+00> : vector<16x32xf32>
    %10 = tpu.matmul %7, %9, %cst_6 {dimension_numbers = #tpu.dot_dimension_numbers<[1], [0], [0], [1], [0, 0, 1, 1], [], []>} : vector<16x64xbf16>, vector<64x32xbf16>, vector<16x32xf32> -> vector<16x32xf32>
    %11 = arith.addf %10, %8 : vector<16x32xf32>
    %c16 = arith.constant 16 : index
    %c0_7 = arith.constant 0 : index
    %12 = vector.load %arg2[%c16, %c0_7] : memref<67x128xf32, #tpu.memory_space<vmem>>, vector<16x16xf32>
    %13 = tpu.iota {dimensions = array<i32: 1>} : vector<1x32xi32>
    %c0_i32 = arith.constant 0 : i32
    %14 = vector.broadcast %c0_i32 : i32 to vector<1x32xi32>
    %15 = arith.cmpi sge, %13, %14 : vector<1x32xi32>
    %c8_i32 = arith.constant 8 : i32
    %16 = vector.broadcast %c8_i32 : i32 to vector<1x32xi32>
    %17 = arith.cmpi slt, %13, %16 : vector<1x32xi32>
    %18 = arith.andi %15, %17 : vector<1x32xi1>
    %19 = arith.extui %18 : vector<1x32xi1> to vector<1x32xi32>
    %20 = arith.sitofp %19 : vector<1x32xi32> to vector<1x32xf32>
    %c8_i32_8 = arith.constant 8 : i32
    %21 = vector.broadcast %c8_i32_8 : i32 to vector<1x32xi32>
    %22 = arith.cmpi sge, %13, %21 : vector<1x32xi32>
    %c16_i32 = arith.constant 16 : i32
    %23 = vector.broadcast %c16_i32 : i32 to vector<1x32xi32>
    %24 = arith.cmpi slt, %13, %23 : vector<1x32xi32>
    %25 = arith.andi %22, %24 : vector<1x32xi1>
    %26 = arith.extui %25 : vector<1x32xi1> to vector<1x32xi32>
    %27 = arith.sitofp %26 : vector<1x32xi32> to vector<1x32xf32>
    %c16_i32_9 = arith.constant 16 : i32
    %28 = vector.broadcast %c16_i32_9 : i32 to vector<1x32xi32>
    %29 = arith.cmpi sge, %13, %28 : vector<1x32xi32>
    %c24_i32 = arith.constant 24 : i32
    %30 = vector.broadcast %c24_i32 : i32 to vector<1x32xi32>
    %31 = arith.cmpi slt, %13, %30 : vector<1x32xi32>
    %32 = arith.andi %29, %31 : vector<1x32xi1>
    %33 = arith.extui %32 : vector<1x32xi1> to vector<1x32xi32>
    %34 = arith.sitofp %33 : vector<1x32xi32> to vector<1x32xf32>
    %c24_i32_10 = arith.constant 24 : i32
    %35 = vector.broadcast %c24_i32_10 : i32 to vector<1x32xi32>
    %36 = arith.cmpi sge, %13, %35 : vector<1x32xi32>
    %c32_i32 = arith.constant 32 : i32
    %37 = vector.broadcast %c32_i32 : i32 to vector<1x32xi32>
    %38 = arith.cmpi slt, %13, %37 : vector<1x32xi32>
    %39 = arith.andi %36, %38 : vector<1x32xi1>
    %40 = arith.extui %39 : vector<1x32xi1> to vector<1x32xi32>
    %41 = arith.sitofp %40 : vector<1x32xi32> to vector<1x32xf32>
    %c0_11 = arith.constant 0 : index
    %c0_12 = arith.constant 0 : index
    %c0_13 = arith.constant 0 : index
    %42 = vector.load %arg3[%c0_11, %c0_12, %c0_13] : memref<2x32x192xbf16, #tpu.memory_space<vmem>>, vector<1x32x96xbf16>
    %43 = vector.shape_cast %42 : vector<1x32x96xbf16> to vector<32x96xbf16>
    %c0_14 = arith.constant 0 : index
    %c0_15 = arith.constant 0 : index
    %c96 = arith.constant 96 : index
    %44 = vector.load %arg3[%c0_14, %c0_15, %c96] : memref<2x32x192xbf16, #tpu.memory_space<vmem>>, vector<1x32x32xbf16>
    %45 = vector.shape_cast %44 : vector<1x32x32xbf16> to vector<32x32xbf16>
    %c0_16 = arith.constant 0 : index
    %c0_17 = arith.constant 0 : index
    %c128 = arith.constant 128 : index
    %46 = vector.load %arg3[%c0_16, %c0_17, %c128] : memref<2x32x192xbf16, #tpu.memory_space<vmem>>, vector<1x32x64xbf16>
    %47 = vector.shape_cast %46 : vector<1x32x64xbf16> to vector<32x64xbf16>
    %c0_18 = arith.constant 0 : index
    %c0_19 = arith.constant 0 : index
    %c0_20 = arith.constant 0 : index
    %48 = vector.load %arg4[%c0_18, %c0_19, %c0_20] : memref<2x64x32xbf16, #tpu.memory_space<vmem>>, vector<1x64x32xbf16>
    %49 = vector.shape_cast %48 : vector<1x64x32xbf16> to vector<64x32xbf16>
    %c0_21 = arith.constant 0 : index
    %c0_22 = arith.constant 0 : index
    %c0_23 = arith.constant 0 : index
    %50 = vector.load %arg5[%c0_21, %c0_22, %c0_23] : memref<2x8x128xf32, #tpu.memory_space<vmem>>, vector<1x8x128xf32>
    %51 = vector.shape_cast %50 : vector<1x8x128xf32> to vector<8x128xf32>
    %52 = arith.truncf %11 : vector<16x32xf32> to vector<16x32xbf16>
    %cst_24 = arith.constant dense<0.000000e+00> : vector<16x96xf32>
    %53 = tpu.matmul %52, %43, %cst_24 {dimension_numbers = #tpu.dot_dimension_numbers<[1], [0], [0], [1], [0, 0, 1, 1], [], []>} : vector<16x32xbf16>, vector<32x96xbf16>, vector<16x96xf32> -> vector<16x96xf32>
    %54 = vector.extract_strided_slice %51 {offsets = [0, 0], sizes = [1, 96], strides = [1, 1]} : vector<8x128xf32> to vector<1x96xf32>
    %55 = vector.broadcast %54 : vector<1x96xf32> to vector<16x96xf32>
    %56 = arith.addf %53, %55 : vector<16x96xf32>
    %57 = vector.extract_strided_slice %56 {offsets = [0, 0], sizes = [16, 32], strides = [1, 1]} : vector<16x96xf32> to vector<16x32xf32>
    %58 = vector.extract_strided_slice %56 {offsets = [0, 32], sizes = [16, 32], strides = [1, 1]} : vector<16x96xf32> to vector<16x32xf32>
    %59 = vector.extract_strided_slice %56 {offsets = [0, 64], sizes = [16, 32], strides = [1, 1]} : vector<16x96xf32> to vector<16x32xf32>
    %cst_25 = arith.constant 0.000000e+00 : f32
    %60 = vector.broadcast %cst_25 : f32 to vector<16x32xf32>
    %61 = vector.extract_strided_slice %57 {offsets = [0, 0], sizes = [16, 8], strides = [1, 1]} : vector<16x32xf32> to vector<16x8xf32>
    %cst_26 = arith.constant 0.353553385 : f32
    %62 = vector.broadcast %cst_26 : f32 to vector<16x8xf32>
    %63 = arith.mulf %61, %62 : vector<16x8xf32>
    %64 = vector.extract_strided_slice %58 {offsets = [0, 0], sizes = [16, 8], strides = [1, 1]} : vector<16x32xf32> to vector<16x8xf32>
    %cst_27 = arith.constant dense<0.000000e+00> : vector<16x16xf32>
    %65 = tpu.matmul %63, %64, %cst_27 {dimension_numbers = #tpu.dot_dimension_numbers<[1], [1], [0], [0], [0, 0, 1, 0], [], []>} : vector<16x8xf32>, vector<16x8xf32>, vector<16x16xf32> -> vector<16x16xf32>
    %66 = arith.addf %65, %12 : vector<16x16xf32>
    %cst_28 = arith.constant dense<0xFF800000> : vector<16xf32>
    %67 = vector.multi_reduction <maximumf>, %66, %cst_28 [1] : vector<16x16xf32> to vector<16xf32>
    %68 = vector.shape_cast %67 : vector<16xf32> to vector<16x1xf32>
    %69 = vector.broadcast %68 : vector<16x1xf32> to vector<16x16xf32>
    %70 = arith.subf %66, %69 : vector<16x16xf32>
    %71 = math.exp %70 : vector<16x16xf32>
    %cst_29 = arith.constant dense<0.000000e+00> : vector<16xf32>
    %72 = vector.multi_reduction <add>, %71, %cst_29 [1] : vector<16x16xf32> to vector<16xf32>
    %73 = vector.shape_cast %72 : vector<16xf32> to vector<16x1xf32>
    %74 = tpu.reciprocal %73 {approx = true} : vector<16x1xf32> -> vector<16x1xf32>
    %75 = vector.broadcast %74 : vector<16x1xf32> to vector<16x16xf32>
    %76 = arith.mulf %71, %75 : vector<16x16xf32>
    %77 = vector.broadcast %20 : vector<1x32xf32> to vector<16x32xf32>
    %78 = arith.mulf %59, %77 : vector<16x32xf32>
    %cst_30 = arith.constant dense<0.000000e+00> : vector<16x32xf32>
    %79 = tpu.matmul %76, %78, %cst_30 {dimension_numbers = #tpu.dot_dimension_numbers<[1], [0], [0], [1], [0, 0, 1, 1], [], []>} : vector<16x16xf32>, vector<16x32xf32>, vector<16x32xf32> -> vector<16x32xf32>
    %80 = arith.addf %60, %79 : vector<16x32xf32>
    %81 = vector.extract_strided_slice %57 {offsets = [0, 8], sizes = [16, 8], strides = [1, 1]} : vector<16x32xf32> to vector<16x8xf32>
    %cst_31 = arith.constant 0.353553385 : f32
    %82 = vector.broadcast %cst_31 : f32 to vector<16x8xf32>
    %83 = arith.mulf %81, %82 : vector<16x8xf32>
    %84 = vector.extract_strided_slice %58 {offsets = [0, 8], sizes = [16, 8], strides = [1, 1]} : vector<16x32xf32> to vector<16x8xf32>
    %cst_32 = arith.constant dense<0.000000e+00> : vector<16x16xf32>
    %85 = tpu.matmul %83, %84, %cst_32 {dimension_numbers = #tpu.dot_dimension_numbers<[1], [1], [0], [0], [0, 0, 1, 0], [], []>} : vector<16x8xf32>, vector<16x8xf32>, vector<16x16xf32> -> vector<16x16xf32>
    %86 = arith.addf %85, %12 : vector<16x16xf32>
    %cst_33 = arith.constant dense<0xFF800000> : vector<16xf32>
    %87 = vector.multi_reduction <maximumf>, %86, %cst_33 [1] : vector<16x16xf32> to vector<16xf32>
    %88 = vector.shape_cast %87 : vector<16xf32> to vector<16x1xf32>
    %89 = vector.broadcast %88 : vector<16x1xf32> to vector<16x16xf32>
    %90 = arith.subf %86, %89 : vector<16x16xf32>
    %91 = math.exp %90 : vector<16x16xf32>
    %cst_34 = arith.constant dense<0.000000e+00> : vector<16xf32>
    %92 = vector.multi_reduction <add>, %91, %cst_34 [1] : vector<16x16xf32> to vector<16xf32>
    %93 = vector.shape_cast %92 : vector<16xf32> to vector<16x1xf32>
    %94 = tpu.reciprocal %93 {approx = true} : vector<16x1xf32> -> vector<16x1xf32>
    %95 = vector.broadcast %94 : vector<16x1xf32> to vector<16x16xf32>
    %96 = arith.mulf %91, %95 : vector<16x16xf32>
    %97 = vector.broadcast %27 : vector<1x32xf32> to vector<16x32xf32>
    %98 = arith.mulf %59, %97 : vector<16x32xf32>
    %cst_35 = arith.constant dense<0.000000e+00> : vector<16x32xf32>
    %99 = tpu.matmul %96, %98, %cst_35 {dimension_numbers = #tpu.dot_dimension_numbers<[1], [0], [0], [1], [0, 0, 1, 1], [], []>} : vector<16x16xf32>, vector<16x32xf32>, vector<16x32xf32> -> vector<16x32xf32>
    %100 = arith.addf %80, %99 : vector<16x32xf32>
    %101 = vector.extract_strided_slice %57 {offsets = [0, 16], sizes = [16, 8], strides = [1, 1]} : vector<16x32xf32> to vector<16x8xf32>
    %cst_36 = arith.constant 0.353553385 : f32
    %102 = vector.broadcast %cst_36 : f32 to vector<16x8xf32>
    %103 = arith.mulf %101, %102 : vector<16x8xf32>
    %104 = vector.extract_strided_slice %58 {offsets = [0, 16], sizes = [16, 8], strides = [1, 1]} : vector<16x32xf32> to vector<16x8xf32>
    %cst_37 = arith.constant dense<0.000000e+00> : vector<16x16xf32>
    %105 = tpu.matmul %103, %104, %cst_37 {dimension_numbers = #tpu.dot_dimension_numbers<[1], [1], [0], [0], [0, 0, 1, 0], [], []>} : vector<16x8xf32>, vector<16x8xf32>, vector<16x16xf32> -> vector<16x16xf32>
    %106 = arith.addf %105, %12 : vector<16x16xf32>
    %cst_38 = arith.constant dense<0xFF800000> : vector<16xf32>
    %107 = vector.multi_reduction <maximumf>, %106, %cst_38 [1] : vector<16x16xf32> to vector<16xf32>
    %108 = vector.shape_cast %107 : vector<16xf32> to vector<16x1xf32>
    %109 = vector.broadcast %108 : vector<16x1xf32> to vector<16x16xf32>
    %110 = arith.subf %106, %109 : vector<16x16xf32>
    %111 = math.exp %110 : vector<16x16xf32>
    %cst_39 = arith.constant dense<0.000000e+00> : vector<16xf32>
    %112 = vector.multi_reduction <add>, %111, %cst_39 [1] : vector<16x16xf32> to vector<16xf32>
    %113 = vector.shape_cast %112 : vector<16xf32> to vector<16x1xf32>
    %114 = tpu.reciprocal %113 {approx = true} : vector<16x1xf32> -> vector<16x1xf32>
    %115 = vector.broadcast %114 : vector<16x1xf32> to vector<16x16xf32>
    %116 = arith.mulf %111, %115 : vector<16x16xf32>
    %117 = vector.broadcast %34 : vector<1x32xf32> to vector<16x32xf32>
    %118 = arith.mulf %59, %117 : vector<16x32xf32>
    %cst_40 = arith.constant dense<0.000000e+00> : vector<16x32xf32>
    %119 = tpu.matmul %116, %118, %cst_40 {dimension_numbers = #tpu.dot_dimension_numbers<[1], [0], [0], [1], [0, 0, 1, 1], [], []>} : vector<16x16xf32>, vector<16x32xf32>, vector<16x32xf32> -> vector<16x32xf32>
    %120 = arith.addf %100, %119 : vector<16x32xf32>
    %121 = vector.extract_strided_slice %57 {offsets = [0, 24], sizes = [16, 8], strides = [1, 1]} : vector<16x32xf32> to vector<16x8xf32>
    %cst_41 = arith.constant 0.353553385 : f32
    %122 = vector.broadcast %cst_41 : f32 to vector<16x8xf32>
    %123 = arith.mulf %121, %122 : vector<16x8xf32>
    %124 = vector.extract_strided_slice %58 {offsets = [0, 24], sizes = [16, 8], strides = [1, 1]} : vector<16x32xf32> to vector<16x8xf32>
    %cst_42 = arith.constant dense<0.000000e+00> : vector<16x16xf32>
    %125 = tpu.matmul %123, %124, %cst_42 {dimension_numbers = #tpu.dot_dimension_numbers<[1], [1], [0], [0], [0, 0, 1, 0], [], []>} : vector<16x8xf32>, vector<16x8xf32>, vector<16x16xf32> -> vector<16x16xf32>
    %126 = arith.addf %125, %12 : vector<16x16xf32>
    %cst_43 = arith.constant dense<0xFF800000> : vector<16xf32>
    %127 = vector.multi_reduction <maximumf>, %126, %cst_43 [1] : vector<16x16xf32> to vector<16xf32>
    %128 = vector.shape_cast %127 : vector<16xf32> to vector<16x1xf32>
    %129 = vector.broadcast %128 : vector<16x1xf32> to vector<16x16xf32>
    %130 = arith.subf %126, %129 : vector<16x16xf32>
    %131 = math.exp %130 : vector<16x16xf32>
    %cst_44 = arith.constant dense<0.000000e+00> : vector<16xf32>
    %132 = vector.multi_reduction <add>, %131, %cst_44 [1] : vector<16x16xf32> to vector<16xf32>
    %133 = vector.shape_cast %132 : vector<16xf32> to vector<16x1xf32>
    %134 = tpu.reciprocal %133 {approx = true} : vector<16x1xf32> -> vector<16x1xf32>
    %135 = vector.broadcast %134 : vector<16x1xf32> to vector<16x16xf32>
    %136 = arith.mulf %131, %135 : vector<16x16xf32>
    %137 = vector.broadcast %41 : vector<1x32xf32> to vector<16x32xf32>
    %138 = arith.mulf %59, %137 : vector<16x32xf32>
    %cst_45 = arith.constant dense<0.000000e+00> : vector<16x32xf32>
    %139 = tpu.matmul %136, %138, %cst_45 {dimension_numbers = #tpu.dot_dimension_numbers<[1], [0], [0], [1], [0, 0, 1, 1], [], []>} : vector<16x16xf32>, vector<16x32xf32>, vector<16x32xf32> -> vector<16x32xf32>
    %140 = arith.addf %120, %139 : vector<16x32xf32>
    %141 = arith.truncf %140 : vector<16x32xf32> to vector<16x32xbf16>
    %cst_46 = arith.constant dense<0.000000e+00> : vector<16x32xf32>
    %142 = tpu.matmul %141, %45, %cst_46 {dimension_numbers = #tpu.dot_dimension_numbers<[1], [0], [0], [1], [0, 0, 1, 1], [], []>} : vector<16x32xbf16>, vector<32x32xbf16>, vector<16x32xf32> -> vector<16x32xf32>
    %143 = vector.extract_strided_slice %51 {offsets = [1, 0], sizes = [1, 32], strides = [1, 1]} : vector<8x128xf32> to vector<1x32xf32>
    %144 = vector.broadcast %143 : vector<1x32xf32> to vector<16x32xf32>
    %145 = arith.addf %142, %144 : vector<16x32xf32>
    %146 = arith.addf %11, %145 : vector<16x32xf32>
    %147 = vector.extract_strided_slice %51 {offsets = [2, 0], sizes = [1, 32], strides = [1, 1]} : vector<8x128xf32> to vector<1x32xf32>
    %148 = vector.extract_strided_slice %51 {offsets = [3, 0], sizes = [1, 32], strides = [1, 1]} : vector<8x128xf32> to vector<1x32xf32>
    %cst_47 = arith.constant dense<0.000000e+00> : vector<16xf32>
    %149 = vector.multi_reduction <add>, %146, %cst_47 [1] : vector<16x32xf32> to vector<16xf32>
    %150 = vector.shape_cast %149 : vector<16xf32> to vector<16x1xf32>
    %cst_48 = arith.constant 3.200000e+01 : f32
    %151 = vector.broadcast %cst_48 : f32 to vector<16x1xf32>
    %152 = arith.divf %150, %151 : vector<16x1xf32>
    %153 = vector.broadcast %152 : vector<16x1xf32> to vector<16x32xf32>
    %154 = arith.subf %146, %153 : vector<16x32xf32>
    %155 = arith.mulf %154, %154 : vector<16x32xf32>
    %cst_49 = arith.constant dense<0.000000e+00> : vector<16xf32>
    %156 = vector.multi_reduction <add>, %155, %cst_49 [1] : vector<16x32xf32> to vector<16xf32>
    %157 = vector.shape_cast %156 : vector<16xf32> to vector<16x1xf32>
    %cst_50 = arith.constant 3.200000e+01 : f32
    %158 = vector.broadcast %cst_50 : f32 to vector<16x1xf32>
    %159 = arith.divf %157, %158 : vector<16x1xf32>
    %160 = vector.broadcast %152 : vector<16x1xf32> to vector<16x32xf32>
    %161 = arith.subf %146, %160 : vector<16x32xf32>
    %cst_51 = arith.constant 9.99999974E-6 : f32
    %162 = vector.broadcast %cst_51 : f32 to vector<16x1xf32>
    %163 = arith.addf %159, %162 : vector<16x1xf32>
    %164 = math.rsqrt %163 : vector<16x1xf32>
    %165 = vector.broadcast %164 : vector<16x1xf32> to vector<16x32xf32>
    %166 = arith.mulf %161, %165 : vector<16x32xf32>
    %167 = vector.broadcast %147 : vector<1x32xf32> to vector<16x32xf32>
    %168 = arith.mulf %166, %167 : vector<16x32xf32>
    %169 = vector.broadcast %148 : vector<1x32xf32> to vector<16x32xf32>
    %170 = arith.addf %168, %169 : vector<16x32xf32>
    %171 = arith.truncf %170 : vector<16x32xf32> to vector<16x32xbf16>
    %cst_52 = arith.constant dense<0.000000e+00> : vector<16x64xf32>
    %172 = tpu.matmul %171, %47, %cst_52 {dimension_numbers = #tpu.dot_dimension_numbers<[1], [0], [0], [1], [0, 0, 1, 1], [], []>} : vector<16x32xbf16>, vector<32x64xbf16>, vector<16x64xf32> -> vector<16x64xf32>
    %173 = vector.extract_strided_slice %51 {offsets = [4, 0], sizes = [1, 64], strides = [1, 1]} : vector<8x128xf32> to vector<1x64xf32>
    %174 = vector.broadcast %173 : vector<1x64xf32> to vector<16x64xf32>
    %175 = arith.addf %172, %174 : vector<16x64xf32>
    %cst_53 = arith.constant 0.000000e+00 : f32
    %176 = vector.broadcast %cst_53 : f32 to vector<16x64xf32>
    %177 = arith.maximumf %175, %176 : vector<16x64xf32>
    %178 = arith.truncf %177 : vector<16x64xf32> to vector<16x64xbf16>
    %cst_54 = arith.constant dense<0.000000e+00> : vector<16x32xf32>
    %179 = tpu.matmul %178, %49, %cst_54 {dimension_numbers = #tpu.dot_dimension_numbers<[1], [0], [0], [1], [0, 0, 1, 1], [], []>} : vector<16x64xbf16>, vector<64x32xbf16>, vector<16x32xf32> -> vector<16x32xf32>
    %180 = vector.extract_strided_slice %51 {offsets = [5, 0], sizes = [1, 32], strides = [1, 1]} : vector<8x128xf32> to vector<1x32xf32>
    %181 = vector.broadcast %180 : vector<1x32xf32> to vector<16x32xf32>
    %182 = arith.addf %179, %181 : vector<16x32xf32>
    %183 = arith.addf %170, %182 : vector<16x32xf32>
    %184 = vector.extract_strided_slice %51 {offsets = [6, 0], sizes = [1, 32], strides = [1, 1]} : vector<8x128xf32> to vector<1x32xf32>
    %185 = vector.extract_strided_slice %51 {offsets = [7, 0], sizes = [1, 32], strides = [1, 1]} : vector<8x128xf32> to vector<1x32xf32>
    %cst_55 = arith.constant dense<0.000000e+00> : vector<16xf32>
    %186 = vector.multi_reduction <add>, %183, %cst_55 [1] : vector<16x32xf32> to vector<16xf32>
    %187 = vector.shape_cast %186 : vector<16xf32> to vector<16x1xf32>
    %cst_56 = arith.constant 3.200000e+01 : f32
    %188 = vector.broadcast %cst_56 : f32 to vector<16x1xf32>
    %189 = arith.divf %187, %188 : vector<16x1xf32>
    %190 = vector.broadcast %189 : vector<16x1xf32> to vector<16x32xf32>
    %191 = arith.subf %183, %190 : vector<16x32xf32>
    %192 = arith.mulf %191, %191 : vector<16x32xf32>
    %cst_57 = arith.constant dense<0.000000e+00> : vector<16xf32>
    %193 = vector.multi_reduction <add>, %192, %cst_57 [1] : vector<16x32xf32> to vector<16xf32>
    %194 = vector.shape_cast %193 : vector<16xf32> to vector<16x1xf32>
    %cst_58 = arith.constant 3.200000e+01 : f32
    %195 = vector.broadcast %cst_58 : f32 to vector<16x1xf32>
    %196 = arith.divf %194, %195 : vector<16x1xf32>
    %197 = vector.broadcast %189 : vector<16x1xf32> to vector<16x32xf32>
    %198 = arith.subf %183, %197 : vector<16x32xf32>
    %cst_59 = arith.constant 9.99999974E-6 : f32
    %199 = vector.broadcast %cst_59 : f32 to vector<16x1xf32>
    %200 = arith.addf %196, %199 : vector<16x1xf32>
    %201 = math.rsqrt %200 : vector<16x1xf32>
    %202 = vector.broadcast %201 : vector<16x1xf32> to vector<16x32xf32>
    %203 = arith.mulf %198, %202 : vector<16x32xf32>
    %204 = vector.broadcast %184 : vector<1x32xf32> to vector<16x32xf32>
    %205 = arith.mulf %203, %204 : vector<16x32xf32>
    %206 = vector.broadcast %185 : vector<1x32xf32> to vector<16x32xf32>
    %207 = arith.addf %205, %206 : vector<16x32xf32>
    %c1 = arith.constant 1 : index
    %c0_60 = arith.constant 0 : index
    %c0_61 = arith.constant 0 : index
    %208 = vector.load %arg3[%c1, %c0_60, %c0_61] : memref<2x32x192xbf16, #tpu.memory_space<vmem>>, vector<1x32x96xbf16>
    %209 = vector.shape_cast %208 : vector<1x32x96xbf16> to vector<32x96xbf16>
    %c1_62 = arith.constant 1 : index
    %c0_63 = arith.constant 0 : index
    %c96_64 = arith.constant 96 : index
    %210 = vector.load %arg3[%c1_62, %c0_63, %c96_64] : memref<2x32x192xbf16, #tpu.memory_space<vmem>>, vector<1x32x32xbf16>
    %211 = vector.shape_cast %210 : vector<1x32x32xbf16> to vector<32x32xbf16>
    %c1_65 = arith.constant 1 : index
    %c0_66 = arith.constant 0 : index
    %c128_67 = arith.constant 128 : index
    %212 = vector.load %arg3[%c1_65, %c0_66, %c128_67] : memref<2x32x192xbf16, #tpu.memory_space<vmem>>, vector<1x32x64xbf16>
    %213 = vector.shape_cast %212 : vector<1x32x64xbf16> to vector<32x64xbf16>
    %c1_68 = arith.constant 1 : index
    %c0_69 = arith.constant 0 : index
    %c0_70 = arith.constant 0 : index
    %214 = vector.load %arg4[%c1_68, %c0_69, %c0_70] : memref<2x64x32xbf16, #tpu.memory_space<vmem>>, vector<1x64x32xbf16>
    %215 = vector.shape_cast %214 : vector<1x64x32xbf16> to vector<64x32xbf16>
    %c1_71 = arith.constant 1 : index
    %c0_72 = arith.constant 0 : index
    %c0_73 = arith.constant 0 : index
    %216 = vector.load %arg5[%c1_71, %c0_72, %c0_73] : memref<2x8x128xf32, #tpu.memory_space<vmem>>, vector<1x8x128xf32>
    %217 = vector.shape_cast %216 : vector<1x8x128xf32> to vector<8x128xf32>
    %218 = arith.truncf %207 : vector<16x32xf32> to vector<16x32xbf16>
    %cst_74 = arith.constant dense<0.000000e+00> : vector<16x96xf32>
    %219 = tpu.matmul %218, %209, %cst_74 {dimension_numbers = #tpu.dot_dimension_numbers<[1], [0], [0], [1], [0, 0, 1, 1], [], []>} : vector<16x32xbf16>, vector<32x96xbf16>, vector<16x96xf32> -> vector<16x96xf32>
    %220 = vector.extract_strided_slice %217 {offsets = [0, 0], sizes = [1, 96], strides = [1, 1]} : vector<8x128xf32> to vector<1x96xf32>
    %221 = vector.broadcast %220 : vector<1x96xf32> to vector<16x96xf32>
    %222 = arith.addf %219, %221 : vector<16x96xf32>
    %223 = vector.extract_strided_slice %222 {offsets = [0, 0], sizes = [16, 32], strides = [1, 1]} : vector<16x96xf32> to vector<16x32xf32>
    %224 = vector.extract_strided_slice %222 {offsets = [0, 32], sizes = [16, 32], strides = [1, 1]} : vector<16x96xf32> to vector<16x32xf32>
    %225 = vector.extract_strided_slice %222 {offsets = [0, 64], sizes = [16, 32], strides = [1, 1]} : vector<16x96xf32> to vector<16x32xf32>
    %cst_75 = arith.constant 0.000000e+00 : f32
    %226 = vector.broadcast %cst_75 : f32 to vector<16x32xf32>
    %227 = vector.extract_strided_slice %223 {offsets = [0, 0], sizes = [16, 8], strides = [1, 1]} : vector<16x32xf32> to vector<16x8xf32>
    %cst_76 = arith.constant 0.353553385 : f32
    %228 = vector.broadcast %cst_76 : f32 to vector<16x8xf32>
    %229 = arith.mulf %227, %228 : vector<16x8xf32>
    %230 = vector.extract_strided_slice %224 {offsets = [0, 0], sizes = [16, 8], strides = [1, 1]} : vector<16x32xf32> to vector<16x8xf32>
    %cst_77 = arith.constant dense<0.000000e+00> : vector<16x16xf32>
    %231 = tpu.matmul %229, %230, %cst_77 {dimension_numbers = #tpu.dot_dimension_numbers<[1], [1], [0], [0], [0, 0, 1, 0], [], []>} : vector<16x8xf32>, vector<16x8xf32>, vector<16x16xf32> -> vector<16x16xf32>
    %232 = arith.addf %231, %12 : vector<16x16xf32>
    %cst_78 = arith.constant dense<0xFF800000> : vector<16xf32>
    %233 = vector.multi_reduction <maximumf>, %232, %cst_78 [1] : vector<16x16xf32> to vector<16xf32>
    %234 = vector.shape_cast %233 : vector<16xf32> to vector<16x1xf32>
    %235 = vector.broadcast %234 : vector<16x1xf32> to vector<16x16xf32>
    %236 = arith.subf %232, %235 : vector<16x16xf32>
    %237 = math.exp %236 : vector<16x16xf32>
    %cst_79 = arith.constant dense<0.000000e+00> : vector<16xf32>
    %238 = vector.multi_reduction <add>, %237, %cst_79 [1] : vector<16x16xf32> to vector<16xf32>
    %239 = vector.shape_cast %238 : vector<16xf32> to vector<16x1xf32>
    %240 = tpu.reciprocal %239 {approx = true} : vector<16x1xf32> -> vector<16x1xf32>
    %241 = vector.broadcast %240 : vector<16x1xf32> to vector<16x16xf32>
    %242 = arith.mulf %237, %241 : vector<16x16xf32>
    %243 = vector.broadcast %20 : vector<1x32xf32> to vector<16x32xf32>
    %244 = arith.mulf %225, %243 : vector<16x32xf32>
    %cst_80 = arith.constant dense<0.000000e+00> : vector<16x32xf32>
    %245 = tpu.matmul %242, %244, %cst_80 {dimension_numbers = #tpu.dot_dimension_numbers<[1], [0], [0], [1], [0, 0, 1, 1], [], []>} : vector<16x16xf32>, vector<16x32xf32>, vector<16x32xf32> -> vector<16x32xf32>
    %246 = arith.addf %226, %245 : vector<16x32xf32>
    %247 = vector.extract_strided_slice %223 {offsets = [0, 8], sizes = [16, 8], strides = [1, 1]} : vector<16x32xf32> to vector<16x8xf32>
    %cst_81 = arith.constant 0.353553385 : f32
    %248 = vector.broadcast %cst_81 : f32 to vector<16x8xf32>
    %249 = arith.mulf %247, %248 : vector<16x8xf32>
    %250 = vector.extract_strided_slice %224 {offsets = [0, 8], sizes = [16, 8], strides = [1, 1]} : vector<16x32xf32> to vector<16x8xf32>
    %cst_82 = arith.constant dense<0.000000e+00> : vector<16x16xf32>
    %251 = tpu.matmul %249, %250, %cst_82 {dimension_numbers = #tpu.dot_dimension_numbers<[1], [1], [0], [0], [0, 0, 1, 0], [], []>} : vector<16x8xf32>, vector<16x8xf32>, vector<16x16xf32> -> vector<16x16xf32>
    %252 = arith.addf %251, %12 : vector<16x16xf32>
    %cst_83 = arith.constant dense<0xFF800000> : vector<16xf32>
    %253 = vector.multi_reduction <maximumf>, %252, %cst_83 [1] : vector<16x16xf32> to vector<16xf32>
    %254 = vector.shape_cast %253 : vector<16xf32> to vector<16x1xf32>
    %255 = vector.broadcast %254 : vector<16x1xf32> to vector<16x16xf32>
    %256 = arith.subf %252, %255 : vector<16x16xf32>
    %257 = math.exp %256 : vector<16x16xf32>
    %cst_84 = arith.constant dense<0.000000e+00> : vector<16xf32>
    %258 = vector.multi_reduction <add>, %257, %cst_84 [1] : vector<16x16xf32> to vector<16xf32>
    %259 = vector.shape_cast %258 : vector<16xf32> to vector<16x1xf32>
    %260 = tpu.reciprocal %259 {approx = true} : vector<16x1xf32> -> vector<16x1xf32>
    %261 = vector.broadcast %260 : vector<16x1xf32> to vector<16x16xf32>
    %262 = arith.mulf %257, %261 : vector<16x16xf32>
    %263 = vector.broadcast %27 : vector<1x32xf32> to vector<16x32xf32>
    %264 = arith.mulf %225, %263 : vector<16x32xf32>
    %cst_85 = arith.constant dense<0.000000e+00> : vector<16x32xf32>
    %265 = tpu.matmul %262, %264, %cst_85 {dimension_numbers = #tpu.dot_dimension_numbers<[1], [0], [0], [1], [0, 0, 1, 1], [], []>} : vector<16x16xf32>, vector<16x32xf32>, vector<16x32xf32> -> vector<16x32xf32>
    %266 = arith.addf %246, %265 : vector<16x32xf32>
    %267 = vector.extract_strided_slice %223 {offsets = [0, 16], sizes = [16, 8], strides = [1, 1]} : vector<16x32xf32> to vector<16x8xf32>
    %cst_86 = arith.constant 0.353553385 : f32
    %268 = vector.broadcast %cst_86 : f32 to vector<16x8xf32>
    %269 = arith.mulf %267, %268 : vector<16x8xf32>
    %270 = vector.extract_strided_slice %224 {offsets = [0, 16], sizes = [16, 8], strides = [1, 1]} : vector<16x32xf32> to vector<16x8xf32>
    %cst_87 = arith.constant dense<0.000000e+00> : vector<16x16xf32>
    %271 = tpu.matmul %269, %270, %cst_87 {dimension_numbers = #tpu.dot_dimension_numbers<[1], [1], [0], [0], [0, 0, 1, 0], [], []>} : vector<16x8xf32>, vector<16x8xf32>, vector<16x16xf32> -> vector<16x16xf32>
    %272 = arith.addf %271, %12 : vector<16x16xf32>
    %cst_88 = arith.constant dense<0xFF800000> : vector<16xf32>
    %273 = vector.multi_reduction <maximumf>, %272, %cst_88 [1] : vector<16x16xf32> to vector<16xf32>
    %274 = vector.shape_cast %273 : vector<16xf32> to vector<16x1xf32>
    %275 = vector.broadcast %274 : vector<16x1xf32> to vector<16x16xf32>
    %276 = arith.subf %272, %275 : vector<16x16xf32>
    %277 = math.exp %276 : vector<16x16xf32>
    %cst_89 = arith.constant dense<0.000000e+00> : vector<16xf32>
    %278 = vector.multi_reduction <add>, %277, %cst_89 [1] : vector<16x16xf32> to vector<16xf32>
    %279 = vector.shape_cast %278 : vector<16xf32> to vector<16x1xf32>
    %280 = tpu.reciprocal %279 {approx = true} : vector<16x1xf32> -> vector<16x1xf32>
    %281 = vector.broadcast %280 : vector<16x1xf32> to vector<16x16xf32>
    %282 = arith.mulf %277, %281 : vector<16x16xf32>
    %283 = vector.broadcast %34 : vector<1x32xf32> to vector<16x32xf32>
    %284 = arith.mulf %225, %283 : vector<16x32xf32>
    %cst_90 = arith.constant dense<0.000000e+00> : vector<16x32xf32>
    %285 = tpu.matmul %282, %284, %cst_90 {dimension_numbers = #tpu.dot_dimension_numbers<[1], [0], [0], [1], [0, 0, 1, 1], [], []>} : vector<16x16xf32>, vector<16x32xf32>, vector<16x32xf32> -> vector<16x32xf32>
    %286 = arith.addf %266, %285 : vector<16x32xf32>
    %287 = vector.extract_strided_slice %223 {offsets = [0, 24], sizes = [16, 8], strides = [1, 1]} : vector<16x32xf32> to vector<16x8xf32>
    %cst_91 = arith.constant 0.353553385 : f32
    %288 = vector.broadcast %cst_91 : f32 to vector<16x8xf32>
    %289 = arith.mulf %287, %288 : vector<16x8xf32>
    %290 = vector.extract_strided_slice %224 {offsets = [0, 24], sizes = [16, 8], strides = [1, 1]} : vector<16x32xf32> to vector<16x8xf32>
    %cst_92 = arith.constant dense<0.000000e+00> : vector<16x16xf32>
    %291 = tpu.matmul %289, %290, %cst_92 {dimension_numbers = #tpu.dot_dimension_numbers<[1], [1], [0], [0], [0, 0, 1, 0], [], []>} : vector<16x8xf32>, vector<16x8xf32>, vector<16x16xf32> -> vector<16x16xf32>
    %292 = arith.addf %291, %12 : vector<16x16xf32>
    %cst_93 = arith.constant dense<0xFF800000> : vector<16xf32>
    %293 = vector.multi_reduction <maximumf>, %292, %cst_93 [1] : vector<16x16xf32> to vector<16xf32>
    %294 = vector.shape_cast %293 : vector<16xf32> to vector<16x1xf32>
    %295 = vector.broadcast %294 : vector<16x1xf32> to vector<16x16xf32>
    %296 = arith.subf %292, %295 : vector<16x16xf32>
    %297 = math.exp %296 : vector<16x16xf32>
    %cst_94 = arith.constant dense<0.000000e+00> : vector<16xf32>
    %298 = vector.multi_reduction <add>, %297, %cst_94 [1] : vector<16x16xf32> to vector<16xf32>
    %299 = vector.shape_cast %298 : vector<16xf32> to vector<16x1xf32>
    %300 = tpu.reciprocal %299 {approx = true} : vector<16x1xf32> -> vector<16x1xf32>
    %301 = vector.broadcast %300 : vector<16x1xf32> to vector<16x16xf32>
    %302 = arith.mulf %297, %301 : vector<16x16xf32>
    %303 = vector.broadcast %41 : vector<1x32xf32> to vector<16x32xf32>
    %304 = arith.mulf %225, %303 : vector<16x32xf32>
    %cst_95 = arith.constant dense<0.000000e+00> : vector<16x32xf32>
    %305 = tpu.matmul %302, %304, %cst_95 {dimension_numbers = #tpu.dot_dimension_numbers<[1], [0], [0], [1], [0, 0, 1, 1], [], []>} : vector<16x16xf32>, vector<16x32xf32>, vector<16x32xf32> -> vector<16x32xf32>
    %306 = arith.addf %286, %305 : vector<16x32xf32>
    %307 = arith.truncf %306 : vector<16x32xf32> to vector<16x32xbf16>
    %cst_96 = arith.constant dense<0.000000e+00> : vector<16x32xf32>
    %308 = tpu.matmul %307, %211, %cst_96 {dimension_numbers = #tpu.dot_dimension_numbers<[1], [0], [0], [1], [0, 0, 1, 1], [], []>} : vector<16x32xbf16>, vector<32x32xbf16>, vector<16x32xf32> -> vector<16x32xf32>
    %309 = vector.extract_strided_slice %217 {offsets = [1, 0], sizes = [1, 32], strides = [1, 1]} : vector<8x128xf32> to vector<1x32xf32>
    %310 = vector.broadcast %309 : vector<1x32xf32> to vector<16x32xf32>
    %311 = arith.addf %308, %310 : vector<16x32xf32>
    %312 = arith.addf %207, %311 : vector<16x32xf32>
    %313 = vector.extract_strided_slice %217 {offsets = [2, 0], sizes = [1, 32], strides = [1, 1]} : vector<8x128xf32> to vector<1x32xf32>
    %314 = vector.extract_strided_slice %217 {offsets = [3, 0], sizes = [1, 32], strides = [1, 1]} : vector<8x128xf32> to vector<1x32xf32>
    %cst_97 = arith.constant dense<0.000000e+00> : vector<16xf32>
    %315 = vector.multi_reduction <add>, %312, %cst_97 [1] : vector<16x32xf32> to vector<16xf32>
    %316 = vector.shape_cast %315 : vector<16xf32> to vector<16x1xf32>
    %cst_98 = arith.constant 3.200000e+01 : f32
    %317 = vector.broadcast %cst_98 : f32 to vector<16x1xf32>
    %318 = arith.divf %316, %317 : vector<16x1xf32>
    %319 = vector.broadcast %318 : vector<16x1xf32> to vector<16x32xf32>
    %320 = arith.subf %312, %319 : vector<16x32xf32>
    %321 = arith.mulf %320, %320 : vector<16x32xf32>
    %cst_99 = arith.constant dense<0.000000e+00> : vector<16xf32>
    %322 = vector.multi_reduction <add>, %321, %cst_99 [1] : vector<16x32xf32> to vector<16xf32>
    %323 = vector.shape_cast %322 : vector<16xf32> to vector<16x1xf32>
    %cst_100 = arith.constant 3.200000e+01 : f32
    %324 = vector.broadcast %cst_100 : f32 to vector<16x1xf32>
    %325 = arith.divf %323, %324 : vector<16x1xf32>
    %326 = vector.broadcast %318 : vector<16x1xf32> to vector<16x32xf32>
    %327 = arith.subf %312, %326 : vector<16x32xf32>
    %cst_101 = arith.constant 9.99999974E-6 : f32
    %328 = vector.broadcast %cst_101 : f32 to vector<16x1xf32>
    %329 = arith.addf %325, %328 : vector<16x1xf32>
    %330 = math.rsqrt %329 : vector<16x1xf32>
    %331 = vector.broadcast %330 : vector<16x1xf32> to vector<16x32xf32>
    %332 = arith.mulf %327, %331 : vector<16x32xf32>
    %333 = vector.broadcast %313 : vector<1x32xf32> to vector<16x32xf32>
    %334 = arith.mulf %332, %333 : vector<16x32xf32>
    %335 = vector.broadcast %314 : vector<1x32xf32> to vector<16x32xf32>
    %336 = arith.addf %334, %335 : vector<16x32xf32>
    %337 = arith.truncf %336 : vector<16x32xf32> to vector<16x32xbf16>
    %cst_102 = arith.constant dense<0.000000e+00> : vector<16x64xf32>
    %338 = tpu.matmul %337, %213, %cst_102 {dimension_numbers = #tpu.dot_dimension_numbers<[1], [0], [0], [1], [0, 0, 1, 1], [], []>} : vector<16x32xbf16>, vector<32x64xbf16>, vector<16x64xf32> -> vector<16x64xf32>
    %339 = vector.extract_strided_slice %217 {offsets = [4, 0], sizes = [1, 64], strides = [1, 1]} : vector<8x128xf32> to vector<1x64xf32>
    %340 = vector.broadcast %339 : vector<1x64xf32> to vector<16x64xf32>
    %341 = arith.addf %338, %340 : vector<16x64xf32>
    %cst_103 = arith.constant 0.000000e+00 : f32
    %342 = vector.broadcast %cst_103 : f32 to vector<16x64xf32>
    %343 = arith.maximumf %341, %342 : vector<16x64xf32>
    %344 = arith.truncf %343 : vector<16x64xf32> to vector<16x64xbf16>
    %cst_104 = arith.constant dense<0.000000e+00> : vector<16x32xf32>
    %345 = tpu.matmul %344, %215, %cst_104 {dimension_numbers = #tpu.dot_dimension_numbers<[1], [0], [0], [1], [0, 0, 1, 1], [], []>} : vector<16x64xbf16>, vector<64x32xbf16>, vector<16x32xf32> -> vector<16x32xf32>
    %346 = vector.extract_strided_slice %217 {offsets = [5, 0], sizes = [1, 32], strides = [1, 1]} : vector<8x128xf32> to vector<1x32xf32>
    %347 = vector.broadcast %346 : vector<1x32xf32> to vector<16x32xf32>
    %348 = arith.addf %345, %347 : vector<16x32xf32>
    %349 = arith.addf %336, %348 : vector<16x32xf32>
    %350 = vector.extract_strided_slice %217 {offsets = [6, 0], sizes = [1, 32], strides = [1, 1]} : vector<8x128xf32> to vector<1x32xf32>
    %351 = vector.extract_strided_slice %217 {offsets = [7, 0], sizes = [1, 32], strides = [1, 1]} : vector<8x128xf32> to vector<1x32xf32>
    %cst_105 = arith.constant dense<0.000000e+00> : vector<16xf32>
    %352 = vector.multi_reduction <add>, %349, %cst_105 [1] : vector<16x32xf32> to vector<16xf32>
    %353 = vector.shape_cast %352 : vector<16xf32> to vector<16x1xf32>
    %cst_106 = arith.constant 3.200000e+01 : f32
    %354 = vector.broadcast %cst_106 : f32 to vector<16x1xf32>
    %355 = arith.divf %353, %354 : vector<16x1xf32>
    %356 = vector.broadcast %355 : vector<16x1xf32> to vector<16x32xf32>
    %357 = arith.subf %349, %356 : vector<16x32xf32>
    %358 = arith.mulf %357, %357 : vector<16x32xf32>
    %cst_107 = arith.constant dense<0.000000e+00> : vector<16xf32>
    %359 = vector.multi_reduction <add>, %358, %cst_107 [1] : vector<16x32xf32> to vector<16xf32>
    %360 = vector.shape_cast %359 : vector<16xf32> to vector<16x1xf32>
    %cst_108 = arith.constant 3.200000e+01 : f32
    %361 = vector.broadcast %cst_108 : f32 to vector<16x1xf32>
    %362 = arith.divf %360, %361 : vector<16x1xf32>
    %363 = vector.broadcast %355 : vector<16x1xf32> to vector<16x32xf32>
    %364 = arith.subf %349, %363 : vector<16x32xf32>
    %cst_109 = arith.constant 9.99999974E-6 : f32
    %365 = vector.broadcast %cst_109 : f32 to vector<16x1xf32>
    %366 = arith.addf %362, %365 : vector<16x1xf32>
    %367 = math.rsqrt %366 : vector<16x1xf32>
    %368 = vector.broadcast %367 : vector<16x1xf32> to vector<16x32xf32>
    %369 = arith.mulf %364, %368 : vector<16x32xf32>
    %370 = vector.broadcast %350 : vector<1x32xf32> to vector<16x32xf32>
    %371 = arith.mulf %369, %370 : vector<16x32xf32>
    %372 = vector.broadcast %351 : vector<1x32xf32> to vector<16x32xf32>
    %373 = arith.addf %371, %372 : vector<16x32xf32>
    %c32 = arith.constant 32 : index
    %c0_110 = arith.constant 0 : index
    %374 = vector.load %arg2[%c32, %c0_110] : memref<67x128xf32, #tpu.memory_space<vmem>>, vector<2x16xf32>
    %c34 = arith.constant 34 : index
    %c0_111 = arith.constant 0 : index
    %375 = vector.load %arg2[%c34, %c0_111] : memref<67x128xf32, #tpu.memory_space<vmem>>, vector<32x8xf32>
    %c66 = arith.constant 66 : index
    %c0_112 = arith.constant 0 : index
    %376 = vector.load %arg2[%c66, %c0_112] : memref<67x128xf32, #tpu.memory_space<vmem>>, vector<1x8xf32>
    %cst_113 = arith.constant dense<0.000000e+00> : vector<2x32xf32>
    %377 = tpu.matmul %374, %373, %cst_113 {dimension_numbers = #tpu.dot_dimension_numbers<[1], [0], [0], [1], [0, 0, 1, 1], [], []>} : vector<2x16xf32>, vector<16x32xf32>, vector<2x32xf32> -> vector<2x32xf32>
    %cst_114 = arith.constant dense<0.000000e+00> : vector<2x8xf32>
    %378 = tpu.matmul %377, %375, %cst_114 {dimension_numbers = #tpu.dot_dimension_numbers<[1], [0], [0], [1], [0, 0, 1, 1], [], []>} : vector<2x32xf32>, vector<32x8xf32>, vector<2x8xf32> -> vector<2x8xf32>
    %379 = vector.broadcast %376 : vector<1x8xf32> to vector<2x8xf32>
    %380 = arith.addf %378, %379 : vector<2x8xf32>
    %c0_115 = arith.constant 0 : index
    %c0_116 = arith.constant 0 : index
    %381 = vector.load %arg6[%c0_115, %c0_116] : memref<2x8xf32, #tpu.memory_space<vmem>>, vector<2x8xf32>
    tpu.vector_store %arg6[%c0_115, %c0_116], %380 {strides = array<i32>} : memref<2x8xf32, #tpu.memory_space<vmem>>, vector<2x8xf32>,
    return
  }
}

</mosaic_0001>

<llo_original>
// kernel: simple_transformer_forward.1
$region0: #{simple_transformer_forward.1}
  #allocation0 [shape = 'u32[]', space=smem, size = 0x4, offset = 0x4, fixed_abs, tag = 'smem constant byte address 0x4 - core index']
  #allocation1 [shape = 'u32[144,128]{1,0:T(1,128)}', space=vmem, size = 0x12000, scoped, tag = 'internal scratch']
  %s0 = inlined_call_operand.vmem [shape: s32[16,1], index: 0, kind: input, shape index: {}]
  %s1 = inlined_call_operand.vmem [shape: bf16[64,32], index: 1, kind: input, shape index: {}]
  %s2 = inlined_call_operand.vmem [shape: f32[67,128], index: 2, kind: input, shape index: {}]
  %s3 = inlined_call_operand.vmem [shape: bf16[2,32,192], index: 3, kind: input, shape index: {}]
  %s4 = inlined_call_operand.vmem [shape: bf16[2,64,32], index: 4, kind: input, shape index: {}]
  %s5 = inlined_call_operand.hbm [shape: f32[2,8,128], index: 5, kind: input, shape index: {}]
  %s6 = inlined_call_operand.hbm [shape: f32[2,8], index: 6, kind: output, shape index: {}]
  %s7 = sld [smem:[#allocation0]]
  $region38: #{simple_transformer_forward.1} parent=0
    _
  %s9 = ssub.s32 1, %s7
  %s10 = scalar_select 0, %s9, %s7
  $region1: #{simple_transformer_forward.1} parent=0
    #allocation2 [shape = 'u8[8192]{0}', space=vmem, size = 0x2000, scoped, tag = 'input window, operand 5, single buffered']
    #allocation3 [shape = 's32[1]{0}', space=sflag, size = 0x4, scoped, tag = 'scoped memory for simple_transformer_forward.1']
    #allocation4 [shape = 's32[1]{0}', space=sflag, size = 0x4, scoped, tag = 'scoped memory for simple_transformer_forward.1']
    #allocation5 [shape = 'u8[1024]{0}', space=vmem, size = 0x400, scoped, tag = 'output window, operand 0, single buffered']
    %11 = vsyncpa [#allocation3], 0
    %12 = vsyncpa [#allocation4], 0
    // Predicated region
    $region2: #{simple_transformer_forward.1} parent=1 // pred_check
      _
    $region3: #{simple_transformer_forward.1} parent=1 // pred_check_branch
      %14 = sbr.rel (0) target = $region5
    $region4: #{simple_transformer_forward.1} parent=1 // pred_region
      _
    $region5: #{simple_transformer_forward.1} parent=1 // pred_fallthru
      _
    // Predicated region
    $region6: #{simple_transformer_forward.1} parent=1 // pred_check
      _
    $region7: #{simple_transformer_forward.1} parent=1 // pred_check_branch
      %16 = sbr.rel (0) target = $region9
    $region8: #{simple_transformer_forward.1} parent=1 // pred_region
      _
    $region9: #{simple_transformer_forward.1} parent=1 // pred_fallthru
      _
    // Predicated region
    $region10: #{simple_transformer_forward.1} parent=1 // pred_check
      _
    $region11: #{simple_transformer_forward.1} parent=1 // pred_check_branch
      %18 = sbr.rel (0) target = $region13
    $region12: #{simple_transformer_forward.1} parent=1 // pred_region
      _
    $region13: #{simple_transformer_forward.1} parent=1 // pred_fallthru
      _
    // Predicated region
    $region14: #{simple_transformer_forward.1} parent=1 // pred_check
      _
    $region15: #{simple_transformer_forward.1} parent=1 // pred_check_branch
      %20 = sbr.rel (0) target = $region17
    $region16: #{simple_transformer_forward.1} parent=1 // pred_region
      _
    $region17: #{simple_transformer_forward.1} parent=1 // pred_fallthru
      _
    // Predicated region
    $region18: #{simple_transformer_forward.1} parent=1 // pred_check
      _
    $region19: #{simple_transformer_forward.1} parent=1 // pred_check_branch
      %22 = sbr.rel (0) target = $region21
    $region20: #{simple_transformer_forward.1} parent=1 // pred_region
      _
    $region21: #{simple_transformer_forward.1} parent=1 // pred_fallthru
      _
    // Predicated region
    $region22: #{simple_transformer_forward.1} parent=1 // pred_check
      _
    $region23: #{simple_transformer_forward.1} parent=1 // pred_check_branch
      %24 = sbr.rel (0) target = $region25
    $region24: #{simple_transformer_forward.1} parent=1 // pred_region
      %s26 = ssub.s32 256, 256
      %27 = vsyncadd [#allocation3], %s26
      %s28 = sshll.u32 [#allocation2], 4
      %s29 = int_to_ptr.vmem [resolvable:$true] %s28
      %34 = dma.hbm_to_vmem [thread:$0]  %s5, 256, %s29, [#allocation3], 128, 128, 8
    $region25: #{simple_transformer_forward.1} parent=1 // pred_fallthru
      _
    // Predicated region
    $region26: #{simple_transformer_forward.1} parent=1 // pred_check
      _
    $region27: #{simple_transformer_forward.1} parent=1 // pred_check_branch
      %36 = sbr.rel (0) target = $region29
    $region28: #{simple_transformer_forward.1} parent=1 // pred_region
      %37 = dma.done [#allocation3], 256
    $region29: #{simple_transformer_forward.1} parent=1 // pred_fallthru
      _
    %v39 = vld [vmem:[%s0] sm:$0xff]
    %v40 = vld [vmem:[%s0 + $0x8] sm:$0xff]
    %v41 = vlaneseq
    %v42 = vand.u32 %v41, 127
    %43 = vset.pattern.permute.xlu0 0
    %44 = vperm.xlu0 %43, %v39
    %v45 = vpop.permute.xlu0 %44
    %46 = vset.pattern.permute.xlu0 0
    %47 = vperm.xlu0 %46, %v40
    %v48 = vpop.permute.xlu0 %47
    %vm49 = vcmp.eq.s32.totalorder %v42, %v45
    %vm50 = vcmp.eq.s32.totalorder %v42, %v48
    %v51 = vsel %vm49, 1.0, 0.0
    %v52 = vsel %vm50, 1.0, 0.0
    %v53 = vpack.c.bf16 %v52, %v51
    %v54 = vld [vmem:[%s2] sm:$0xff]
    %v55 = vld [vmem:[%s2 + $0x8] sm:$0xff]
    %v56 = vld [vmem:[%s1] sm:$0xf]
    %v57 = vld [vmem:[%s1 + $0x4] sm:$0xf]
    %v58 = vld [vmem:[%s1 + $0x8] sm:$0xf]
    %v59 = vld [vmem:[%s1 + $0xc] sm:$0xf]
    %v60 = vld [vmem:[%s1 + $0x10] sm:$0xf]
    %v61 = vld [vmem:[%s1 + $0x14] sm:$0xf]
    %v62 = vld [vmem:[%s1 + $0x18] sm:$0xf]
    %v63 = vld [vmem:[%s1 + $0x1c] sm:$0xf]
    %v72 = vunpack.c.l.b16 %v56
    %v73 = vunpack.c.l.b16 %v57
    %v74 = vunpack.c.l.b16 %v58
    %v75 = vunpack.c.l.b16 %v59
    %v76 = vunpack.c.l.b16 %v60
    %v77 = vunpack.c.l.b16 %v61
    %v78 = vunpack.c.l.b16 %v62
    %v79 = vunpack.c.l.b16 %v63
    %v80 = vpack.c.b16 %v73, %v72
    %v81 = vpack.c.b16 %v75, %v74
    %v82 = vpack.c.b16 %v77, %v76
    %v83 = vpack.c.b16 %v79, %v78
    %vm88 = vcmask 523264
    %v90 = vsel %vm88, %v53, 0
    %92 = vmatprep.subr.bf16.mxu0 0
    %93 = vmatpush1.bf16.msra.mxu0 0
    %94 = vmatprep.subr.bf16.mxu0 0
    %95 = vmatpush1.bf16.msra.mxu0 0
    %96 = vmatprep.subr.bf16.mxu0 0
    %97 = vmatpush1.bf16.msra.mxu0 0
    %98 = vmatprep.subr.bf16.mxu0 0
    %99 = vmatpush1.bf16.msra.mxu0 0
    %100 = vmatprep.subr.bf16.mxu0 0
    %101 = vmatpush1.bf16.msra.mxu0 %v83
    %102 = vmatprep.subr.bf16.mxu0 0
    %103 = vmatpush1.bf16.msra.mxu0 %v82
    %104 = vmatprep.subr.bf16.mxu0 0
    %105 = vmatpush1.bf16.msra.mxu0 %v81
    %106 = vmatprep.subr.bf16.mxu0 0
    %107 = vmatpush1.bf16.msra.mxu0 %v80
    %108 = vmatprep.subr.bf16.mxu0 0
    %109 = vmatpush2.bf16.msra.mxu0 0
    %110 = vmatprep.subr.bf16.mxu0 0
    %111 = vmatpush2.bf16.msra.mxu0 0
    %112 = vmatprep.subr.bf16.mxu0 0
    %113 = vmatpush2.bf16.msra.mxu0 0
    %114 = vmatprep.subr.bf16.mxu0 0
    %115 = vmatpush2.bf16.msra.mxu0 0
    %116 = vmatprep.subr.bf16.mxu0 0
    %117 = vmatpush2.bf16.msra.mxu0 0
    %118 = vmatprep.subr.bf16.mxu0 0
    %119 = vmatpush2.bf16.msra.mxu0 0
    %120 = vmatprep.subr.bf16.mxu0 0
    %121 = vmatpush2.bf16.msra.mxu0 0
    %122 = vmatprep.subr.bf16.mxu0 0
    %123 = vmatpush2.bf16.msra.mxu0 0
    %124 = vmatprep.mubr.bf16.mxu0 0
    %125 = vmatmul.mubr.bf16.gmra.mxu0 %v90
    %v126 = vpop.f32.mrf.mxu0
    %v127 = vadd.f32 %v54, %v126
    %v128 = vpop.f32.mrf.mxu0
    %v129 = vpop.f32.mrf.mxu0
    %v130 = vadd.f32 %v55, %v129
    %v131 = vpop.f32.mrf.mxu0
    %132 = vdwg.mxu0
    %v133 = vld [vmem:[%s2 + $0x10] sm:$0xff]
    %v134 = vld [vmem:[%s2 + $0x18] sm:$0xff]
    %vm135 = vcmp.ge.s32.totalorder %v42, 0
    %vm136 = vcmp.lt.s32.totalorder %v42, 8
    %vm137 = vmand %vm135, %vm136
    %v138 = vsel %vm137, 1, 0
    %v139 = vcvt.s32.f32 %v138
    %vm140 = vcmp.ge.s32.totalorder %v42, 8
    %vm141 = vcmp.lt.s32.totalorder %v42, 16
    %vm142 = vmand %vm140, %vm141
    %v143 = vsel %vm142, 1, 0
    %v144 = vcvt.s32.f32 %v143
    %vm145 = vcmp.ge.s32.totalorder %v42, 16
    %vm146 = vcmp.lt.s32.totalorder %v42, 24
    %vm147 = vmand %vm145, %vm146
    %v148 = vsel %vm147, 1, 0
    %v149 = vcvt.s32.f32 %v148
    %vm150 = vcmp.ge.s32.totalorder %v42, 24
    %vm151 = vcmp.lt.s32.totalorder %v42, 32
    %vm152 = vmand %vm150, %vm151
    %v153 = vsel %vm152, 1, 0
    %v154 = vcvt.s32.f32 %v153
    %v155 = vld [vmem:[%s3] sm:$0xf]
    %v156 = vld [vmem:[%s3 + $0x8] sm:$0xf]
    %v157 = vld [vmem:[%s3 + $0x10] sm:$0xf]
    %v158 = vld [vmem:[%s3 + $0x18] sm:$0xf]
    %v159 = vld [vmem:[%s3 + $0x4] sm:$0xf]
    %v160 = vld [vmem:[%s3 + $0xc] sm:$0xf]
    %v161 = vld [vmem:[%s3 + $0x14] sm:$0xf]
    %v162 = vld [vmem:[%s3 + $0x1c] sm:$0xf]
    %v163 = vld [vmem:[%s4] sm:$0xf]
    %v164 = vld [vmem:[%s4 + $0x4] sm:$0xf]
    %v165 = vld [vmem:[%s4 + $0x8] sm:$0xf]
    %v166 = vld [vmem:[%s4 + $0xc] sm:$0xf]
    %v167 = vld [vmem:[%s4 + $0x10] sm:$0xf]
    %v168 = vld [vmem:[%s4 + $0x14] sm:$0xf]
    %v169 = vld [vmem:[%s4 + $0x18] sm:$0xf]
    %v170 = vld [vmem:[%s4 + $0x1c] sm:$0xf]
    %v171 = vld [vmem:[#allocation2] sm:$0xff]
    %v172 = vpack.c.bf16 %v130, %v127
    %v173 = vlaneseq
    %v174 = vshrl.u32 %v173, 7
    %v175 = vsub.s32 0, %v174
    %v176 = vrot.slane %v171, %v175
    %v181 = vunpack.c.l.b16 %v155
    %v182 = vunpack.c.l.b16 %v156
    %v183 = vunpack.c.l.b16 %v157
    %v184 = vunpack.c.l.b16 %v158
    %v185 = vpack.c.b16 %v182, %v181
    %v186 = vpack.c.b16 %v184, %v183
    %vm189 = vcmask 261120
    %v191 = vsel %vm189, %v172, 0
    %193 = vmatprep.subr.bf16.mxu0 0
    %194 = vmatpush1.bf16.msra.mxu0 0
    %195 = vmatprep.subr.bf16.mxu0 0
    %196 = vmatpush1.bf16.msra.mxu0 0
    %197 = vmatprep.subr.bf16.mxu0 0
    %198 = vmatpush1.bf16.msra.mxu0 0
    %199 = vmatprep.subr.bf16.mxu0 0
    %200 = vmatpush1.bf16.msra.mxu0 0
    %201 = vmatprep.subr.bf16.mxu0 0
    %202 = vmatpush1.bf16.msra.mxu0 0
    %203 = vmatprep.subr.bf16.mxu0 0
    %204 = vmatpush1.bf16.msra.mxu0 0
    %205 = vmatprep.subr.bf16.mxu0 0
    %206 = vmatpush1.bf16.msra.mxu0 %v186
    %207 = vmatprep.subr.bf16.mxu0 0
    %208 = vmatpush1.bf16.msra.mxu0 %v185
    %209 = vmatprep.subr.bf16.mxu0 0
    %210 = vmatpush2.bf16.msra.mxu0 0
    %211 = vmatprep.subr.bf16.mxu0 0
    %212 = vmatpush2.bf16.msra.mxu0 0
    %213 = vmatprep.subr.bf16.mxu0 0
    %214 = vmatpush2.bf16.msra.mxu0 0
    %215 = vmatprep.subr.bf16.mxu0 0
    %216 = vmatpush2.bf16.msra.mxu0 0
    %217 = vmatprep.subr.bf16.mxu0 0
    %218 = vmatpush2.bf16.msra.mxu0 0
    %219 = vmatprep.subr.bf16.mxu0 0
    %220 = vmatpush2.bf16.msra.mxu0 0
    %221 = vmatprep.subr.bf16.mxu0 0
    %222 = vmatpush2.bf16.msra.mxu0 0
    %223 = vmatprep.subr.bf16.mxu0 0
    %224 = vmatpush2.bf16.msra.mxu0 0
    %225 = vmatprep.mubr.bf16.mxu0 0
    %226 = vmatmul.mubr.bf16.gmra.mxu0 %v191
    %v227 = vpop.f32.mrf.mxu0
    %v228 = vadd.f32 %v176, %v227
    %v229 = vpop.f32.mrf.mxu0
    %v230 = vpop.f32.mrf.mxu0
    %v231 = vadd.f32 %v176, %v230
    %v232 = vpop.f32.mrf.mxu0
    %233 = vdwg.mxu0
    %v234 = vmul.f32 %v228, 0.35355338
    %v235 = vmul.f32 %v231, 0.35355338
    %238 = vrot.lane.b32.xlu0 %v228, 96
    %v239 = vpop.permute.xlu0 %238
    %240 = vrot.lane.b32.xlu0 %v231, 96
    %v241 = vpop.permute.xlu0 %240
    %vm242 = vcmask 64512
    %v244 = vsel %vm242, %v234, 0
    %v247 = vsel %vm242, %v235, 0
    %v249 = vsel %vm242, %v239, 0
    %v251 = vsel %vm242, %v241, 0
    %253 = vmatprep.subr.mxu0 0.0
    %254 = vmatpush1.xpose.msra.mxu0 0.0
    %255 = vmatprep.subr.mxu0 0.0
    %256 = vmatpush1.xpose.msra.mxu0 0.0
    %257 = vmatprep.subr.mxu0 0.0
    %258 = vmatpush1.xpose.msra.mxu0 0.0
    %259 = vmatprep.subr.mxu0 0.0
    %260 = vmatpush1.xpose.msra.mxu0 0.0
    %261 = vmatprep.subr.mxu0 0.0
    %262 = vmatpush1.xpose.msra.mxu0 0.0
    %263 = vmatprep.subr.mxu0 0.0
    %264 = vmatpush1.xpose.msra.mxu0 0.0
    %265 = vmatprep.subr.mxu0 0.0
    %266 = vmatpush1.xpose.msra.mxu0 0.0
    %267 = vmatprep.subr.mxu0 0.0
    %268 = vmatpush1.xpose.msra.mxu0 0.0
    %269 = vmatprep.subr.mxu0 0.0
    %270 = vmatpush1.xpose.msra.mxu0 0.0
    %271 = vmatprep.subr.mxu0 0.0
    %272 = vmatpush1.xpose.msra.mxu0 0.0
    %273 = vmatprep.subr.mxu0 0.0
    %274 = vmatpush1.xpose.msra.mxu0 0.0
    %275 = vmatprep.subr.mxu0 0.0
    %276 = vmatpush1.xpose.msra.mxu0 0.0
    %277 = vmatprep.subr.mxu0 0.0
    %278 = vmatpush1.xpose.msra.mxu0 0.0
    %279 = vmatprep.subr.mxu0 0.0
    %280 = vmatpush1.xpose.msra.mxu0 0.0
    %281 = vmatprep.subr.mxu0 0.0
    %282 = vmatpush1.xpose.msra.mxu0 %v251
    %283 = vmatprep.subr.mxu0 0.0
    %284 = vmatpush1.xpose.msra.mxu0 %v249
    %285 = vmatprep.subr.mxu0 0.0
    %286 = vmatpush2.xpose.msra.mxu0 0.0
    %287 = vmatprep.subr.mxu0 0.0
    %288 = vmatpush2.xpose.msra.mxu0 0.0
    %289 = vmatprep.subr.mxu0 0.0
    %290 = vmatpush2.xpose.msra.mxu0 0.0
    %291 = vmatprep.subr.mxu0 0.0
    %292 = vmatpush2.xpose.msra.mxu0 0.0
    %293 = vmatprep.subr.mxu0 0.0
    %294 = vmatpush2.xpose.msra.mxu0 0.0
    %295 = vmatprep.subr.mxu0 0.0
    %296 = vmatpush2.xpose.msra.mxu0 0.0
    %297 = vmatprep.subr.mxu0 0.0
    %298 = vmatpush2.xpose.msra.mxu0 0.0
    %299 = vmatprep.subr.mxu0 0.0
    %300 = vmatpush2.xpose.msra.mxu0 0.0
    %301 = vmatprep.subr.mxu0 0.0
    %302 = vmatpush2.xpose.msra.mxu0 0.0
    %303 = vmatprep.subr.mxu0 0.0
    %304 = vmatpush2.xpose.msra.mxu0 0.0
    %305 = vmatprep.subr.mxu0 0.0
    %306 = vmatpush2.xpose.msra.mxu0 0.0
    %307 = vmatprep.subr.mxu0 0.0
    %308 = vmatpush2.xpose.msra.mxu0 0.0
    %309 = vmatprep.subr.mxu0 0.0
    %310 = vmatpush2.xpose.msra.mxu0 0.0
    %311 = vmatprep.subr.mxu0 0.0
    %312 = vmatpush2.xpose.msra.mxu0 0.0
    %313 = vmatprep.subr.mxu0 0.0
    %314 = vmatpush2.xpose.msra.mxu0 0.0
    %315 = vmatprep.subr.mxu0 0.0
    %316 = vmatpush2.xpose.msra.mxu0 0.0
    %317 = vmatprep.mubr.f32.mxu0 0.0
    %318 = vmatmul.mubr.f32.gmra.mxu0 %v244
    %v319 = vpop.f32.mrf.mxu0
    %v320 = vadd.f32 %v133, %v319
    %v321 = vpop.f32.mrf.mxu0
    %322 = vmatprep.mubr.f32.mxu0 0.0
    %323 = vmatmul.mubr.f32.gmra.mxu0 %v247
    %v324 = vpop.f32.mrf.mxu0
    %v325 = vadd.f32 %v134, %v324
    %v326 = vpop.f32.mrf.mxu0
    %327 = vdwg.mxu0
    %vm328 = vcmask 130048
    %v329 = vsel %vm328, %v320, -inf
    %330 = vmax.xlane.f32.xlu0 %v329
    %v331 = vpop.xlane.xlu0 %330
    %v332 = vsel %vm328, %v325, -inf
    %333 = vmax.xlane.f32.xlu0 %v332
    %v334 = vpop.xlane.xlu0 %333
    %v335 = vsub.f32 %v320, %v331
    %v336 = vsub.f32 %v325, %v334
    %v337 = vmul.f32 %v335, 1.442695
    %v338 = vpow.pop %v337
    %v339 = vmul.f32 %v336, 1.442695
    %v340 = vpow.pop %v339
    %v341 = vsel %vm328, %v338, 0.0
    %342 = vadd.xlane.f32.xlu0 %v341
    %v343 = vpop.xlane.xlu0 %342
    %v344 = vsel %vm328, %v340, 0.0
    %345 = vadd.xlane.f32.xlu0 %v344
    %v346 = vpop.xlane.xlu0 %345
    %v347 = vrcp.pop %v343
    %v348 = vrcp.pop %v346
    %v349 = vmul.f32 %v338, %v347
    %v350 = vmul.f32 %v340, %v348
    %352 = vrot.lane.b32.xlu0 %v139, 64
    %v353 = vpop.permute.xlu0 %352
    %v355 = vmul.f32 %v228, %v353
    %v356 = vmul.f32 %v231, %v353
    %357 = vrot.lane.b32.xlu0 %v234, 120
    %v358 = vpop.permute.xlu0 %357
    %359 = vrot.lane.b32.xlu0 %v235, 120
    %v360 = vpop.permute.xlu0 %359
    %361 = vrot.lane.b32.xlu0 %v228, 88
    %v362 = vpop.permute.xlu0 %361
    %363 = vrot.lane.b32.xlu0 %v231, 88
    %v364 = vpop.permute.xlu0 %363
    %v365 = vsel %vm242, %v358, 0
    %v367 = vsel %vm242, %v360, 0
    %v369 = vsel %vm242, %v362, 0
    %v371 = vsel %vm242, %v364, 0
    %373 = vmatprep.subr.mxu0 0.0
    %374 = vmatpush1.xpose.msra.mxu0 0.0
    %375 = vmatprep.subr.mxu0 0.0
    %376 = vmatpush1.xpose.msra.mxu0 0.0
    %377 = vmatprep.subr.mxu0 0.0
    %378 = vmatpush1.xpose.msra.mxu0 0.0
    %379 = vmatprep.subr.mxu0 0.0
    %380 = vmatpush1.xpose.msra.mxu0 0.0
    %381 = vmatprep.subr.mxu0 0.0
    %382 = vmatpush1.xpose.msra.mxu0 0.0
    %383 = vmatprep.subr.mxu0 0.0
    %384 = vmatpush1.xpose.msra.mxu0 0.0
    %385 = vmatprep.subr.mxu0 0.0
    %386 = vmatpush1.xpose.msra.mxu0 0.0
    %387 = vmatprep.subr.mxu0 0.0
    %388 = vmatpush1.xpose.msra.mxu0 0.0
    %389 = vmatprep.subr.mxu0 0.0
    %390 = vmatpush1.xpose.msra.mxu0 0.0
    %391 = vmatprep.subr.mxu0 0.0
    %392 = vmatpush1.xpose.msra.mxu0 0.0
    %393 = vmatprep.subr.mxu0 0.0
    %394 = vmatpush1.xpose.msra.mxu0 0.0
    %395 = vmatprep.subr.mxu0 0.0
    %396 = vmatpush1.xpose.msra.mxu0 0.0
    %397 = vmatprep.subr.mxu0 0.0
    %398 = vmatpush1.xpose.msra.mxu0 0.0
    %399 = vmatprep.subr.mxu0 0.0
    %400 = vmatpush1.xpose.msra.mxu0 0.0
    %401 = vmatprep.subr.mxu0 0.0
    %402 = vmatpush1.xpose.msra.mxu0 %v371
    %403 = vmatprep.subr.mxu0 0.0
    %404 = vmatpush1.xpose.msra.mxu0 %v369
    %405 = vmatprep.subr.mxu0 0.0
    %406 = vmatpush2.xpose.msra.mxu0 0.0
    %407 = vmatprep.subr.mxu0 0.0
    %408 = vmatpush2.xpose.msra.mxu0 0.0
    %409 = vmatprep.subr.mxu0 0.0
    %410 = vmatpush2.xpose.msra.mxu0 0.0
    %411 = vmatprep.subr.mxu0 0.0
    %412 = vmatpush2.xpose.msra.mxu0 0.0
    %413 = vmatprep.subr.mxu0 0.0
    %414 = vmatpush2.xpose.msra.mxu0 0.0
    %415 = vmatprep.subr.mxu0 0.0
    %416 = vmatpush2.xpose.msra.mxu0 0.0
    %417 = vmatprep.subr.mxu0 0.0
    %418 = vmatpush2.xpose.msra.mxu0 0.0
    %419 = vmatprep.subr.mxu0 0.0
    %420 = vmatpush2.xpose.msra.mxu0 0.0
    %421 = vmatprep.subr.mxu0 0.0
    %422 = vmatpush2.xpose.msra.mxu0 0.0
    %423 = vmatprep.subr.mxu0 0.0
    %424 = vmatpush2.xpose.msra.mxu0 0.0
    %425 = vmatprep.subr.mxu0 0.0
    %426 = vmatpush2.xpose.msra.mxu0 0.0
    %427 = vmatprep.subr.mxu0 0.0
    %428 = vmatpush2.xpose.msra.mxu0 0.0
    %429 = vmatprep.subr.mxu0 0.0
    %430 = vmatpush2.xpose.msra.mxu0 0.0
    %431 = vmatprep.subr.mxu0 0.0
    %432 = vmatpush2.xpose.msra.mxu0 0.0
    %433 = vmatprep.subr.mxu0 0.0
    %434 = vmatpush2.xpose.msra.mxu0 0.0
    %435 = vmatprep.subr.mxu0 0.0
    %436 = vmatpush2.xpose.msra.mxu0 0.0
    %437 = vmatprep.mubr.f32.mxu0 0.0
    %438 = vmatmul.mubr.f32.gmra.mxu0 %v365
    %v439 = vpop.f32.mrf.mxu0
    %v440 = vadd.f32 %v133, %v439
    %v441 = vpop.f32.mrf.mxu0
    %442 = vmatprep.mubr.f32.mxu0 0.0
    %443 = vmatmul.mubr.f32.gmra.mxu0 %v367
    %v444 = vpop.f32.mrf.mxu0
    %v445 = vadd.f32 %v134, %v444
    %v446 = vpop.f32.mrf.mxu0
    %447 = vdwg.mxu0
    %v448 = vsel %vm328, %v440, -inf
    %449 = vmax.xlane.f32.xlu0 %v448
    %v450 = vpop.xlane.xlu0 %449
    %v451 = vsel %vm328, %v445, -inf
    %452 = vmax.xlane.f32.xlu0 %v451
    %v453 = vpop.xlane.xlu0 %452
    %v454 = vsub.f32 %v440, %v450
    %v455 = vsub.f32 %v445, %v453
    %v456 = vmul.f32 %v454, 1.442695
    %v457 = vpow.pop %v456
    %v458 = vmul.f32 %v455, 1.442695
    %v459 = vpow.pop %v458
    %v460 = vsel %vm328, %v457, 0.0
    %461 = vadd.xlane.f32.xlu0 %v460
    %v462 = vpop.xlane.xlu0 %461
    %v463 = vsel %vm328, %v459, 0.0
    %464 = vadd.xlane.f32.xlu0 %v463
    %v465 = vpop.xlane.xlu0 %464
    %v466 = vrcp.pop %v462
    %v467 = vrcp.pop %v465
    %v468 = vmul.f32 %v457, %v466
    %v469 = vmul.f32 %v459, %v467
    %471 = vrot.lane.b32.xlu0 %v144, 64
    %v472 = vpop.permute.xlu0 %471
    %v474 = vmul.f32 %v228, %v472
    %v475 = vmul.f32 %v231, %v472
    %478 = vrot.lane.b32.xlu0 %v474, 64
    %v479 = vpop.permute.xlu0 %478
    %480 = vrot.lane.b32.xlu0 %v475, 64
    %v481 = vpop.permute.xlu0 %480
    %v485 = vsel %vm328, %v468, 0
    %v488 = vsel %vm328, %v469, 0
    %490 = vmatprep.subr.mxu0 0.0
    %491 = vmatpush1.msra.mxu0 0.0
    %492 = vmatprep.subr.mxu0 0.0
    %493 = vmatpush1.msra.mxu0 0.0
    %494 = vmatprep.subr.mxu0 0.0
    %495 = vmatpush1.msra.mxu0 0.0
    %496 = vmatprep.subr.mxu0 0.0
    %497 = vmatpush1.msra.mxu0 0.0
    %498 = vmatprep.subr.mxu0 0.0
    %499 = vmatpush1.msra.mxu0 0.0
    %500 = vmatprep.subr.mxu0 0.0
    %501 = vmatpush1.msra.mxu0 0.0
    %502 = vmatprep.subr.mxu0 0.0
    %503 = vmatpush1.msra.mxu0 0.0
    %504 = vmatprep.subr.mxu0 0.0
    %505 = vmatpush1.msra.mxu0 0.0
    %506 = vmatprep.subr.mxu0 0.0
    %507 = vmatpush1.msra.mxu0 0.0
    %508 = vmatprep.subr.mxu0 0.0
    %509 = vmatpush1.msra.mxu0 0.0
    %510 = vmatprep.subr.mxu0 0.0
    %511 = vmatpush1.msra.mxu0 0.0
    %512 = vmatprep.subr.mxu0 0.0
    %513 = vmatpush1.msra.mxu0 0.0
    %514 = vmatprep.subr.mxu0 0.0
    %515 = vmatpush1.msra.mxu0 0.0
    %516 = vmatprep.subr.mxu0 0.0
    %517 = vmatpush1.msra.mxu0 0.0
    %518 = vmatprep.subr.mxu0 0.0
    %519 = vmatpush1.msra.mxu0 %v481
    %520 = vmatprep.subr.mxu0 0.0
    %521 = vmatpush1.msra.mxu0 %v479
    %522 = vmatprep.subr.mxu0 0.0
    %523 = vmatpush2.msra.mxu0 0.0
    %524 = vmatprep.subr.mxu0 0.0
    %525 = vmatpush2.msra.mxu0 0.0
    %526 = vmatprep.subr.mxu0 0.0
    %527 = vmatpush2.msra.mxu0 0.0
    %528 = vmatprep.subr.mxu0 0.0
    %529 = vmatpush2.msra.mxu0 0.0
    %530 = vmatprep.subr.mxu0 0.0
    %531 = vmatpush2.msra.mxu0 0.0
    %532 = vmatprep.subr.mxu0 0.0
    %533 = vmatpush2.msra.mxu0 0.0
    %534 = vmatprep.subr.mxu0 0.0
    %535 = vmatpush2.msra.mxu0 0.0
    %536 = vmatprep.subr.mxu0 0.0
    %537 = vmatpush2.msra.mxu0 0.0
    %538 = vmatprep.subr.mxu0 0.0
    %539 = vmatpush2.msra.mxu0 0.0
    %540 = vmatprep.subr.mxu0 0.0
    %541 = vmatpush2.msra.mxu0 0.0
    %542 = vmatprep.subr.mxu0 0.0
    %543 = vmatpush2.msra.mxu0 0.0
    %544 = vmatprep.subr.mxu0 0.0
    %545 = vmatpush2.msra.mxu0 0.0
    %546 = vmatprep.subr.mxu0 0.0
    %547 = vmatpush2.msra.mxu0 0.0
    %548 = vmatprep.subr.mxu0 0.0
    %549 = vmatpush2.msra.mxu0 0.0
    %550 = vmatprep.subr.mxu0 0.0
    %551 = vmatpush2.msra.mxu0 0.0
    %552 = vmatprep.subr.mxu0 0.0
    %553 = vmatpush2.msra.mxu0 0.0
    %554 = vmatprep.mubr.f32.mxu0 0.0
    %555 = vmatmul.mubr.f32.gmra.mxu0 %v485
    %v556 = vpop.f32.mrf.mxu0
    %v557 = vadd.f32 0.0, %v556
    %v558 = vpop.f32.mrf.mxu0
    %559 = vmatprep.mubr.f32.mxu0 0.0
    %560 = vmatmul.mubr.f32.gmra.mxu0 %v488
    %v561 = vpop.f32.mrf.mxu0
    %v562 = vadd.f32 0.0, %v561
    %v563 = vpop.f32.mrf.mxu0
    %564 = vdwg.mxu0
    %567 = vrot.lane.b32.xlu0 %v355, 64
    %v568 = vpop.permute.xlu0 %567
    %569 = vrot.lane.b32.xlu0 %v356, 64
    %v570 = vpop.permute.xlu0 %569
    %v574 = vsel %vm328, %v349, 0
    %v577 = vsel %vm328, %v350, 0
    %579 = vmatprep.subr.mxu0 0.0
    %580 = vmatpush1.msra.mxu0 0.0
    %581 = vmatprep.subr.mxu0 0.0
    %582 = vmatpush1.msra.mxu0 0.0
    %583 = vmatprep.subr.mxu0 0.0
    %584 = vmatpush1.msra.mxu0 0.0
    %585 = vmatprep.subr.mxu0 0.0
    %586 = vmatpush1.msra.mxu0 0.0
    %587 = vmatprep.subr.mxu0 0.0
    %588 = vmatpush1.msra.mxu0 0.0
    %589 = vmatprep.subr.mxu0 0.0
    %590 = vmatpush1.msra.mxu0 0.0
    %591 = vmatprep.subr.mxu0 0.0
    %592 = vmatpush1.msra.mxu0 0.0
    %593 = vmatprep.subr.mxu0 0.0
    %594 = vmatpush1.msra.mxu0 0.0
    %595 = vmatprep.subr.mxu0 0.0
    %596 = vmatpush1.msra.mxu0 0.0
    %597 = vmatprep.subr.mxu0 0.0
    %598 = vmatpush1.msra.mxu0 0.0
    %599 = vmatprep.subr.mxu0 0.0
    %600 = vmatpush1.msra.mxu0 0.0
    %601 = vmatprep.subr.mxu0 0.0
    %602 = vmatpush1.msra.mxu0 0.0
    %603 = vmatprep.subr.mxu0 0.0
    %604 = vmatpush1.msra.mxu0 0.0
    %605 = vmatprep.subr.mxu0 0.0
    %606 = vmatpush1.msra.mxu0 0.0
    %607 = vmatprep.subr.mxu0 0.0
    %608 = vmatpush1.msra.mxu0 %v570
    %609 = vmatprep.subr.mxu0 0.0
    %610 = vmatpush1.msra.mxu0 %v568
    %611 = vmatprep.subr.mxu0 0.0
    %612 = vmatpush2.msra.mxu0 0.0
    %613 = vmatprep.subr.mxu0 0.0
    %614 = vmatpush2.msra.mxu0 0.0
    %615 = vmatprep.subr.mxu0 0.0
    %616 = vmatpush2.msra.mxu0 0.0
    %617 = vmatprep.subr.mxu0 0.0
    %618 = vmatpush2.msra.mxu0 0.0
    %619 = vmatprep.subr.mxu0 0.0
    %620 = vmatpush2.msra.mxu0 0.0
    %621 = vmatprep.subr.mxu0 0.0
    %622 = vmatpush2.msra.mxu0 0.0
    %623 = vmatprep.subr.mxu0 0.0
    %624 = vmatpush2.msra.mxu0 0.0
    %625 = vmatprep.subr.mxu0 0.0
    %626 = vmatpush2.msra.mxu0 0.0
    %627 = vmatprep.subr.mxu0 0.0
    %628 = vmatpush2.msra.mxu0 0.0
    %629 = vmatprep.subr.mxu0 0.0
    %630 = vmatpush2.msra.mxu0 0.0
    %631 = vmatprep.subr.mxu0 0.0
    %632 = vmatpush2.msra.mxu0 0.0
    %633 = vmatprep.subr.mxu0 0.0
    %634 = vmatpush2.msra.mxu0 0.0
    %635 = vmatprep.subr.mxu0 0.0
    %636 = vmatpush2.msra.mxu0 0.0
    %637 = vmatprep.subr.mxu0 0.0
    %638 = vmatpush2.msra.mxu0 0.0
    %639 = vmatprep.subr.mxu0 0.0
    %640 = vmatpush2.msra.mxu0 0.0
    %641 = vmatprep.subr.mxu0 0.0
    %642 = vmatpush2.msra.mxu0 0.0
    %643 = vmatprep.mubr.f32.mxu0 0.0
    %644 = vmatmul.mubr.f32.gmra.mxu0 %v574
    %v645 = vpop.f32.mrf.mxu0
    %v646 = vadd.f32 %v557, %v645
    %v647 = vpop.f32.mrf.mxu0
    %648 = vmatprep.mubr.f32.mxu0 0.0
    %649 = vmatmul.mubr.f32.gmra.mxu0 %v577
    %v650 = vpop.f32.mrf.mxu0
    %v651 = vadd.f32 %v562, %v650
    %v652 = vpop.f32.mrf.mxu0
    %653 = vdwg.mxu0
    %654 = vrot.lane.b32.xlu0 %v234, 112
    %v655 = vpop.permute.xlu0 %654
    %656 = vrot.lane.b32.xlu0 %v235, 112
    %v657 = vpop.permute.xlu0 %656
    %658 = vrot.lane.b32.xlu0 %v228, 80
    %v659 = vpop.permute.xlu0 %658
    %660 = vrot.lane.b32.xlu0 %v231, 80
    %v661 = vpop.permute.xlu0 %660
    %v662 = vsel %vm242, %v655, 0
    %v664 = vsel %vm242, %v657, 0
    %v666 = vsel %vm242, %v659, 0
    %v668 = vsel %vm242, %v661, 0
    %670 = vmatprep.subr.mxu0 0.0
    %671 = vmatpush1.xpose.msra.mxu0 0.0
    %672 = vmatprep.subr.mxu0 0.0
    %673 = vmatpush1.xpose.msra.mxu0 0.0
    %674 = vmatprep.subr.mxu0 0.0
    %675 = vmatpush1.xpose.msra.mxu0 0.0
    %676 = vmatprep.subr.mxu0 0.0
    %677 = vmatpush1.xpose.msra.mxu0 0.0
    %678 = vmatprep.subr.mxu0 0.0
    %679 = vmatpush1.xpose.msra.mxu0 0.0
    %680 = vmatprep.subr.mxu0 0.0
    %681 = vmatpush1.xpose.msra.mxu0 0.0
    %682 = vmatprep.subr.mxu0 0.0
    %683 = vmatpush1.xpose.msra.mxu0 0.0
    %684 = vmatprep.subr.mxu0 0.0
    %685 = vmatpush1.xpose.msra.mxu0 0.0
    %686 = vmatprep.subr.mxu0 0.0
    %687 = vmatpush1.xpose.msra.mxu0 0.0
    %688 = vmatprep.subr.mxu0 0.0
    %689 = vmatpush1.xpose.msra.mxu0 0.0
    %690 = vmatprep.subr.mxu0 0.0
    %691 = vmatpush1.xpose.msra.mxu0 0.0
    %692 = vmatprep.subr.mxu0 0.0
    %693 = vmatpush1.xpose.msra.mxu0 0.0
    %694 = vmatprep.subr.mxu0 0.0
    %695 = vmatpush1.xpose.msra.mxu0 0.0
    %696 = vmatprep.subr.mxu0 0.0
    %697 = vmatpush1.xpose.msra.mxu0 0.0
    %698 = vmatprep.subr.mxu0 0.0
    %699 = vmatpush1.xpose.msra.mxu0 %v668
    %700 = vmatprep.subr.mxu0 0.0
    %701 = vmatpush1.xpose.msra.mxu0 %v666
    %702 = vmatprep.subr.mxu0 0.0
    %703 = vmatpush2.xpose.msra.mxu0 0.0
    %704 = vmatprep.subr.mxu0 0.0
    %705 = vmatpush2.xpose.msra.mxu0 0.0
    %706 = vmatprep.subr.mxu0 0.0
    %707 = vmatpush2.xpose.msra.mxu0 0.0
    %708 = vmatprep.subr.mxu0 0.0
    %709 = vmatpush2.xpose.msra.mxu0 0.0
    %710 = vmatprep.subr.mxu0 0.0
    %711 = vmatpush2.xpose.msra.mxu0 0.0
    %712 = vmatprep.subr.mxu0 0.0
    %713 = vmatpush2.xpose.msra.mxu0 0.0
    %714 = vmatprep.subr.mxu0 0.0
    %715 = vmatpush2.xpose.msra.mxu0 0.0
    %716 = vmatprep.subr.mxu0 0.0
    %717 = vmatpush2.xpose.msra.mxu0 0.0
    %718 = vmatprep.subr.mxu0 0.0
    %719 = vmatpush2.xpose.msra.mxu0 0.0
    %720 = vmatprep.subr.mxu0 0.0
    %721 = vmatpush2.xpose.msra.mxu0 0.0
    %722 = vmatprep.subr.mxu0 0.0
    %723 = vmatpush2.xpose.msra.mxu0 0.0
    %724 = vmatprep.subr.mxu0 0.0
    %725 = vmatpush2.xpose.msra.mxu0 0.0
    %726 = vmatprep.subr.mxu0 0.0
    %727 = vmatpush2.xpose.msra.mxu0 0.0
    %728 = vmatprep.subr.mxu0 0.0
    %729 = vmatpush2.xpose.msra.mxu0 0.0
    %730 = vmatprep.subr.mxu0 0.0
    %731 = vmatpush2.xpose.msra.mxu0 0.0
    %732 = vmatprep.subr.mxu0 0.0
    %733 = vmatpush2.xpose.msra.mxu0 0.0
    %734 = vmatprep.mubr.f32.mxu0 0.0
    %735 = vmatmul.mubr.f32.gmra.mxu0 %v662
    %v736 = vpop.f32.mrf.mxu0
    %v737 = vadd.f32 %v133, %v736
    %v738 = vpop.f32.mrf.mxu0
    %739 = vmatprep.mubr.f32.mxu0 0.0
    %740 = vmatmul.mubr.f32.gmra.mxu0 %v664
    %v741 = vpop.f32.mrf.mxu0
    %v742 = vadd.f32 %v134, %v741
    %v743 = vpop.f32.mrf.mxu0
    %744 = vdwg.mxu0
    %v745 = vsel %vm328, %v737, -inf
    %746 = vmax.xlane.f32.xlu0 %v745
    %v747 = vpop.xlane.xlu0 %746
    %v748 = vsel %vm328, %v742, -inf
    %749 = vmax.xlane.f32.xlu0 %v748
    %v750 = vpop.xlane.xlu0 %749
    %v751 = vsub.f32 %v737, %v747
    %v752 = vsub.f32 %v742, %v750
    %v753 = vmul.f32 %v751, 1.442695
    %v754 = vpow.pop %v753
    %v755 = vmul.f32 %v752, 1.442695
    %v756 = vpow.pop %v755
    %v757 = vsel %vm328, %v754, 0.0
    %758 = vadd.xlane.f32.xlu0 %v757
    %v759 = vpop.xlane.xlu0 %758
    %v760 = vsel %vm328, %v756, 0.0
    %761 = vadd.xlane.f32.xlu0 %v760
    %v762 = vpop.xlane.xlu0 %761
    %v763 = vrcp.pop %v759
    %v764 = vrcp.pop %v762
    %v765 = vmul.f32 %v754, %v763
    %v766 = vmul.f32 %v756, %v764
    %768 = vrot.lane.b32.xlu0 %v149, 64
    %v769 = vpop.permute.xlu0 %768
    %v771 = vmul.f32 %v228, %v769
    %v772 = vmul.f32 %v231, %v769
    %775 = vrot.lane.b32.xlu0 %v771, 64
    %v776 = vpop.permute.xlu0 %775
    %777 = vrot.lane.b32.xlu0 %v772, 64
    %v778 = vpop.permute.xlu0 %777
    %v782 = vsel %vm328, %v765, 0
    %v785 = vsel %vm328, %v766, 0
    %787 = vmatprep.subr.mxu0 0.0
    %788 = vmatpush1.msra.mxu0 0.0
    %789 = vmatprep.subr.mxu0 0.0
    %790 = vmatpush1.msra.mxu0 0.0
    %791 = vmatprep.subr.mxu0 0.0
    %792 = vmatpush1.msra.mxu0 0.0
    %793 = vmatprep.subr.mxu0 0.0
    %794 = vmatpush1.msra.mxu0 0.0
    %795 = vmatprep.subr.mxu0 0.0
    %796 = vmatpush1.msra.mxu0 0.0
    %797 = vmatprep.subr.mxu0 0.0
    %798 = vmatpush1.msra.mxu0 0.0
    %799 = vmatprep.subr.mxu0 0.0
    %800 = vmatpush1.msra.mxu0 0.0
    %801 = vmatprep.subr.mxu0 0.0
    %802 = vmatpush1.msra.mxu0 0.0
    %803 = vmatprep.subr.mxu0 0.0
    %804 = vmatpush1.msra.mxu0 0.0
    %805 = vmatprep.subr.mxu0 0.0
    %806 = vmatpush1.msra.mxu0 0.0
    %807 = vmatprep.subr.mxu0 0.0
    %808 = vmatpush1.msra.mxu0 0.0
    %809 = vmatprep.subr.mxu0 0.0
    %810 = vmatpush1.msra.mxu0 0.0
    %811 = vmatprep.subr.mxu0 0.0
    %812 = vmatpush1.msra.mxu0 0.0
    %813 = vmatprep.subr.mxu0 0.0
    %814 = vmatpush1.msra.mxu0 0.0
    %815 = vmatprep.subr.mxu0 0.0
    %816 = vmatpush1.msra.mxu0 %v778
    %817 = vmatprep.subr.mxu0 0.0
    %818 = vmatpush1.msra.mxu0 %v776
    %819 = vmatprep.subr.mxu0 0.0
    %820 = vmatpush2.msra.mxu0 0.0
    %821 = vmatprep.subr.mxu0 0.0
    %822 = vmatpush2.msra.mxu0 0.0
    %823 = vmatprep.subr.mxu0 0.0
    %824 = vmatpush2.msra.mxu0 0.0
    %825 = vmatprep.subr.mxu0 0.0
    %826 = vmatpush2.msra.mxu0 0.0
    %827 = vmatprep.subr.mxu0 0.0
    %828 = vmatpush2.msra.mxu0 0.0
    %829 = vmatprep.subr.mxu0 0.0
    %830 = vmatpush2.msra.mxu0 0.0
    %831 = vmatprep.subr.mxu0 0.0
    %832 = vmatpush2.msra.mxu0 0.0
    %833 = vmatprep.subr.mxu0 0.0
    %834 = vmatpush2.msra.mxu0 0.0
    %835 = vmatprep.subr.mxu0 0.0
    %836 = vmatpush2.msra.mxu0 0.0
    %837 = vmatprep.subr.mxu0 0.0
    %838 = vmatpush2.msra.mxu0 0.0
    %839 = vmatprep.subr.mxu0 0.0
    %840 = vmatpush2.msra.mxu0 0.0
    %841 = vmatprep.subr.mxu0 0.0
    %842 = vmatpush2.msra.mxu0 0.0
    %843 = vmatprep.subr.mxu0 0.0
    %844 = vmatpush2.msra.mxu0 0.0
    %845 = vmatprep.subr.mxu0 0.0
    %846 = vmatpush2.msra.mxu0 0.0
    %847 = vmatprep.subr.mxu0 0.0
    %848 = vmatpush2.msra.mxu0 0.0
    %849 = vmatprep.subr.mxu0 0.0
    %850 = vmatpush2.msra.mxu0 0.0
    %851 = vmatprep.mubr.f32.mxu0 0.0
    %852 = vmatmul.mubr.f32.gmra.mxu0 %v782
    %v853 = vpop.f32.mrf.mxu0
    %v854 = vadd.f32 0.0, %v853
    %v855 = vpop.f32.mrf.mxu0
    %856 = vmatprep.mubr.f32.mxu0 0.0
    %857 = vmatmul.mubr.f32.gmra.mxu0 %v785
    %v858 = vpop.f32.mrf.mxu0
    %v859 = vadd.f32 0.0, %v858
    %v860 = vpop.f32.mrf.mxu0
    %861 = vdwg.mxu0
    %v862 = vadd.f32 %v646, %v854
    %v863 = vadd.f32 %v651, %v859
    %864 = vrot.lane.b32.xlu0 %v234, 104
    %v865 = vpop.permute.xlu0 %864
    %866 = vrot.lane.b32.xlu0 %v235, 104
    %v867 = vpop.permute.xlu0 %866
    %868 = vrot.lane.b32.xlu0 %v228, 72
    %v869 = vpop.permute.xlu0 %868
    %870 = vrot.lane.b32.xlu0 %v231, 72
    %v871 = vpop.permute.xlu0 %870
    %v872 = vsel %vm242, %v865, 0
    %v874 = vsel %vm242, %v867, 0
    %v876 = vsel %vm242, %v869, 0
    %v878 = vsel %vm242, %v871, 0
    %880 = vmatprep.subr.mxu0 0.0
    %881 = vmatpush1.xpose.msra.mxu0 0.0
    %882 = vmatprep.subr.mxu0 0.0
    %883 = vmatpush1.xpose.msra.mxu0 0.0
    %884 = vmatprep.subr.mxu0 0.0
    %885 = vmatpush1.xpose.msra.mxu0 0.0
    %886 = vmatprep.subr.mxu0 0.0
    %887 = vmatpush1.xpose.msra.mxu0 0.0
    %888 = vmatprep.subr.mxu0 0.0
    %889 = vmatpush1.xpose.msra.mxu0 0.0
    %890 = vmatprep.subr.mxu0 0.0
    %891 = vmatpush1.xpose.msra.mxu0 0.0
    %892 = vmatprep.subr.mxu0 0.0
    %893 = vmatpush1.xpose.msra.mxu0 0.0
    %894 = vmatprep.subr.mxu0 0.0
    %895 = vmatpush1.xpose.msra.mxu0 0.0
    %896 = vmatprep.subr.mxu0 0.0
    %897 = vmatpush1.xpose.msra.mxu0 0.0
    %898 = vmatprep.subr.mxu0 0.0
    %899 = vmatpush1.xpose.msra.mxu0 0.0
    %900 = vmatprep.subr.mxu0 0.0
    %901 = vmatpush1.xpose.msra.mxu0 0.0
    %902 = vmatprep.subr.mxu0 0.0
    %903 = vmatpush1.xpose.msra.mxu0 0.0
    %904 = vmatprep.subr.mxu0 0.0
    %905 = vmatpush1.xpose.msra.mxu0 0.0
    %906 = vmatprep.subr.mxu0 0.0
    %907 = vmatpush1.xpose.msra.mxu0 0.0
    %908 = vmatprep.subr.mxu0 0.0
    %909 = vmatpush1.xpose.msra.mxu0 %v878
    %910 = vmatprep.subr.mxu0 0.0
    %911 = vmatpush1.xpose.msra.mxu0 %v876
    %912 = vmatprep.subr.mxu0 0.0
    %913 = vmatpush2.xpose.msra.mxu0 0.0
    %914 = vmatprep.subr.mxu0 0.0
    %915 = vmatpush2.xpose.msra.mxu0 0.0
    %916 = vmatprep.subr.mxu0 0.0
    %917 = vmatpush2.xpose.msra.mxu0 0.0
    %918 = vmatprep.subr.mxu0 0.0
    %919 = vmatpush2.xpose.msra.mxu0 0.0
    %920 = vmatprep.subr.mxu0 0.0
    %921 = vmatpush2.xpose.msra.mxu0 0.0
    %922 = vmatprep.subr.mxu0 0.0
    %923 = vmatpush2.xpose.msra.mxu0 0.0
    %924 = vmatprep.subr.mxu0 0.0
    %925 = vmatpush2.xpose.msra.mxu0 0.0
    %926 = vmatprep.subr.mxu0 0.0
    %927 = vmatpush2.xpose.msra.mxu0 0.0
    %928 = vmatprep.subr.mxu0 0.0
    %929 = vmatpush2.xpose.msra.mxu0 0.0
    %930 = vmatprep.subr.mxu0 0.0
    %931 = vmatpush2.xpose.msra.mxu0 0.0
    %932 = vmatprep.subr.mxu0 0.0
    %933 = vmatpush2.xpose.msra.mxu0 0.0
    %934 = vmatprep.subr.mxu0 0.0
    %935 = vmatpush2.xpose.msra.mxu0 0.0
    %936 = vmatprep.subr.mxu0 0.0
    %937 = vmatpush2.xpose.msra.mxu0 0.0
    %938 = vmatprep.subr.mxu0 0.0
    %939 = vmatpush2.xpose.msra.mxu0 0.0
    %940 = vmatprep.subr.mxu0 0.0
    %941 = vmatpush2.xpose.msra.mxu0 0.0
    %942 = vmatprep.subr.mxu0 0.0
    %943 = vmatpush2.xpose.msra.mxu0 0.0
    %944 = vmatprep.mubr.f32.mxu0 0.0
    %945 = vmatmul.mubr.f32.gmra.mxu0 %v872
    %v946 = vpop.f32.mrf.mxu0
    %v947 = vadd.f32 %v133, %v946
    %v948 = vpop.f32.mrf.mxu0
    %949 = vmatprep.mubr.f32.mxu0 0.0
    %950 = vmatmul.mubr.f32.gmra.mxu0 %v874
    %v951 = vpop.f32.mrf.mxu0
    %v952 = vadd.f32 %v134, %v951
    %v953 = vpop.f32.mrf.mxu0
    %954 = vdwg.mxu0
    %v955 = vsel %vm328, %v947, -inf
    %956 = vmax.xlane.f32.xlu0 %v955
    %v957 = vpop.xlane.xlu0 %956
    %v958 = vsel %vm328, %v952, -inf
    %959 = vmax.xlane.f32.xlu0 %v958
    %v960 = vpop.xlane.xlu0 %959
    %v961 = vsub.f32 %v947, %v957
    %v962 = vsub.f32 %v952, %v960
    %v963 = vmul.f32 %v961, 1.442695
    %v964 = vpow.pop %v963
    %v965 = vmul.f32 %v962, 1.442695
    %v966 = vpow.pop %v965
    %v967 = vsel %vm328, %v964, 0.0
    %968 = vadd.xlane.f32.xlu0 %v967
    %v969 = vpop.xlane.xlu0 %968
    %v970 = vsel %vm328, %v966, 0.0
    %971 = vadd.xlane.f32.xlu0 %v970
    %v972 = vpop.xlane.xlu0 %971
    %v973 = vrcp.pop %v969
    %v974 = vrcp.pop %v972
    %v975 = vmul.f32 %v964, %v973
    %v976 = vmul.f32 %v966, %v974
    %978 = vrot.lane.b32.xlu0 %v154, 64
    %v979 = vpop.permute.xlu0 %978
    %v981 = vmul.f32 %v228, %v979
    %v982 = vmul.f32 %v231, %v979
    %985 = vrot.lane.b32.xlu0 %v981, 64
    %v986 = vpop.permute.xlu0 %985
    %987 = vrot.lane.b32.xlu0 %v982, 64
    %v988 = vpop.permute.xlu0 %987
    %v992 = vsel %vm328, %v975, 0
    %v995 = vsel %vm328, %v976, 0
    %997 = vmatprep.subr.mxu0 0.0
    %998 = vmatpush1.msra.mxu0 0.0
    %999 = vmatprep.subr.mxu0 0.0
    %1000 = vmatpush1.msra.mxu0 0.0
    %1001 = vmatprep.subr.mxu0 0.0
    %1002 = vmatpush1.msra.mxu0 0.0
    %1003 = vmatprep.subr.mxu0 0.0
    %1004 = vmatpush1.msra.mxu0 0.0
    %1005 = vmatprep.subr.mxu0 0.0
    %1006 = vmatpush1.msra.mxu0 0.0
    %1007 = vmatprep.subr.mxu0 0.0
    %1008 = vmatpush1.msra.mxu0 0.0
    %1009 = vmatprep.subr.mxu0 0.0
    %1010 = vmatpush1.msra.mxu0 0.0
    %1011 = vmatprep.subr.mxu0 0.0
    %1012 = vmatpush1.msra.mxu0 0.0
    %1013 = vmatprep.subr.mxu0 0.0
    %1014 = vmatpush1.msra.mxu0 0.0
    %1015 = vmatprep.subr.mxu0 0.0
    %1016 = vmatpush1.msra.mxu0 0.0
    %1017 = vmatprep.subr.mxu0 0.0
    %1018 = vmatpush1.msra.mxu0 0.0
    %1019 = vmatprep.subr.mxu0 0.0
    %1020 = vmatpush1.msra.mxu0 0.0
    %1021 = vmatprep.subr.mxu0 0.0
    %1022 = vmatpush1.msra.mxu0 0.0
    %1023 = vmatprep.subr.mxu0 0.0
    %1024 = vmatpush1.msra.mxu0 0.0
    %1025 = vmatprep.subr.mxu0 0.0
    %1026 = vmatpush1.msra.mxu0 %v988
    %1027 = vmatprep.subr.mxu0 0.0
    %1028 = vmatpush1.msra.mxu0 %v986
    %1029 = vmatprep.subr.mxu0 0.0
    %1030 = vmatpush2.msra.mxu0 0.0
    %1031 = vmatprep.subr.mxu0 0.0
    %1032 = vmatpush2.msra.mxu0 0.0
    %1033 = vmatprep.subr.mxu0 0.0
    %1034 = vmatpush2.msra.mxu0 0.0
    %1035 = vmatprep.subr.mxu0 0.0
    %1036 = vmatpush2.msra.mxu0 0.0
    %1037 = vmatprep.subr.mxu0 0.0
    %1038 = vmatpush2.msra.mxu0 0.0
    %1039 = vmatprep.subr.mxu0 0.0
    %1040 = vmatpush2.msra.mxu0 0.0
    %1041 = vmatprep.subr.mxu0 0.0
    %1042 = vmatpush2.msra.mxu0 0.0
    %1043 = vmatprep.subr.mxu0 0.0
    %1044 = vmatpush2.msra.mxu0 0.0
    %1045 = vmatprep.subr.mxu0 0.0
    %1046 = vmatpush2.msra.mxu0 0.0
    %1047 = vmatprep.subr.mxu0 0.0
    %1048 = vmatpush2.msra.mxu0 0.0
    %1049 = vmatprep.subr.mxu0 0.0
    %1050 = vmatpush2.msra.mxu0 0.0
    %1051 = vmatprep.subr.mxu0 0.0
    %1052 = vmatpush2.msra.mxu0 0.0
    %1053 = vmatprep.subr.mxu0 0.0
    %1054 = vmatpush2.msra.mxu0 0.0
    %1055 = vmatprep.subr.mxu0 0.0
    %1056 = vmatpush2.msra.mxu0 0.0
    %1057 = vmatprep.subr.mxu0 0.0
    %1058 = vmatpush2.msra.mxu0 0.0
    %1059 = vmatprep.subr.mxu0 0.0
    %1060 = vmatpush2.msra.mxu0 0.0
    %1061 = vmatprep.mubr.f32.mxu0 0.0
    %1062 = vmatmul.mubr.f32.gmra.mxu0 %v992
    %v1063 = vpop.f32.mrf.mxu0
    %v1064 = vadd.f32 0.0, %v1063
    %v1065 = vpop.f32.mrf.mxu0
    %1066 = vmatprep.mubr.f32.mxu0 0.0
    %1067 = vmatmul.mubr.f32.gmra.mxu0 %v995
    %v1068 = vpop.f32.mrf.mxu0
    %v1069 = vadd.f32 0.0, %v1068
    %v1070 = vpop.f32.mrf.mxu0
    %1071 = vdwg.mxu0
    %v1072 = vadd.f32 %v862, %v1064
    %v1073 = vadd.f32 %v863, %v1069
    %v1074 = vpack.c.bf16 %v1073, %v1072
    %v1075 = vlaneseq
    %v1076 = vshrl.u32 %v1075, 7
    %v1077 = vsub.s32 1, %v1076
    %v1078 = vrot.slane %v171, %v1077
    %1079 = vrot.lane.b32.xlu0 %v185, 32
    %v1080 = vpop.permute.xlu0 %1079
    %1081 = vrot.lane.b32.xlu0 %v186, 32
    %v1082 = vpop.permute.xlu0 %1081
    %v1086 = vsel %vm189, %v1074, 0
    %1088 = vmatprep.subr.bf16.mxu0 0
    %1089 = vmatpush1.bf16.msra.mxu0 0
    %1090 = vmatprep.subr.bf16.mxu0 0
    %1091 = vmatpush1.bf16.msra.mxu0 0
    %1092 = vmatprep.subr.bf16.mxu0 0
    %1093 = vmatpush1.bf16.msra.mxu0 0
    %1094 = vmatprep.subr.bf16.mxu0 0
    %1095 = vmatpush1.bf16.msra.mxu0 0
    %1096 = vmatprep.subr.bf16.mxu0 0
    %1097 = vmatpush1.bf16.msra.mxu0 0
    %1098 = vmatprep.subr.bf16.mxu0 0
    %1099 = vmatpush1.bf16.msra.mxu0 0
    %1100 = vmatprep.subr.bf16.mxu0 0
    %1101 = vmatpush1.bf16.msra.mxu0 %v1082
    %1102 = vmatprep.subr.bf16.mxu0 0
    %1103 = vmatpush1.bf16.msra.mxu0 %v1080
    %1104 = vmatprep.subr.bf16.mxu0 0
    %1105 = vmatpush2.bf16.msra.mxu0 0
    %1106 = vmatprep.subr.bf16.mxu0 0
    %1107 = vmatpush2.bf16.msra.mxu0 0
    %1108 = vmatprep.subr.bf16.mxu0 0
    %1109 = vmatpush2.bf16.msra.mxu0 0
    %1110 = vmatprep.subr.bf16.mxu0 0
    %1111 = vmatpush2.bf16.msra.mxu0 0
    %1112 = vmatprep.subr.bf16.mxu0 0
    %1113 = vmatpush2.bf16.msra.mxu0 0
    %1114 = vmatprep.subr.bf16.mxu0 0
    %1115 = vmatpush2.bf16.msra.mxu0 0
    %1116 = vmatprep.subr.bf16.mxu0 0
    %1117 = vmatpush2.bf16.msra.mxu0 0
    %1118 = vmatprep.subr.bf16.mxu0 0
    %1119 = vmatpush2.bf16.msra.mxu0 0
    %1120 = vmatprep.mubr.bf16.mxu0 0
    %1121 = vmatmul.mubr.bf16.gmra.mxu0 %v1086
    %v1122 = vpop.f32.mrf.mxu0
    %v1123 = vadd.f32 %v1078, %v1122
    %v1124 = vpop.f32.mrf.mxu0
    %v1125 = vpop.f32.mrf.mxu0
    %v1126 = vadd.f32 %v1078, %v1125
    %v1127 = vpop.f32.mrf.mxu0
    %1128 = vdwg.mxu0
    %v1129 = vadd.f32 %v127, %v1123
    %v1130 = vadd.f32 %v130, %v1126
    %v1131 = vsel %vm189, %v1129, 0.0
    %1132 = vadd.xlane.f32.xlu0 %v1131
    %v1133 = vpop.xlane.xlu0 %1132
    %v1134 = vsel %vm189, %v1130, 0.0
    %1135 = vadd.xlane.f32.xlu0 %v1134
    %v1136 = vpop.xlane.xlu0 %1135
    %v1137 = vrcp.pop 32.0
    %v1138 = vmul.f32 %v1133, %v1137
    %v1139 = vmul.f32 %v1136, %v1137
    %v1140 = vsub.f32 %v1129, %v1138
    %v1141 = vsub.f32 %v1130, %v1139
    %v1142 = vmul.f32 %v1140, %v1140
    %v1143 = vmul.f32 %v1141, %v1141
    %v1144 = vsel %vm189, %v1142, 0.0
    %1145 = vadd.xlane.f32.xlu0 %v1144
    %v1146 = vpop.xlane.xlu0 %1145
    %v1147 = vsel %vm189, %v1143, 0.0
    %1148 = vadd.xlane.f32.xlu0 %v1147
    %v1149 = vpop.xlane.xlu0 %1148
    %v1150 = vmul.f32 %v1146, %v1137
    %v1151 = vmul.f32 %v1149, %v1137
    %v1152 = vadd.f32 %v1150, 1e-05
    %v1153 = vadd.f32 %v1151, 1e-05
    %v1154 = vrsqrt.pop %v1152
    %v1155 = vrsqrt.pop %v1153
    %v1156 = vmul.f32 %v1140, %v1154
    %v1157 = vmul.f32 %v1141, %v1155
    %v1158 = vlaneseq
    %v1159 = vshrl.u32 %v1158, 7
    %v1160 = vsub.s32 2, %v1159
    %v1161 = vrot.slane %v171, %v1160
    %v1162 = vmul.f32 %v1156, %v1161
    %v1163 = vmul.f32 %v1157, %v1161
    %v1164 = vlaneseq
    %v1165 = vshrl.u32 %v1164, 7
    %v1166 = vsub.s32 3, %v1165
    %v1167 = vrot.slane %v171, %v1166
    %v1168 = vadd.f32 %v1162, %v1167
    %v1169 = vadd.f32 %v1163, %v1167
    %v1170 = vpack.c.bf16 %v1169, %v1168
    %v1171 = vlaneseq
    %v1172 = vshrl.u32 %v1171, 7
    %v1173 = vsub.s32 4, %v1172
    %v1174 = vrot.slane %v171, %v1173
    %v1179 = vunpack.c.l.b16 %v159
    %v1180 = vunpack.c.l.b16 %v160
    %v1181 = vunpack.c.l.b16 %v161
    %v1182 = vunpack.c.l.b16 %v162
    %v1183 = vpack.c.b16 %v1180, %v1179
    %v1184 = vpack.c.b16 %v1182, %v1181
    %v1188 = vsel %vm189, %v1170, 0
    %1190 = vmatprep.subr.bf16.mxu0 0
    %1191 = vmatpush1.bf16.msra.mxu0 0
    %1192 = vmatprep.subr.bf16.mxu0 0
    %1193 = vmatpush1.bf16.msra.mxu0 0
    %1194 = vmatprep.subr.bf16.mxu0 0
    %1195 = vmatpush1.bf16.msra.mxu0 0
    %1196 = vmatprep.subr.bf16.mxu0 0
    %1197 = vmatpush1.bf16.msra.mxu0 0
    %1198 = vmatprep.subr.bf16.mxu0 0
    %1199 = vmatpush1.bf16.msra.mxu0 0
    %1200 = vmatprep.subr.bf16.mxu0 0
    %1201 = vmatpush1.bf16.msra.mxu0 0
    %1202 = vmatprep.subr.bf16.mxu0 0
    %1203 = vmatpush1.bf16.msra.mxu0 %v1184
    %1204 = vmatprep.subr.bf16.mxu0 0
    %1205 = vmatpush1.bf16.msra.mxu0 %v1183
    %1206 = vmatprep.subr.bf16.mxu0 0
    %1207 = vmatpush2.bf16.msra.mxu0 0
    %1208 = vmatprep.subr.bf16.mxu0 0
    %1209 = vmatpush2.bf16.msra.mxu0 0
    %1210 = vmatprep.subr.bf16.mxu0 0
    %1211 = vmatpush2.bf16.msra.mxu0 0
    %1212 = vmatprep.subr.bf16.mxu0 0
    %1213 = vmatpush2.bf16.msra.mxu0 0
    %1214 = vmatprep.subr.bf16.mxu0 0
    %1215 = vmatpush2.bf16.msra.mxu0 0
    %1216 = vmatprep.subr.bf16.mxu0 0
    %1217 = vmatpush2.bf16.msra.mxu0 0
    %1218 = vmatprep.subr.bf16.mxu0 0
    %1219 = vmatpush2.bf16.msra.mxu0 0
    %1220 = vmatprep.subr.bf16.mxu0 0
    %1221 = vmatpush2.bf16.msra.mxu0 0
    %1222 = vmatprep.mubr.bf16.mxu0 0
    %1223 = vmatmul.mubr.bf16.gmra.mxu0 %v1188
    %v1224 = vpop.f32.mrf.mxu0
    %v1225 = vadd.f32 %v1174, %v1224
    %v1226 = vpop.f32.mrf.mxu0
    %v1227 = vpop.f32.mrf.mxu0
    %v1228 = vadd.f32 %v1174, %v1227
    %v1229 = vpop.f32.mrf.mxu0
    %1230 = vdwg.mxu0
    %v1231 = vmax.f32 %v1225, 0.0
    %v1232 = vmax.f32 %v1228, 0.0
    %v1233 = vpack.c.bf16 %v1232, %v1231
    %v1234 = vlaneseq
    %v1235 = vshrl.u32 %v1234, 7
    %v1236 = vsub.s32 5, %v1235
    %v1237 = vrot.slane %v171, %v1236
    %v1246 = vunpack.c.l.b16 %v163
    %v1247 = vunpack.c.l.b16 %v164
    %v1248 = vunpack.c.l.b16 %v165
    %v1249 = vunpack.c.l.b16 %v166
    %v1250 = vunpack.c.l.b16 %v167
    %v1251 = vunpack.c.l.b16 %v168
    %v1252 = vunpack.c.l.b16 %v169
    %v1253 = vunpack.c.l.b16 %v170
    %v1254 = vpack.c.b16 %v1247, %v1246
    %v1255 = vpack.c.b16 %v1249, %v1248
    %v1256 = vpack.c.b16 %v1251, %v1250
    %v1257 = vpack.c.b16 %v1253, %v1252
    %v1263 = vsel %vm88, %v1233, 0
    %1265 = vmatprep.subr.bf16.mxu0 0
    %1266 = vmatpush1.bf16.msra.mxu0 0
    %1267 = vmatprep.subr.bf16.mxu0 0
    %1268 = vmatpush1.bf16.msra.mxu0 0
    %1269 = vmatprep.subr.bf16.mxu0 0
    %1270 = vmatpush1.bf16.msra.mxu0 0
    %1271 = vmatprep.subr.bf16.mxu0 0
    %1272 = vmatpush1.bf16.msra.mxu0 0
    %1273 = vmatprep.subr.bf16.mxu0 0
    %1274 = vmatpush1.bf16.msra.mxu0 %v1257
    %1275 = vmatprep.subr.bf16.mxu0 0
    %1276 = vmatpush1.bf16.msra.mxu0 %v1256
    %1277 = vmatprep.subr.bf16.mxu0 0
    %1278 = vmatpush1.bf16.msra.mxu0 %v1255
    %1279 = vmatprep.subr.bf16.mxu0 0
    %1280 = vmatpush1.bf16.msra.mxu0 %v1254
    %1281 = vmatprep.subr.bf16.mxu0 0
    %1282 = vmatpush2.bf16.msra.mxu0 0
    %1283 = vmatprep.subr.bf16.mxu0 0
    %1284 = vmatpush2.bf16.msra.mxu0 0
    %1285 = vmatprep.subr.bf16.mxu0 0
    %1286 = vmatpush2.bf16.msra.mxu0 0
    %1287 = vmatprep.subr.bf16.mxu0 0
    %1288 = vmatpush2.bf16.msra.mxu0 0
    %1289 = vmatprep.subr.bf16.mxu0 0
    %1290 = vmatpush2.bf16.msra.mxu0 0
    %1291 = vmatprep.subr.bf16.mxu0 0
    %1292 = vmatpush2.bf16.msra.mxu0 0
    %1293 = vmatprep.subr.bf16.mxu0 0
    %1294 = vmatpush2.bf16.msra.mxu0 0
    %1295 = vmatprep.subr.bf16.mxu0 0
    %1296 = vmatpush2.bf16.msra.mxu0 0
    %1297 = vmatprep.mubr.bf16.mxu0 0
    %1298 = vmatmul.mubr.bf16.gmra.mxu0 %v1263
    %v1299 = vpop.f32.mrf.mxu0
    %v1300 = vadd.f32 %v1237, %v1299
    %v1301 = vpop.f32.mrf.mxu0
    %v1302 = vpop.f32.mrf.mxu0
    %v1303 = vadd.f32 %v1237, %v1302
    %v1304 = vpop.f32.mrf.mxu0
    %1305 = vdwg.mxu0
    %v1306 = vadd.f32 %v1168, %v1300
    %v1307 = vadd.f32 %v1169, %v1303
    %v1308 = vsel %vm189, %v1306, 0.0
    %1309 = vadd.xlane.f32.xlu0 %v1308
    %v1310 = vpop.xlane.xlu0 %1309
    %v1311 = vsel %vm189, %v1307, 0.0
    %1312 = vadd.xlane.f32.xlu0 %v1311
    %v1313 = vpop.xlane.xlu0 %1312
    %v1314 = vmul.f32 %v1310, %v1137
    %v1315 = vmul.f32 %v1313, %v1137
    %v1316 = vsub.f32 %v1306, %v1314
    %v1317 = vsub.f32 %v1307, %v1315
    %v1318 = vmul.f32 %v1316, %v1316
    %v1319 = vmul.f32 %v1317, %v1317
    %v1320 = vsel %vm189, %v1318, 0.0
    %1321 = vadd.xlane.f32.xlu0 %v1320
    %v1322 = vpop.xlane.xlu0 %1321
    %v1323 = vsel %vm189, %v1319, 0.0
    %1324 = vadd.xlane.f32.xlu0 %v1323
    %v1325 = vpop.xlane.xlu0 %1324
    %v1326 = vmul.f32 %v1322, %v1137
    %v1327 = vmul.f32 %v1325, %v1137
    %v1328 = vadd.f32 %v1326, 1e-05
    %v1329 = vadd.f32 %v1327, 1e-05
    %v1330 = vrsqrt.pop %v1328
    %v1331 = vrsqrt.pop %v1329
    %v1332 = vmul.f32 %v1316, %v1330
    %v1333 = vmul.f32 %v1317, %v1331
    %v1334 = vlaneseq
    %v1335 = vshrl.u32 %v1334, 7
    %v1336 = vsub.s32 6, %v1335
    %v1337 = vrot.slane %v171, %v1336
    %v1338 = vmul.f32 %v1332, %v1337
    %v1339 = vmul.f32 %v1333, %v1337
    %v1340 = vlaneseq
    %v1341 = vshrl.u32 %v1340, 7
    %v1342 = vsub.s32 7, %v1341
    %v1343 = vrot.slane %v171, %v1342
    %v1344 = vadd.f32 %v1338, %v1343
    %v1345 = vadd.f32 %v1339, %v1343
    %s1346 = scalar_lea.vmem %s3, 32
    %v1347 = vld [vmem:[%s1346] sm:$0xf]
    %v1348 = vld [vmem:[%s1346 + $0x8] sm:$0xf]
    %v1349 = vld [vmem:[%s1346 + $0x10] sm:$0xf]
    %v1350 = vld [vmem:[%s1346 + $0x18] sm:$0xf]
    %v1351 = vld [vmem:[%s1346 + $0x4] sm:$0xf]
    %v1352 = vld [vmem:[%s1346 + $0xc] sm:$0xf]
    %v1353 = vld [vmem:[%s1346 + $0x14] sm:$0xf]
    %v1354 = vld [vmem:[%s1346 + $0x1c] sm:$0xf]
    %s1355 = scalar_lea.vmem %s4, 32
    %v1356 = vld [vmem:[%s1355] sm:$0xf]
    %v1357 = vld [vmem:[%s1355 + $0x4] sm:$0xf]
    %v1358 = vld [vmem:[%s1355 + $0x8] sm:$0xf]
    %v1359 = vld [vmem:[%s1355 + $0xc] sm:$0xf]
    %v1360 = vld [vmem:[%s1355 + $0x10] sm:$0xf]
    %v1361 = vld [vmem:[%s1355 + $0x14] sm:$0xf]
    %v1362 = vld [vmem:[%s1355 + $0x18] sm:$0xf]
    %v1363 = vld [vmem:[%s1355 + $0x1c] sm:$0xf]
    %s1364 = scalar_lea.vmem [#allocation2], 8
    %v1365 = vld [vmem:[%s1364] sm:$0xff]
    %v1366 = vpack.c.bf16 %v1345, %v1344
    %v1367 = vlaneseq
    %v1368 = vshrl.u32 %v1367, 7
    %v1369 = vsub.s32 0, %v1368
    %v1370 = vrot.slane %v1365, %v1369
    %v1375 = vunpack.c.l.b16 %v1347
    %v1376 = vunpack.c.l.b16 %v1348
    %v1377 = vunpack.c.l.b16 %v1349
    %v1378 = vunpack.c.l.b16 %v1350
    %v1379 = vpack.c.b16 %v1376, %v1375
    %v1380 = vpack.c.b16 %v1378, %v1377
    %v1384 = vsel %vm189, %v1366, 0
    %1386 = vmatprep.subr.bf16.mxu0 0
    %1387 = vmatpush1.bf16.msra.mxu0 0
    %1388 = vmatprep.subr.bf16.mxu0 0
    %1389 = vmatpush1.bf16.msra.mxu0 0
    %1390 = vmatprep.subr.bf16.mxu0 0
    %1391 = vmatpush1.bf16.msra.mxu0 0
    %1392 = vmatprep.subr.bf16.mxu0 0
    %1393 = vmatpush1.bf16.msra.mxu0 0
    %1394 = vmatprep.subr.bf16.mxu0 0
    %1395 = vmatpush1.bf16.msra.mxu0 0
    %1396 = vmatprep.subr.bf16.mxu0 0
    %1397 = vmatpush1.bf16.msra.mxu0 0
    %1398 = vmatprep.subr.bf16.mxu0 0
    %1399 = vmatpush1.bf16.msra.mxu0 %v1380
    %1400 = vmatprep.subr.bf16.mxu0 0
    %1401 = vmatpush1.bf16.msra.mxu0 %v1379
    %1402 = vmatprep.subr.bf16.mxu0 0
    %1403 = vmatpush2.bf16.msra.mxu0 0
    %1404 = vmatprep.subr.bf16.mxu0 0
    %1405 = vmatpush2.bf16.msra.mxu0 0
    %1406 = vmatprep.subr.bf16.mxu0 0
    %1407 = vmatpush2.bf16.msra.mxu0 0
    %1408 = vmatprep.subr.bf16.mxu0 0
    %1409 = vmatpush2.bf16.msra.mxu0 0
    %1410 = vmatprep.subr.bf16.mxu0 0
    %1411 = vmatpush2.bf16.msra.mxu0 0
    %1412 = vmatprep.subr.bf16.mxu0 0
    %1413 = vmatpush2.bf16.msra.mxu0 0
    %1414 = vmatprep.subr.bf16.mxu0 0
    %1415 = vmatpush2.bf16.msra.mxu0 0
    %1416 = vmatprep.subr.bf16.mxu0 0
    %1417 = vmatpush2.bf16.msra.mxu0 0
    %1418 = vmatprep.mubr.bf16.mxu0 0
    %1419 = vmatmul.mubr.bf16.gmra.mxu0 %v1384
    %v1420 = vpop.f32.mrf.mxu0
    %v1421 = vadd.f32 %v1370, %v1420
    %v1422 = vpop.f32.mrf.mxu0
    %v1423 = vpop.f32.mrf.mxu0
    %v1424 = vadd.f32 %v1370, %v1423
    %v1425 = vpop.f32.mrf.mxu0
    %1426 = vdwg.mxu0
    %v1427 = vmul.f32 %v1421, 0.35355338
    %v1428 = vmul.f32 %v1424, 0.35355338
    %1431 = vrot.lane.b32.xlu0 %v1421, 96
    %v1432 = vpop.permute.xlu0 %1431
    %1433 = vrot.lane.b32.xlu0 %v1424, 96
    %v1434 = vpop.permute.xlu0 %1433
    %v1436 = vsel %vm242, %v1427, 0
    %v1439 = vsel %vm242, %v1428, 0
    %v1441 = vsel %vm242, %v1432, 0
    %v1443 = vsel %vm242, %v1434, 0
    %1445 = vmatprep.subr.mxu0 0.0
    %1446 = vmatpush1.xpose.msra.mxu0 0.0
    %1447 = vmatprep.subr.mxu0 0.0
    %1448 = vmatpush1.xpose.msra.mxu0 0.0
    %1449 = vmatprep.subr.mxu0 0.0
    %1450 = vmatpush1.xpose.msra.mxu0 0.0
    %1451 = vmatprep.subr.mxu0 0.0
    %1452 = vmatpush1.xpose.msra.mxu0 0.0
    %1453 = vmatprep.subr.mxu0 0.0
    %1454 = vmatpush1.xpose.msra.mxu0 0.0
    %1455 = vmatprep.subr.mxu0 0.0
    %1456 = vmatpush1.xpose.msra.mxu0 0.0
    %1457 = vmatprep.subr.mxu0 0.0
    %1458 = vmatpush1.xpose.msra.mxu0 0.0
    %1459 = vmatprep.subr.mxu0 0.0
    %1460 = vmatpush1.xpose.msra.mxu0 0.0
    %1461 = vmatprep.subr.mxu0 0.0
    %1462 = vmatpush1.xpose.msra.mxu0 0.0
    %1463 = vmatprep.subr.mxu0 0.0
    %1464 = vmatpush1.xpose.msra.mxu0 0.0
    %1465 = vmatprep.subr.mxu0 0.0
    %1466 = vmatpush1.xpose.msra.mxu0 0.0
    %1467 = vmatprep.subr.mxu0 0.0
    %1468 = vmatpush1.xpose.msra.mxu0 0.0
    %1469 = vmatprep.subr.mxu0 0.0
    %1470 = vmatpush1.xpose.msra.mxu0 0.0
    %1471 = vmatprep.subr.mxu0 0.0
    %1472 = vmatpush1.xpose.msra.mxu0 0.0
    %1473 = vmatprep.subr.mxu0 0.0
    %1474 = vmatpush1.xpose.msra.mxu0 %v1443
    %1475 = vmatprep.subr.mxu0 0.0
    %1476 = vmatpush1.xpose.msra.mxu0 %v1441
    %1477 = vmatprep.subr.mxu0 0.0
    %1478 = vmatpush2.xpose.msra.mxu0 0.0
    %1479 = vmatprep.subr.mxu0 0.0
    %1480 = vmatpush2.xpose.msra.mxu0 0.0
    %1481 = vmatprep.subr.mxu0 0.0
    %1482 = vmatpush2.xpose.msra.mxu0 0.0
    %1483 = vmatprep.subr.mxu0 0.0
    %1484 = vmatpush2.xpose.msra.mxu0 0.0
    %1485 = vmatprep.subr.mxu0 0.0
    %1486 = vmatpush2.xpose.msra.mxu0 0.0
    %1487 = vmatprep.subr.mxu0 0.0
    %1488 = vmatpush2.xpose.msra.mxu0 0.0
    %1489 = vmatprep.subr.mxu0 0.0
    %1490 = vmatpush2.xpose.msra.mxu0 0.0
    %1491 = vmatprep.subr.mxu0 0.0
    %1492 = vmatpush2.xpose.msra.mxu0 0.0
    %1493 = vmatprep.subr.mxu0 0.0
    %1494 = vmatpush2.xpose.msra.mxu0 0.0
    %1495 = vmatprep.subr.mxu0 0.0
    %1496 = vmatpush2.xpose.msra.mxu0 0.0
    %1497 = vmatprep.subr.mxu0 0.0
    %1498 = vmatpush2.xpose.msra.mxu0 0.0
    %1499 = vmatprep.subr.mxu0 0.0
    %1500 = vmatpush2.xpose.msra.mxu0 0.0
    %1501 = vmatprep.subr.mxu0 0.0
    %1502 = vmatpush2.xpose.msra.mxu0 0.0
    %1503 = vmatprep.subr.mxu0 0.0
    %1504 = vmatpush2.xpose.msra.mxu0 0.0
    %1505 = vmatprep.subr.mxu0 0.0
    %1506 = vmatpush2.xpose.msra.mxu0 0.0
    %1507 = vmatprep.subr.mxu0 0.0
    %1508 = vmatpush2.xpose.msra.mxu0 0.0
    %1509 = vmatprep.mubr.f32.mxu0 0.0
    %1510 = vmatmul.mubr.f32.gmra.mxu0 %v1436
    %v1511 = vpop.f32.mrf.mxu0
    %v1512 = vadd.f32 %v133, %v1511
    %v1513 = vpop.f32.mrf.mxu0
    %1514 = vmatprep.mubr.f32.mxu0 0.0
    %1515 = vmatmul.mubr.f32.gmra.mxu0 %v1439
    %v1516 = vpop.f32.mrf.mxu0
    %v1517 = vadd.f32 %v134, %v1516
    %v1518 = vpop.f32.mrf.mxu0
    %1519 = vdwg.mxu0
    %v1520 = vsel %vm328, %v1512, -inf
    %1521 = vmax.xlane.f32.xlu0 %v1520
    %v1522 = vpop.xlane.xlu0 %1521
    %v1523 = vsel %vm328, %v1517, -inf
    %1524 = vmax.xlane.f32.xlu0 %v1523
    %v1525 = vpop.xlane.xlu0 %1524
    %v1526 = vsub.f32 %v1512, %v1522
    %v1527 = vsub.f32 %v1517, %v1525
    %v1528 = vmul.f32 %v1526, 1.442695
    %v1529 = vpow.pop %v1528
    %v1530 = vmul.f32 %v1527, 1.442695
    %v1531 = vpow.pop %v1530
    %v1532 = vsel %vm328, %v1529, 0.0
    %1533 = vadd.xlane.f32.xlu0 %v1532
    %v1534 = vpop.xlane.xlu0 %1533
    %v1535 = vsel %vm328, %v1531, 0.0
    %1536 = vadd.xlane.f32.xlu0 %v1535
    %v1537 = vpop.xlane.xlu0 %1536
    %v1538 = vrcp.pop %v1534
    %v1539 = vrcp.pop %v1537
    %v1540 = vmul.f32 %v1529, %v1538
    %v1541 = vmul.f32 %v1531, %v1539
    %v1542 = vmul.f32 %v1421, %v353
    %v1543 = vmul.f32 %v1424, %v353
    %1544 = vrot.lane.b32.xlu0 %v1427, 120
    %v1545 = vpop.permute.xlu0 %1544
    %1546 = vrot.lane.b32.xlu0 %v1428, 120
    %v1547 = vpop.permute.xlu0 %1546
    %1548 = vrot.lane.b32.xlu0 %v1421, 88
    %v1549 = vpop.permute.xlu0 %1548
    %1550 = vrot.lane.b32.xlu0 %v1424, 88
    %v1551 = vpop.permute.xlu0 %1550
    %v1552 = vsel %vm242, %v1545, 0
    %v1554 = vsel %vm242, %v1547, 0
    %v1556 = vsel %vm242, %v1549, 0
    %v1558 = vsel %vm242, %v1551, 0
    %1560 = vmatprep.subr.mxu0 0.0
    %1561 = vmatpush1.xpose.msra.mxu0 0.0
    %1562 = vmatprep.subr.mxu0 0.0
    %1563 = vmatpush1.xpose.msra.mxu0 0.0
    %1564 = vmatprep.subr.mxu0 0.0
    %1565 = vmatpush1.xpose.msra.mxu0 0.0
    %1566 = vmatprep.subr.mxu0 0.0
    %1567 = vmatpush1.xpose.msra.mxu0 0.0
    %1568 = vmatprep.subr.mxu0 0.0
    %1569 = vmatpush1.xpose.msra.mxu0 0.0
    %1570 = vmatprep.subr.mxu0 0.0
    %1571 = vmatpush1.xpose.msra.mxu0 0.0
    %1572 = vmatprep.subr.mxu0 0.0
    %1573 = vmatpush1.xpose.msra.mxu0 0.0
    %1574 = vmatprep.subr.mxu0 0.0
    %1575 = vmatpush1.xpose.msra.mxu0 0.0
    %1576 = vmatprep.subr.mxu0 0.0
    %1577 = vmatpush1.xpose.msra.mxu0 0.0
    %1578 = vmatprep.subr.mxu0 0.0
    %1579 = vmatpush1.xpose.msra.mxu0 0.0
    %1580 = vmatprep.subr.mxu0 0.0
    %1581 = vmatpush1.xpose.msra.mxu0 0.0
    %1582 = vmatprep.subr.mxu0 0.0
    %1583 = vmatpush1.xpose.msra.mxu0 0.0
    %1584 = vmatprep.subr.mxu0 0.0
    %1585 = vmatpush1.xpose.msra.mxu0 0.0
    %1586 = vmatprep.subr.mxu0 0.0
    %1587 = vmatpush1.xpose.msra.mxu0 0.0
    %1588 = vmatprep.subr.mxu0 0.0
    %1589 = vmatpush1.xpose.msra.mxu0 %v1558
    %1590 = vmatprep.subr.mxu0 0.0
    %1591 = vmatpush1.xpose.msra.mxu0 %v1556
    %1592 = vmatprep.subr.mxu0 0.0
    %1593 = vmatpush2.xpose.msra.mxu0 0.0
    %1594 = vmatprep.subr.mxu0 0.0
    %1595 = vmatpush2.xpose.msra.mxu0 0.0
    %1596 = vmatprep.subr.mxu0 0.0
    %1597 = vmatpush2.xpose.msra.mxu0 0.0
    %1598 = vmatprep.subr.mxu0 0.0
    %1599 = vmatpush2.xpose.msra.mxu0 0.0
    %1600 = vmatprep.subr.mxu0 0.0
    %1601 = vmatpush2.xpose.msra.mxu0 0.0
    %1602 = vmatprep.subr.mxu0 0.0
    %1603 = vmatpush2.xpose.msra.mxu0 0.0
    %1604 = vmatprep.subr.mxu0 0.0
    %1605 = vmatpush2.xpose.msra.mxu0 0.0
    %1606 = vmatprep.subr.mxu0 0.0
    %1607 = vmatpush2.xpose.msra.mxu0 0.0
    %1608 = vmatprep.subr.mxu0 0.0
    %1609 = vmatpush2.xpose.msra.mxu0 0.0
    %1610 = vmatprep.subr.mxu0 0.0
    %1611 = vmatpush2.xpose.msra.mxu0 0.0
    %1612 = vmatprep.subr.mxu0 0.0
    %1613 = vmatpush2.xpose.msra.mxu0 0.0
    %1614 = vmatprep.subr.mxu0 0.0
    %1615 = vmatpush2.xpose.msra.mxu0 0.0
    %1616 = vmatprep.subr.mxu0 0.0
    %1617 = vmatpush2.xpose.msra.mxu0 0.0
    %1618 = vmatprep.subr.mxu0 0.0
    %1619 = vmatpush2.xpose.msra.mxu0 0.0
    %1620 = vmatprep.subr.mxu0 0.0
    %1621 = vmatpush2.xpose.msra.mxu0 0.0
    %1622 = vmatprep.subr.mxu0 0.0
    %1623 = vmatpush2.xpose.msra.mxu0 0.0
    %1624 = vmatprep.mubr.f32.mxu0 0.0
    %1625 = vmatmul.mubr.f32.gmra.mxu0 %v1552
    %v1626 = vpop.f32.mrf.mxu0
    %v1627 = vadd.f32 %v133, %v1626
    %v1628 = vpop.f32.mrf.mxu0
    %1629 = vmatprep.mubr.f32.mxu0 0.0
    %1630 = vmatmul.mubr.f32.gmra.mxu0 %v1554
    %v1631 = vpop.f32.mrf.mxu0
    %v1632 = vadd.f32 %v134, %v1631
    %v1633 = vpop.f32.mrf.mxu0
    %1634 = vdwg.mxu0
    %v1635 = vsel %vm328, %v1627, -inf
    %1636 = vmax.xlane.f32.xlu0 %v1635
    %v1637 = vpop.xlane.xlu0 %1636
    %v1638 = vsel %vm328, %v1632, -inf
    %1639 = vmax.xlane.f32.xlu0 %v1638
    %v1640 = vpop.xlane.xlu0 %1639
    %v1641 = vsub.f32 %v1627, %v1637
    %v1642 = vsub.f32 %v1632, %v1640
    %v1643 = vmul.f32 %v1641, 1.442695
    %v1644 = vpow.pop %v1643
    %v1645 = vmul.f32 %v1642, 1.442695
    %v1646 = vpow.pop %v1645
    %v1647 = vsel %vm328, %v1644, 0.0
    %1648 = vadd.xlane.f32.xlu0 %v1647
    %v1649 = vpop.xlane.xlu0 %1648
    %v1650 = vsel %vm328, %v1646, 0.0
    %1651 = vadd.xlane.f32.xlu0 %v1650
    %v1652 = vpop.xlane.xlu0 %1651
    %v1653 = vrcp.pop %v1649
    %v1654 = vrcp.pop %v1652
    %v1655 = vmul.f32 %v1644, %v1653
    %v1656 = vmul.f32 %v1646, %v1654
    %v1657 = vmul.f32 %v1421, %v472
    %v1658 = vmul.f32 %v1424, %v472
    %1661 = vrot.lane.b32.xlu0 %v1657, 64
    %v1662 = vpop.permute.xlu0 %1661
    %1663 = vrot.lane.b32.xlu0 %v1658, 64
    %v1664 = vpop.permute.xlu0 %1663
    %v1668 = vsel %vm328, %v1655, 0
    %v1671 = vsel %vm328, %v1656, 0
    %1673 = vmatprep.subr.mxu0 0.0
    %1674 = vmatpush1.msra.mxu0 0.0
    %1675 = vmatprep.subr.mxu0 0.0
    %1676 = vmatpush1.msra.mxu0 0.0
    %1677 = vmatprep.subr.mxu0 0.0
    %1678 = vmatpush1.msra.mxu0 0.0
    %1679 = vmatprep.subr.mxu0 0.0
    %1680 = vmatpush1.msra.mxu0 0.0
    %1681 = vmatprep.subr.mxu0 0.0
    %1682 = vmatpush1.msra.mxu0 0.0
    %1683 = vmatprep.subr.mxu0 0.0
    %1684 = vmatpush1.msra.mxu0 0.0
    %1685 = vmatprep.subr.mxu0 0.0
    %1686 = vmatpush1.msra.mxu0 0.0
    %1687 = vmatprep.subr.mxu0 0.0
    %1688 = vmatpush1.msra.mxu0 0.0
    %1689 = vmatprep.subr.mxu0 0.0
    %1690 = vmatpush1.msra.mxu0 0.0
    %1691 = vmatprep.subr.mxu0 0.0
    %1692 = vmatpush1.msra.mxu0 0.0
    %1693 = vmatprep.subr.mxu0 0.0
    %1694 = vmatpush1.msra.mxu0 0.0
    %1695 = vmatprep.subr.mxu0 0.0
    %1696 = vmatpush1.msra.mxu0 0.0
    %1697 = vmatprep.subr.mxu0 0.0
    %1698 = vmatpush1.msra.mxu0 0.0
    %1699 = vmatprep.subr.mxu0 0.0
    %1700 = vmatpush1.msra.mxu0 0.0
    %1701 = vmatprep.subr.mxu0 0.0
    %1702 = vmatpush1.msra.mxu0 %v1664
    %1703 = vmatprep.subr.mxu0 0.0
    %1704 = vmatpush1.msra.mxu0 %v1662
    %1705 = vmatprep.subr.mxu0 0.0
    %1706 = vmatpush2.msra.mxu0 0.0
    %1707 = vmatprep.subr.mxu0 0.0
    %1708 = vmatpush2.msra.mxu0 0.0
    %1709 = vmatprep.subr.mxu0 0.0
    %1710 = vmatpush2.msra.mxu0 0.0
    %1711 = vmatprep.subr.mxu0 0.0
    %1712 = vmatpush2.msra.mxu0 0.0
    %1713 = vmatprep.subr.mxu0 0.0
    %1714 = vmatpush2.msra.mxu0 0.0
    %1715 = vmatprep.subr.mxu0 0.0
    %1716 = vmatpush2.msra.mxu0 0.0
    %1717 = vmatprep.subr.mxu0 0.0
    %1718 = vmatpush2.msra.mxu0 0.0
    %1719 = vmatprep.subr.mxu0 0.0
    %1720 = vmatpush2.msra.mxu0 0.0
    %1721 = vmatprep.subr.mxu0 0.0
    %1722 = vmatpush2.msra.mxu0 0.0
    %1723 = vmatprep.subr.mxu0 0.0
    %1724 = vmatpush2.msra.mxu0 0.0
    %1725 = vmatprep.subr.mxu0 0.0
    %1726 = vmatpush2.msra.mxu0 0.0
    %1727 = vmatprep.subr.mxu0 0.0
    %1728 = vmatpush2.msra.mxu0 0.0
    %1729 = vmatprep.subr.mxu0 0.0
    %1730 = vmatpush2.msra.mxu0 0.0
    %1731 = vmatprep.subr.mxu0 0.0
    %1732 = vmatpush2.msra.mxu0 0.0
    %1733 = vmatprep.subr.mxu0 0.0
    %1734 = vmatpush2.msra.mxu0 0.0
    %1735 = vmatprep.subr.mxu0 0.0
    %1736 = vmatpush2.msra.mxu0 0.0
    %1737 = vmatprep.mubr.f32.mxu0 0.0
    %1738 = vmatmul.mubr.f32.gmra.mxu0 %v1668
    %v1739 = vpop.f32.mrf.mxu0
    %v1740 = vadd.f32 0.0, %v1739
    %v1741 = vpop.f32.mrf.mxu0
    %1742 = vmatprep.mubr.f32.mxu0 0.0
    %1743 = vmatmul.mubr.f32.gmra.mxu0 %v1671
    %v1744 = vpop.f32.mrf.mxu0
    %v1745 = vadd.f32 0.0, %v1744
    %v1746 = vpop.f32.mrf.mxu0
    %1747 = vdwg.mxu0
    %1750 = vrot.lane.b32.xlu0 %v1542, 64
    %v1751 = vpop.permute.xlu0 %1750
    %1752 = vrot.lane.b32.xlu0 %v1543, 64
    %v1753 = vpop.permute.xlu0 %1752
    %v1757 = vsel %vm328, %v1540, 0
    %v1760 = vsel %vm328, %v1541, 0
    %1762 = vmatprep.subr.mxu0 0.0
    %1763 = vmatpush1.msra.mxu0 0.0
    %1764 = vmatprep.subr.mxu0 0.0
    %1765 = vmatpush1.msra.mxu0 0.0
    %1766 = vmatprep.subr.mxu0 0.0
    %1767 = vmatpush1.msra.mxu0 0.0
    %1768 = vmatprep.subr.mxu0 0.0
    %1769 = vmatpush1.msra.mxu0 0.0
    %1770 = vmatprep.subr.mxu0 0.0
    %1771 = vmatpush1.msra.mxu0 0.0
    %1772 = vmatprep.subr.mxu0 0.0
    %1773 = vmatpush1.msra.mxu0 0.0
    %1774 = vmatprep.subr.mxu0 0.0
    %1775 = vmatpush1.msra.mxu0 0.0
    %1776 = vmatprep.subr.mxu0 0.0
    %1777 = vmatpush1.msra.mxu0 0.0
    %1778 = vmatprep.subr.mxu0 0.0
    %1779 = vmatpush1.msra.mxu0 0.0
    %1780 = vmatprep.subr.mxu0 0.0
    %1781 = vmatpush1.msra.mxu0 0.0
    %1782 = vmatprep.subr.mxu0 0.0
    %1783 = vmatpush1.msra.mxu0 0.0
    %1784 = vmatprep.subr.mxu0 0.0
    %1785 = vmatpush1.msra.mxu0 0.0
    %1786 = vmatprep.subr.mxu0 0.0
    %1787 = vmatpush1.msra.mxu0 0.0
    %1788 = vmatprep.subr.mxu0 0.0
    %1789 = vmatpush1.msra.mxu0 0.0
    %1790 = vmatprep.subr.mxu0 0.0
    %1791 = vmatpush1.msra.mxu0 %v1753
    %1792 = vmatprep.subr.mxu0 0.0
    %1793 = vmatpush1.msra.mxu0 %v1751
    %1794 = vmatprep.subr.mxu0 0.0
    %1795 = vmatpush2.msra.mxu0 0.0
    %1796 = vmatprep.subr.mxu0 0.0
    %1797 = vmatpush2.msra.mxu0 0.0
    %1798 = vmatprep.subr.mxu0 0.0
    %1799 = vmatpush2.msra.mxu0 0.0
    %1800 = vmatprep.subr.mxu0 0.0
    %1801 = vmatpush2.msra.mxu0 0.0
    %1802 = vmatprep.subr.mxu0 0.0
    %1803 = vmatpush2.msra.mxu0 0.0
    %1804 = vmatprep.subr.mxu0 0.0
    %1805 = vmatpush2.msra.mxu0 0.0
    %1806 = vmatprep.subr.mxu0 0.0
    %1807 = vmatpush2.msra.mxu0 0.0
    %1808 = vmatprep.subr.mxu0 0.0
    %1809 = vmatpush2.msra.mxu0 0.0
    %1810 = vmatprep.subr.mxu0 0.0
    %1811 = vmatpush2.msra.mxu0 0.0
    %1812 = vmatprep.subr.mxu0 0.0
    %1813 = vmatpush2.msra.mxu0 0.0
    %1814 = vmatprep.subr.mxu0 0.0
    %1815 = vmatpush2.msra.mxu0 0.0
    %1816 = vmatprep.subr.mxu0 0.0
    %1817 = vmatpush2.msra.mxu0 0.0
    %1818 = vmatprep.subr.mxu0 0.0
    %1819 = vmatpush2.msra.mxu0 0.0
    %1820 = vmatprep.subr.mxu0 0.0
    %1821 = vmatpush2.msra.mxu0 0.0
    %1822 = vmatprep.subr.mxu0 0.0
    %1823 = vmatpush2.msra.mxu0 0.0
    %1824 = vmatprep.subr.mxu0 0.0
    %1825 = vmatpush2.msra.mxu0 0.0
    %1826 = vmatprep.mubr.f32.mxu0 0.0
    %1827 = vmatmul.mubr.f32.gmra.mxu0 %v1757
    %v1828 = vpop.f32.mrf.mxu0
    %v1829 = vadd.f32 %v1740, %v1828
    %v1830 = vpop.f32.mrf.mxu0
    %1831 = vmatprep.mubr.f32.mxu0 0.0
    %1832 = vmatmul.mubr.f32.gmra.mxu0 %v1760
    %v1833 = vpop.f32.mrf.mxu0
    %v1834 = vadd.f32 %v1745, %v1833
    %v1835 = vpop.f32.mrf.mxu0
    %1836 = vdwg.mxu0
    %1837 = vrot.lane.b32.xlu0 %v1427, 112
    %v1838 = vpop.permute.xlu0 %1837
    %1839 = vrot.lane.b32.xlu0 %v1428, 112
    %v1840 = vpop.permute.xlu0 %1839
    %1841 = vrot.lane.b32.xlu0 %v1421, 80
    %v1842 = vpop.permute.xlu0 %1841
    %1843 = vrot.lane.b32.xlu0 %v1424, 80
    %v1844 = vpop.permute.xlu0 %1843
    %v1845 = vsel %vm242, %v1838, 0
    %v1847 = vsel %vm242, %v1840, 0
    %v1849 = vsel %vm242, %v1842, 0
    %v1851 = vsel %vm242, %v1844, 0
    %1853 = vmatprep.subr.mxu0 0.0
    %1854 = vmatpush1.xpose.msra.mxu0 0.0
    %1855 = vmatprep.subr.mxu0 0.0
    %1856 = vmatpush1.xpose.msra.mxu0 0.0
    %1857 = vmatprep.subr.mxu0 0.0
    %1858 = vmatpush1.xpose.msra.mxu0 0.0
    %1859 = vmatprep.subr.mxu0 0.0
    %1860 = vmatpush1.xpose.msra.mxu0 0.0
    %1861 = vmatprep.subr.mxu0 0.0
    %1862 = vmatpush1.xpose.msra.mxu0 0.0
    %1863 = vmatprep.subr.mxu0 0.0
    %1864 = vmatpush1.xpose.msra.mxu0 0.0
    %1865 = vmatprep.subr.mxu0 0.0
    %1866 = vmatpush1.xpose.msra.mxu0 0.0
    %1867 = vmatprep.subr.mxu0 0.0
    %1868 = vmatpush1.xpose.msra.mxu0 0.0
    %1869 = vmatprep.subr.mxu0 0.0
    %1870 = vmatpush1.xpose.msra.mxu0 0.0
    %1871 = vmatprep.subr.mxu0 0.0
    %1872 = vmatpush1.xpose.msra.mxu0 0.0
    %1873 = vmatprep.subr.mxu0 0.0
    %1874 = vmatpush1.xpose.msra.mxu0 0.0
    %1875 = vmatprep.subr.mxu0 0.0
    %1876 = vmatpush1.xpose.msra.mxu0 0.0
    %1877 = vmatprep.subr.mxu0 0.0
    %1878 = vmatpush1.xpose.msra.mxu0 0.0
    %1879 = vmatprep.subr.mxu0 0.0
    %1880 = vmatpush1.xpose.msra.mxu0 0.0
    %1881 = vmatprep.subr.mxu0 0.0
    %1882 = vmatpush1.xpose.msra.mxu0 %v1851
    %1883 = vmatprep.subr.mxu0 0.0
    %1884 = vmatpush1.xpose.msra.mxu0 %v1849
    %1885 = vmatprep.subr.mxu0 0.0
    %1886 = vmatpush2.xpose.msra.mxu0 0.0
    %1887 = vmatprep.subr.mxu0 0.0
    %1888 = vmatpush2.xpose.msra.mxu0 0.0
    %1889 = vmatprep.subr.mxu0 0.0
    %1890 = vmatpush2.xpose.msra.mxu0 0.0
    %1891 = vmatprep.subr.mxu0 0.0
    %1892 = vmatpush2.xpose.msra.mxu0 0.0
    %1893 = vmatprep.subr.mxu0 0.0
    %1894 = vmatpush2.xpose.msra.mxu0 0.0
    %1895 = vmatprep.subr.mxu0 0.0
    %1896 = vmatpush2.xpose.msra.mxu0 0.0
    %1897 = vmatprep.subr.mxu0 0.0
    %1898 = vmatpush2.xpose.msra.mxu0 0.0
    %1899 = vmatprep.subr.mxu0 0.0
    %1900 = vmatpush2.xpose.msra.mxu0 0.0
    %1901 = vmatprep.subr.mxu0 0.0
    %1902 = vmatpush2.xpose.msra.mxu0 0.0
    %1903 = vmatprep.subr.mxu0 0.0
    %1904 = vmatpush2.xpose.msra.mxu0 0.0
    %1905 = vmatprep.subr.mxu0 0.0
    %1906 = vmatpush2.xpose.msra.mxu0 0.0
    %1907 = vmatprep.subr.mxu0 0.0
    %1908 = vmatpush2.xpose.msra.mxu0 0.0
    %1909 = vmatprep.subr.mxu0 0.0
    %1910 = vmatpush2.xpose.msra.mxu0 0.0
    %1911 = vmatprep.subr.mxu0 0.0
    %1912 = vmatpush2.xpose.msra.mxu0 0.0
    %1913 = vmatprep.subr.mxu0 0.0
    %1914 = vmatpush2.xpose.msra.mxu0 0.0
    %1915 = vmatprep.subr.mxu0 0.0
    %1916 = vmatpush2.xpose.msra.mxu0 0.0
    %1917 = vmatprep.mubr.f32.mxu0 0.0
    %1918 = vmatmul.mubr.f32.gmra.mxu0 %v1845
    %v1919 = vpop.f32.mrf.mxu0
    %v1920 = vadd.f32 %v133, %v1919
    %v1921 = vpop.f32.mrf.mxu0
    %1922 = vmatprep.mubr.f32.mxu0 0.0
    %1923 = vmatmul.mubr.f32.gmra.mxu0 %v1847
    %v1924 = vpop.f32.mrf.mxu0
    %v1925 = vadd.f32 %v134, %v1924
    %v1926 = vpop.f32.mrf.mxu0
    %1927 = vdwg.mxu0
    %v1928 = vsel %vm328, %v1920, -inf
    %1929 = vmax.xlane.f32.xlu0 %v1928
    %v1930 = vpop.xlane.xlu0 %1929
    %v1931 = vsel %vm328, %v1925, -inf
    %1932 = vmax.xlane.f32.xlu0 %v1931
    %v1933 = vpop.xlane.xlu0 %1932
    %v1934 = vsub.f32 %v1920, %v1930
    %v1935 = vsub.f32 %v1925, %v1933
    %v1936 = vmul.f32 %v1934, 1.442695
    %v1937 = vpow.pop %v1936
    %v1938 = vmul.f32 %v1935, 1.442695
    %v1939 = vpow.pop %v1938
    %v1940 = vsel %vm328, %v1937, 0.0
    %1941 = vadd.xlane.f32.xlu0 %v1940
    %v1942 = vpop.xlane.xlu0 %1941
    %v1943 = vsel %vm328, %v1939, 0.0
    %1944 = vadd.xlane.f32.xlu0 %v1943
    %v1945 = vpop.xlane.xlu0 %1944
    %v1946 = vrcp.pop %v1942
    %v1947 = vrcp.pop %v1945
    %v1948 = vmul.f32 %v1937, %v1946
    %v1949 = vmul.f32 %v1939, %v1947
    %v1950 = vmul.f32 %v1421, %v769
    %v1951 = vmul.f32 %v1424, %v769
    %1954 = vrot.lane.b32.xlu0 %v1950, 64
    %v1955 = vpop.permute.xlu0 %1954
    %1956 = vrot.lane.b32.xlu0 %v1951, 64
    %v1957 = vpop.permute.xlu0 %1956
    %v1961 = vsel %vm328, %v1948, 0
    %v1964 = vsel %vm328, %v1949, 0
    %1966 = vmatprep.subr.mxu0 0.0
    %1967 = vmatpush1.msra.mxu0 0.0
    %1968 = vmatprep.subr.mxu0 0.0
    %1969 = vmatpush1.msra.mxu0 0.0
    %1970 = vmatprep.subr.mxu0 0.0
    %1971 = vmatpush1.msra.mxu0 0.0
    %1972 = vmatprep.subr.mxu0 0.0
    %1973 = vmatpush1.msra.mxu0 0.0
    %1974 = vmatprep.subr.mxu0 0.0
    %1975 = vmatpush1.msra.mxu0 0.0
    %1976 = vmatprep.subr.mxu0 0.0
    %1977 = vmatpush1.msra.mxu0 0.0
    %1978 = vmatprep.subr.mxu0 0.0
    %1979 = vmatpush1.msra.mxu0 0.0
    %1980 = vmatprep.subr.mxu0 0.0
    %1981 = vmatpush1.msra.mxu0 0.0
    %1982 = vmatprep.subr.mxu0 0.0
    %1983 = vmatpush1.msra.mxu0 0.0
    %1984 = vmatprep.subr.mxu0 0.0
    %1985 = vmatpush1.msra.mxu0 0.0
    %1986 = vmatprep.subr.mxu0 0.0
    %1987 = vmatpush1.msra.mxu0 0.0
    %1988 = vmatprep.subr.mxu0 0.0
    %1989 = vmatpush1.msra.mxu0 0.0
    %1990 = vmatprep.subr.mxu0 0.0
    %1991 = vmatpush1.msra.mxu0 0.0
    %1992 = vmatprep.subr.mxu0 0.0
    %1993 = vmatpush1.msra.mxu0 0.0
    %1994 = vmatprep.subr.mxu0 0.0
    %1995 = vmatpush1.msra.mxu0 %v1957
    %1996 = vmatprep.subr.mxu0 0.0
    %1997 = vmatpush1.msra.mxu0 %v1955
    %1998 = vmatprep.subr.mxu0 0.0
    %1999 = vmatpush2.msra.mxu0 0.0
    %2000 = vmatprep.subr.mxu0 0.0
    %2001 = vmatpush2.msra.mxu0 0.0
    %2002 = vmatprep.subr.mxu0 0.0
    %2003 = vmatpush2.msra.mxu0 0.0
    %2004 = vmatprep.subr.mxu0 0.0
    %2005 = vmatpush2.msra.mxu0 0.0
    %2006 = vmatprep.subr.mxu0 0.0
    %2007 = vmatpush2.msra.mxu0 0.0
    %2008 = vmatprep.subr.mxu0 0.0
    %2009 = vmatpush2.msra.mxu0 0.0
    %2010 = vmatprep.subr.mxu0 0.0
    %2011 = vmatpush2.msra.mxu0 0.0
    %2012 = vmatprep.subr.mxu0 0.0
    %2013 = vmatpush2.msra.mxu0 0.0
    %2014 = vmatprep.subr.mxu0 0.0
    %2015 = vmatpush2.msra.mxu0 0.0
    %2016 = vmatprep.subr.mxu0 0.0
    %2017 = vmatpush2.msra.mxu0 0.0
    %2018 = vmatprep.subr.mxu0 0.0
    %2019 = vmatpush2.msra.mxu0 0.0
    %2020 = vmatprep.subr.mxu0 0.0
    %2021 = vmatpush2.msra.mxu0 0.0
    %2022 = vmatprep.subr.mxu0 0.0
    %2023 = vmatpush2.msra.mxu0 0.0
    %2024 = vmatprep.subr.mxu0 0.0
    %2025 = vmatpush2.msra.mxu0 0.0
    %2026 = vmatprep.subr.mxu0 0.0
    %2027 = vmatpush2.msra.mxu0 0.0
    %2028 = vmatprep.subr.mxu0 0.0
    %2029 = vmatpush2.msra.mxu0 0.0
    %2030 = vmatprep.mubr.f32.mxu0 0.0
    %2031 = vmatmul.mubr.f32.gmra.mxu0 %v1961
    %v2032 = vpop.f32.mrf.mxu0
    %v2033 = vadd.f32 0.0, %v2032
    %v2034 = vpop.f32.mrf.mxu0
    %2035 = vmatprep.mubr.f32.mxu0 0.0
    %2036 = vmatmul.mubr.f32.gmra.mxu0 %v1964
    %v2037 = vpop.f32.mrf.mxu0
    %v2038 = vadd.f32 0.0, %v2037
    %v2039 = vpop.f32.mrf.mxu0
    %2040 = vdwg.mxu0
    %v2041 = vadd.f32 %v1829, %v2033
    %v2042 = vadd.f32 %v1834, %v2038
    %2043 = vrot.lane.b32.xlu0 %v1427, 104
    %v2044 = vpop.permute.xlu0 %2043
    %2045 = vrot.lane.b32.xlu0 %v1428, 104
    %v2046 = vpop.permute.xlu0 %2045
    %2047 = vrot.lane.b32.xlu0 %v1421, 72
    %v2048 = vpop.permute.xlu0 %2047
    %2049 = vrot.lane.b32.xlu0 %v1424, 72
    %v2050 = vpop.permute.xlu0 %2049
    %v2051 = vsel %vm242, %v2044, 0
    %v2053 = vsel %vm242, %v2046, 0
    %v2055 = vsel %vm242, %v2048, 0
    %v2057 = vsel %vm242, %v2050, 0
    %2059 = vmatprep.subr.mxu0 0.0
    %2060 = vmatpush1.xpose.msra.mxu0 0.0
    %2061 = vmatprep.subr.mxu0 0.0
    %2062 = vmatpush1.xpose.msra.mxu0 0.0
    %2063 = vmatprep.subr.mxu0 0.0
    %2064 = vmatpush1.xpose.msra.mxu0 0.0
    %2065 = vmatprep.subr.mxu0 0.0
    %2066 = vmatpush1.xpose.msra.mxu0 0.0
    %2067 = vmatprep.subr.mxu0 0.0
    %2068 = vmatpush1.xpose.msra.mxu0 0.0
    %2069 = vmatprep.subr.mxu0 0.0
    %2070 = vmatpush1.xpose.msra.mxu0 0.0
    %2071 = vmatprep.subr.mxu0 0.0
    %2072 = vmatpush1.xpose.msra.mxu0 0.0
    %2073 = vmatprep.subr.mxu0 0.0
    %2074 = vmatpush1.xpose.msra.mxu0 0.0
    %2075 = vmatprep.subr.mxu0 0.0
    %2076 = vmatpush1.xpose.msra.mxu0 0.0
    %2077 = vmatprep.subr.mxu0 0.0
    %2078 = vmatpush1.xpose.msra.mxu0 0.0
    %2079 = vmatprep.subr.mxu0 0.0
    %2080 = vmatpush1.xpose.msra.mxu0 0.0
    %2081 = vmatprep.subr.mxu0 0.0
    %2082 = vmatpush1.xpose.msra.mxu0 0.0
    %2083 = vmatprep.subr.mxu0 0.0
    %2084 = vmatpush1.xpose.msra.mxu0 0.0
    %2085 = vmatprep.subr.mxu0 0.0
    %2086 = vmatpush1.xpose.msra.mxu0 0.0
    %2087 = vmatprep.subr.mxu0 0.0
    %2088 = vmatpush1.xpose.msra.mxu0 %v2057
    %2089 = vmatprep.subr.mxu0 0.0
    %2090 = vmatpush1.xpose.msra.mxu0 %v2055
    %2091 = vmatprep.subr.mxu0 0.0
    %2092 = vmatpush2.xpose.msra.mxu0 0.0
    %2093 = vmatprep.subr.mxu0 0.0
    %2094 = vmatpush2.xpose.msra.mxu0 0.0
    %2095 = vmatprep.subr.mxu0 0.0
    %2096 = vmatpush2.xpose.msra.mxu0 0.0
    %2097 = vmatprep.subr.mxu0 0.0
    %2098 = vmatpush2.xpose.msra.mxu0 0.0
    %2099 = vmatprep.subr.mxu0 0.0
    %2100 = vmatpush2.xpose.msra.mxu0 0.0
    %2101 = vmatprep.subr.mxu0 0.0
    %2102 = vmatpush2.xpose.msra.mxu0 0.0
    %2103 = vmatprep.subr.mxu0 0.0
    %2104 = vmatpush2.xpose.msra.mxu0 0.0
    %2105 = vmatprep.subr.mxu0 0.0
    %2106 = vmatpush2.xpose.msra.mxu0 0.0
    %2107 = vmatprep.subr.mxu0 0.0
    %2108 = vmatpush2.xpose.msra.mxu0 0.0
    %2109 = vmatprep.subr.mxu0 0.0
    %2110 = vmatpush2.xpose.msra.mxu0 0.0
    %2111 = vmatprep.subr.mxu0 0.0
    %2112 = vmatpush2.xpose.msra.mxu0 0.0
    %2113 = vmatprep.subr.mxu0 0.0
    %2114 = vmatpush2.xpose.msra.mxu0 0.0
    %2115 = vmatprep.subr.mxu0 0.0
    %2116 = vmatpush2.xpose.msra.mxu0 0.0
    %2117 = vmatprep.subr.mxu0 0.0
    %2118 = vmatpush2.xpose.msra.mxu0 0.0
    %2119 = vmatprep.subr.mxu0 0.0
    %2120 = vmatpush2.xpose.msra.mxu0 0.0
    %2121 = vmatprep.subr.mxu0 0.0
    %2122 = vmatpush2.xpose.msra.mxu0 0.0
    %2123 = vmatprep.mubr.f32.mxu0 0.0
    %2124 = vmatmul.mubr.f32.gmra.mxu0 %v2051
    %v2125 = vpop.f32.mrf.mxu0
    %v2126 = vadd.f32 %v133, %v2125
    %v2127 = vpop.f32.mrf.mxu0
    %2128 = vmatprep.mubr.f32.mxu0 0.0
    %2129 = vmatmul.mubr.f32.gmra.mxu0 %v2053
    %v2130 = vpop.f32.mrf.mxu0
    %v2131 = vadd.f32 %v134, %v2130
    %v2132 = vpop.f32.mrf.mxu0
    %2133 = vdwg.mxu0
    %v2134 = vsel %vm328, %v2126, -inf
    %2135 = vmax.xlane.f32.xlu0 %v2134
    %v2136 = vpop.xlane.xlu0 %2135
    %v2137 = vsel %vm328, %v2131, -inf
    %2138 = vmax.xlane.f32.xlu0 %v2137
    %v2139 = vpop.xlane.xlu0 %2138
    %v2140 = vsub.f32 %v2126, %v2136
    %v2141 = vsub.f32 %v2131, %v2139
    %v2142 = vmul.f32 %v2140, 1.442695
    %v2143 = vpow.pop %v2142
    %v2144 = vmul.f32 %v2141, 1.442695
    %v2145 = vpow.pop %v2144
    %v2146 = vsel %vm328, %v2143, 0.0
    %2147 = vadd.xlane.f32.xlu0 %v2146
    %v2148 = vpop.xlane.xlu0 %2147
    %v2149 = vsel %vm328, %v2145, 0.0
    %2150 = vadd.xlane.f32.xlu0 %v2149
    %v2151 = vpop.xlane.xlu0 %2150
    %v2152 = vrcp.pop %v2148
    %v2153 = vrcp.pop %v2151
    %v2154 = vmul.f32 %v2143, %v2152
    %v2155 = vmul.f32 %v2145, %v2153
    %v2156 = vmul.f32 %v1421, %v979
    %v2157 = vmul.f32 %v1424, %v979
    %2160 = vrot.lane.b32.xlu0 %v2156, 64
    %v2161 = vpop.permute.xlu0 %2160
    %2162 = vrot.lane.b32.xlu0 %v2157, 64
    %v2163 = vpop.permute.xlu0 %2162
    %v2167 = vsel %vm328, %v2154, 0
    %v2170 = vsel %vm328, %v2155, 0
    %2172 = vmatprep.subr.mxu0 0.0
    %2173 = vmatpush1.msra.mxu0 0.0
    %2174 = vmatprep.subr.mxu0 0.0
    %2175 = vmatpush1.msra.mxu0 0.0
    %2176 = vmatprep.subr.mxu0 0.0
    %2177 = vmatpush1.msra.mxu0 0.0
    %2178 = vmatprep.subr.mxu0 0.0
    %2179 = vmatpush1.msra.mxu0 0.0
    %2180 = vmatprep.subr.mxu0 0.0
    %2181 = vmatpush1.msra.mxu0 0.0
    %2182 = vmatprep.subr.mxu0 0.0
    %2183 = vmatpush1.msra.mxu0 0.0
    %2184 = vmatprep.subr.mxu0 0.0
    %2185 = vmatpush1.msra.mxu0 0.0
    %2186 = vmatprep.subr.mxu0 0.0
    %2187 = vmatpush1.msra.mxu0 0.0
    %2188 = vmatprep.subr.mxu0 0.0
    %2189 = vmatpush1.msra.mxu0 0.0
    %2190 = vmatprep.subr.mxu0 0.0
    %2191 = vmatpush1.msra.mxu0 0.0
    %2192 = vmatprep.subr.mxu0 0.0
    %2193 = vmatpush1.msra.mxu0 0.0
    %2194 = vmatprep.subr.mxu0 0.0
    %2195 = vmatpush1.msra.mxu0 0.0
    %2196 = vmatprep.subr.mxu0 0.0
    %2197 = vmatpush1.msra.mxu0 0.0
    %2198 = vmatprep.subr.mxu0 0.0
    %2199 = vmatpush1.msra.mxu0 0.0
    %2200 = vmatprep.subr.mxu0 0.0
    %2201 = vmatpush1.msra.mxu0 %v2163
    %2202 = vmatprep.subr.mxu0 0.0
    %2203 = vmatpush1.msra.mxu0 %v2161
    %2204 = vmatprep.subr.mxu0 0.0
    %2205 = vmatpush2.msra.mxu0 0.0
    %2206 = vmatprep.subr.mxu0 0.0
    %2207 = vmatpush2.msra.mxu0 0.0
    %2208 = vmatprep.subr.mxu0 0.0
    %2209 = vmatpush2.msra.mxu0 0.0
    %2210 = vmatprep.subr.mxu0 0.0
    %2211 = vmatpush2.msra.mxu0 0.0
    %2212 = vmatprep.subr.mxu0 0.0
    %2213 = vmatpush2.msra.mxu0 0.0
    %2214 = vmatprep.subr.mxu0 0.0
    %2215 = vmatpush2.msra.mxu0 0.0
    %2216 = vmatprep.subr.mxu0 0.0
    %2217 = vmatpush2.msra.mxu0 0.0
    %2218 = vmatprep.subr.mxu0 0.0
    %2219 = vmatpush2.msra.mxu0 0.0
    %2220 = vmatprep.subr.mxu0 0.0
    %2221 = vmatpush2.msra.mxu0 0.0
    %2222 = vmatprep.subr.mxu0 0.0
    %2223 = vmatpush2.msra.mxu0 0.0
    %2224 = vmatprep.subr.mxu0 0.0
    %2225 = vmatpush2.msra.mxu0 0.0
    %2226 = vmatprep.subr.mxu0 0.0
    %2227 = vmatpush2.msra.mxu0 0.0
    %2228 = vmatprep.subr.mxu0 0.0
    %2229 = vmatpush2.msra.mxu0 0.0
    %2230 = vmatprep.subr.mxu0 0.0
    %2231 = vmatpush2.msra.mxu0 0.0
    %2232 = vmatprep.subr.mxu0 0.0
    %2233 = vmatpush2.msra.mxu0 0.0
    %2234 = vmatprep.subr.mxu0 0.0
    %2235 = vmatpush2.msra.mxu0 0.0
    %2236 = vmatprep.mubr.f32.mxu0 0.0
    %2237 = vmatmul.mubr.f32.gmra.mxu0 %v2167
    %v2238 = vpop.f32.mrf.mxu0
    %v2239 = vadd.f32 0.0, %v2238
    %v2240 = vpop.f32.mrf.mxu0
    %2241 = vmatprep.mubr.f32.mxu0 0.0
    %2242 = vmatmul.mubr.f32.gmra.mxu0 %v2170
    %v2243 = vpop.f32.mrf.mxu0
    %v2244 = vadd.f32 0.0, %v2243
    %v2245 = vpop.f32.mrf.mxu0
    %2246 = vdwg.mxu0
    %v2247 = vadd.f32 %v2041, %v2239
    %v2248 = vadd.f32 %v2042, %v2244
    %v2249 = vpack.c.bf16 %v2248, %v2247
    %v2250 = vlaneseq
    %v2251 = vshrl.u32 %v2250, 7
    %v2252 = vsub.s32 1, %v2251
    %v2253 = vrot.slane %v1365, %v2252
    %2254 = vrot.lane.b32.xlu0 %v1379, 32
    %v2255 = vpop.permute.xlu0 %2254
    %2256 = vrot.lane.b32.xlu0 %v1380, 32
    %v2257 = vpop.permute.xlu0 %2256
    %v2261 = vsel %vm189, %v2249, 0
    %2263 = vmatprep.subr.bf16.mxu0 0
    %2264 = vmatpush1.bf16.msra.mxu0 0
    %2265 = vmatprep.subr.bf16.mxu0 0
    %2266 = vmatpush1.bf16.msra.mxu0 0
    %2267 = vmatprep.subr.bf16.mxu0 0
    %2268 = vmatpush1.bf16.msra.mxu0 0
    %2269 = vmatprep.subr.bf16.mxu0 0
    %2270 = vmatpush1.bf16.msra.mxu0 0
    %2271 = vmatprep.subr.bf16.mxu0 0
    %2272 = vmatpush1.bf16.msra.mxu0 0
    %2273 = vmatprep.subr.bf16.mxu0 0
    %2274 = vmatpush1.bf16.msra.mxu0 0
    %2275 = vmatprep.subr.bf16.mxu0 0
    %2276 = vmatpush1.bf16.msra.mxu0 %v2257
    %2277 = vmatprep.subr.bf16.mxu0 0
    %2278 = vmatpush1.bf16.msra.mxu0 %v2255
    %2279 = vmatprep.subr.bf16.mxu0 0
    %2280 = vmatpush2.bf16.msra.mxu0 0
    %2281 = vmatprep.subr.bf16.mxu0 0
    %2282 = vmatpush2.bf16.msra.mxu0 0
    %2283 = vmatprep.subr.bf16.mxu0 0
    %2284 = vmatpush2.bf16.msra.mxu0 0
    %2285 = vmatprep.subr.bf16.mxu0 0
    %2286 = vmatpush2.bf16.msra.mxu0 0
    %2287 = vmatprep.subr.bf16.mxu0 0
    %2288 = vmatpush2.bf16.msra.mxu0 0
    %2289 = vmatprep.subr.bf16.mxu0 0
    %2290 = vmatpush2.bf16.msra.mxu0 0
    %2291 = vmatprep.subr.bf16.mxu0 0
    %2292 = vmatpush2.bf16.msra.mxu0 0
    %2293 = vmatprep.subr.bf16.mxu0 0
    %2294 = vmatpush2.bf16.msra.mxu0 0
    %2295 = vmatprep.mubr.bf16.mxu0 0
    %2296 = vmatmul.mubr.bf16.gmra.mxu0 %v2261
    %v2297 = vpop.f32.mrf.mxu0
    %v2298 = vadd.f32 %v2253, %v2297
    %v2299 = vpop.f32.mrf.mxu0
    %v2300 = vpop.f32.mrf.mxu0
    %v2301 = vadd.f32 %v2253, %v2300
    %v2302 = vpop.f32.mrf.mxu0
    %2303 = vdwg.mxu0
    %v2304 = vadd.f32 %v1344, %v2298
    %v2305 = vadd.f32 %v1345, %v2301
    %v2306 = vsel %vm189, %v2304, 0.0
    %2307 = vadd.xlane.f32.xlu0 %v2306
    %v2308 = vpop.xlane.xlu0 %2307
    %v2309 = vsel %vm189, %v2305, 0.0
    %2310 = vadd.xlane.f32.xlu0 %v2309
    %v2311 = vpop.xlane.xlu0 %2310
    %v2312 = vmul.f32 %v2308, %v1137
    %v2313 = vmul.f32 %v2311, %v1137
    %v2314 = vsub.f32 %v2304, %v2312
    %v2315 = vsub.f32 %v2305, %v2313
    %v2316 = vmul.f32 %v2314, %v2314
    %v2317 = vmul.f32 %v2315, %v2315
    %v2318 = vsel %vm189, %v2316, 0.0
    %2319 = vadd.xlane.f32.xlu0 %v2318
    %v2320 = vpop.xlane.xlu0 %2319
    %v2321 = vsel %vm189, %v2317, 0.0
    %2322 = vadd.xlane.f32.xlu0 %v2321
    %v2323 = vpop.xlane.xlu0 %2322
    %v2324 = vmul.f32 %v2320, %v1137
    %v2325 = vmul.f32 %v2323, %v1137
    %v2326 = vadd.f32 %v2324, 1e-05
    %v2327 = vadd.f32 %v2325, 1e-05
    %v2328 = vrsqrt.pop %v2326
    %v2329 = vrsqrt.pop %v2327
    %v2330 = vmul.f32 %v2314, %v2328
    %v2331 = vmul.f32 %v2315, %v2329
    %v2332 = vlaneseq
    %v2333 = vshrl.u32 %v2332, 7
    %v2334 = vsub.s32 2, %v2333
    %v2335 = vrot.slane %v1365, %v2334
    %v2336 = vmul.f32 %v2330, %v2335
    %v2337 = vmul.f32 %v2331, %v2335
    %v2338 = vlaneseq
    %v2339 = vshrl.u32 %v2338, 7
    %v2340 = vsub.s32 3, %v2339
    %v2341 = vrot.slane %v1365, %v2340
    %v2342 = vadd.f32 %v2336, %v2341
    %v2343 = vadd.f32 %v2337, %v2341
    %v2344 = vpack.c.bf16 %v2343, %v2342
    %v2345 = vlaneseq
    %v2346 = vshrl.u32 %v2345, 7
    %v2347 = vsub.s32 4, %v2346
    %v2348 = vrot.slane %v1365, %v2347
    %v2353 = vunpack.c.l.b16 %v1351
    %v2354 = vunpack.c.l.b16 %v1352
    %v2355 = vunpack.c.l.b16 %v1353
    %v2356 = vunpack.c.l.b16 %v1354
    %v2357 = vpack.c.b16 %v2354, %v2353
    %v2358 = vpack.c.b16 %v2356, %v2355
    %v2362 = vsel %vm189, %v2344, 0
    %2364 = vmatprep.subr.bf16.mxu0 0
    %2365 = vmatpush1.bf16.msra.mxu0 0
    %2366 = vmatprep.subr.bf16.mxu0 0
    %2367 = vmatpush1.bf16.msra.mxu0 0
    %2368 = vmatprep.subr.bf16.mxu0 0
    %2369 = vmatpush1.bf16.msra.mxu0 0
    %2370 = vmatprep.subr.bf16.mxu0 0
    %2371 = vmatpush1.bf16.msra.mxu0 0
    %2372 = vmatprep.subr.bf16.mxu0 0
    %2373 = vmatpush1.bf16.msra.mxu0 0
    %2374 = vmatprep.subr.bf16.mxu0 0
    %2375 = vmatpush1.bf16.msra.mxu0 0
    %2376 = vmatprep.subr.bf16.mxu0 0
    %2377 = vmatpush1.bf16.msra.mxu0 %v2358
    %2378 = vmatprep.subr.bf16.mxu0 0
    %2379 = vmatpush1.bf16.msra.mxu0 %v2357
    %2380 = vmatprep.subr.bf16.mxu0 0
    %2381 = vmatpush2.bf16.msra.mxu0 0
    %2382 = vmatprep.subr.bf16.mxu0 0
    %2383 = vmatpush2.bf16.msra.mxu0 0
    %2384 = vmatprep.subr.bf16.mxu0 0
    %2385 = vmatpush2.bf16.msra.mxu0 0
    %2386 = vmatprep.subr.bf16.mxu0 0
    %2387 = vmatpush2.bf16.msra.mxu0 0
    %2388 = vmatprep.subr.bf16.mxu0 0
    %2389 = vmatpush2.bf16.msra.mxu0 0
    %2390 = vmatprep.subr.bf16.mxu0 0
    %2391 = vmatpush2.bf16.msra.mxu0 0
    %2392 = vmatprep.subr.bf16.mxu0 0
    %2393 = vmatpush2.bf16.msra.mxu0 0
    %2394 = vmatprep.subr.bf16.mxu0 0
    %2395 = vmatpush2.bf16.msra.mxu0 0
    %2396 = vmatprep.mubr.bf16.mxu0 0
    %2397 = vmatmul.mubr.bf16.gmra.mxu0 %v2362
    %v2398 = vpop.f32.mrf.mxu0
    %v2399 = vadd.f32 %v2348, %v2398
    %v2400 = vpop.f32.mrf.mxu0
    %v2401 = vpop.f32.mrf.mxu0
    %v2402 = vadd.f32 %v2348, %v2401
    %v2403 = vpop.f32.mrf.mxu0
    %2404 = vdwg.mxu0
    %v2405 = vmax.f32 %v2399, 0.0
    %v2406 = vmax.f32 %v2402, 0.0
    %v2407 = vpack.c.bf16 %v2406, %v2405
    %v2408 = vlaneseq
    %v2409 = vshrl.u32 %v2408, 7
    %v2410 = vsub.s32 5, %v2409
    %v2411 = vrot.slane %v1365, %v2410
    %v2420 = vunpack.c.l.b16 %v1356
    %v2421 = vunpack.c.l.b16 %v1357
    %v2422 = vunpack.c.l.b16 %v1358
    %v2423 = vunpack.c.l.b16 %v1359
    %v2424 = vunpack.c.l.b16 %v1360
    %v2425 = vunpack.c.l.b16 %v1361
    %v2426 = vunpack.c.l.b16 %v1362
    %v2427 = vunpack.c.l.b16 %v1363
    %v2428 = vpack.c.b16 %v2421, %v2420
    %v2429 = vpack.c.b16 %v2423, %v2422
    %v2430 = vpack.c.b16 %v2425, %v2424
    %v2431 = vpack.c.b16 %v2427, %v2426
    %v2437 = vsel %vm88, %v2407, 0
    %2439 = vmatprep.subr.bf16.mxu0 0
    %2440 = vmatpush1.bf16.msra.mxu0 0
    %2441 = vmatprep.subr.bf16.mxu0 0
    %2442 = vmatpush1.bf16.msra.mxu0 0
    %2443 = vmatprep.subr.bf16.mxu0 0
    %2444 = vmatpush1.bf16.msra.mxu0 0
    %2445 = vmatprep.subr.bf16.mxu0 0
    %2446 = vmatpush1.bf16.msra.mxu0 0
    %2447 = vmatprep.subr.bf16.mxu0 0
    %2448 = vmatpush1.bf16.msra.mxu0 %v2431
    %2449 = vmatprep.subr.bf16.mxu0 0
    %2450 = vmatpush1.bf16.msra.mxu0 %v2430
    %2451 = vmatprep.subr.bf16.mxu0 0
    %2452 = vmatpush1.bf16.msra.mxu0 %v2429
    %2453 = vmatprep.subr.bf16.mxu0 0
    %2454 = vmatpush1.bf16.msra.mxu0 %v2428
    %2455 = vmatprep.subr.bf16.mxu0 0
    %2456 = vmatpush2.bf16.msra.mxu0 0
    %2457 = vmatprep.subr.bf16.mxu0 0
    %2458 = vmatpush2.bf16.msra.mxu0 0
    %2459 = vmatprep.subr.bf16.mxu0 0
    %2460 = vmatpush2.bf16.msra.mxu0 0
    %2461 = vmatprep.subr.bf16.mxu0 0
    %2462 = vmatpush2.bf16.msra.mxu0 0
    %2463 = vmatprep.subr.bf16.mxu0 0
    %2464 = vmatpush2.bf16.msra.mxu0 0
    %2465 = vmatprep.subr.bf16.mxu0 0
    %2466 = vmatpush2.bf16.msra.mxu0 0
    %2467 = vmatprep.subr.bf16.mxu0 0
    %2468 = vmatpush2.bf16.msra.mxu0 0
    %2469 = vmatprep.subr.bf16.mxu0 0
    %2470 = vmatpush2.bf16.msra.mxu0 0
    %2471 = vmatprep.mubr.bf16.mxu0 0
    %2472 = vmatmul.mubr.bf16.gmra.mxu0 %v2437
    %v2473 = vpop.f32.mrf.mxu0
    %v2474 = vadd.f32 %v2411, %v2473
    %v2475 = vpop.f32.mrf.mxu0
    %v2476 = vpop.f32.mrf.mxu0
    %v2477 = vadd.f32 %v2411, %v2476
    %v2478 = vpop.f32.mrf.mxu0
    %2479 = vdwg.mxu0
    %v2480 = vadd.f32 %v2342, %v2474
    %v2481 = vadd.f32 %v2343, %v2477
    %v2482 = vsel %vm189, %v2480, 0.0
    %2483 = vadd.xlane.f32.xlu0 %v2482
    %v2484 = vpop.xlane.xlu0 %2483
    %v2485 = vsel %vm189, %v2481, 0.0
    %2486 = vadd.xlane.f32.xlu0 %v2485
    %v2487 = vpop.xlane.xlu0 %2486
    %v2488 = vmul.f32 %v2484, %v1137
    %v2489 = vmul.f32 %v2487, %v1137
    %v2490 = vsub.f32 %v2480, %v2488
    %v2491 = vsub.f32 %v2481, %v2489
    %v2492 = vmul.f32 %v2490, %v2490
    %v2493 = vmul.f32 %v2491, %v2491
    %v2494 = vsel %vm189, %v2492, 0.0
    %2495 = vadd.xlane.f32.xlu0 %v2494
    %v2496 = vpop.xlane.xlu0 %2495
    %v2497 = vsel %vm189, %v2493, 0.0
    %2498 = vadd.xlane.f32.xlu0 %v2497
    %v2499 = vpop.xlane.xlu0 %2498
    %v2500 = vmul.f32 %v2496, %v1137
    %v2501 = vmul.f32 %v2499, %v1137
    %v2502 = vadd.f32 %v2500, 1e-05
    %v2503 = vadd.f32 %v2501, 1e-05
    %v2504 = vrsqrt.pop %v2502
    %v2505 = vrsqrt.pop %v2503
    %v2506 = vmul.f32 %v2490, %v2504
    %v2507 = vmul.f32 %v2491, %v2505
    %v2508 = vlaneseq
    %v2509 = vshrl.u32 %v2508, 7
    %v2510 = vsub.s32 6, %v2509
    %v2511 = vrot.slane %v1365, %v2510
    %v2512 = vmul.f32 %v2506, %v2511
    %v2513 = vmul.f32 %v2507, %v2511
    %v2514 = vlaneseq
    %v2515 = vshrl.u32 %v2514, 7
    %v2516 = vsub.s32 7, %v2515
    %v2517 = vrot.slane %v1365, %v2516
    %v2518 = vadd.f32 %v2512, %v2517
    %v2519 = vadd.f32 %v2513, %v2517
    %v2520 = vld [vmem:[%s2 + $0x20] sm:$0x3]
    %v2521 = vld [vmem:[%s2 + $0x22] sm:$0xff]
    %v2522 = vld [vmem:[%s2 + $0x2a] sm:$0xff]
    %v2523 = vld [vmem:[%s2 + $0x32] sm:$0xff]
    %v2524 = vld [vmem:[%s2 + $0x3a] sm:$0xff]
    %v2525 = vld [vmem:[%s2 + $0x42] sm:$0x1]
    %v2527 = vsel %vm328, %v2520, 0
    %2529 = vmatprep.subr.mxu0 0.0
    %2530 = vmatpush1.msra.mxu0 0.0
    %2531 = vmatprep.subr.mxu0 0.0
    %2532 = vmatpush1.msra.mxu0 0.0
    %2533 = vmatprep.subr.mxu0 0.0
    %2534 = vmatpush1.msra.mxu0 0.0
    %2535 = vmatprep.subr.mxu0 0.0
    %2536 = vmatpush1.msra.mxu0 0.0
    %2537 = vmatprep.subr.mxu0 0.0
    %2538 = vmatpush1.msra.mxu0 0.0
    %2539 = vmatprep.subr.mxu0 0.0
    %2540 = vmatpush1.msra.mxu0 0.0
    %2541 = vmatprep.subr.mxu0 0.0
    %2542 = vmatpush1.msra.mxu0 0.0
    %2543 = vmatprep.subr.mxu0 0.0
    %2544 = vmatpush1.msra.mxu0 0.0
    %2545 = vmatprep.subr.mxu0 0.0
    %2546 = vmatpush1.msra.mxu0 0.0
    %2547 = vmatprep.subr.mxu0 0.0
    %2548 = vmatpush1.msra.mxu0 0.0
    %2549 = vmatprep.subr.mxu0 0.0
    %2550 = vmatpush1.msra.mxu0 0.0
    %2551 = vmatprep.subr.mxu0 0.0
    %2552 = vmatpush1.msra.mxu0 0.0
    %2553 = vmatprep.subr.mxu0 0.0
    %2554 = vmatpush1.msra.mxu0 0.0
    %2555 = vmatprep.subr.mxu0 0.0
    %2556 = vmatpush1.msra.mxu0 0.0
    %2557 = vmatprep.subr.mxu0 0.0
    %2558 = vmatpush1.msra.mxu0 %v2519
    %2559 = vmatprep.subr.mxu0 0.0
    %2560 = vmatpush1.msra.mxu0 %v2518
    %2561 = vmatprep.subr.mxu0 0.0
    %2562 = vmatpush2.msra.mxu0 0.0
    %2563 = vmatprep.subr.mxu0 0.0
    %2564 = vmatpush2.msra.mxu0 0.0
    %2565 = vmatprep.subr.mxu0 0.0
    %2566 = vmatpush2.msra.mxu0 0.0
    %2567 = vmatprep.subr.mxu0 0.0
    %2568 = vmatpush2.msra.mxu0 0.0
    %2569 = vmatprep.subr.mxu0 0.0
    %2570 = vmatpush2.msra.mxu0 0.0
    %2571 = vmatprep.subr.mxu0 0.0
    %2572 = vmatpush2.msra.mxu0 0.0
    %2573 = vmatprep.subr.mxu0 0.0
    %2574 = vmatpush2.msra.mxu0 0.0
    %2575 = vmatprep.subr.mxu0 0.0
    %2576 = vmatpush2.msra.mxu0 0.0
    %2577 = vmatprep.subr.mxu0 0.0
    %2578 = vmatpush2.msra.mxu0 0.0
    %2579 = vmatprep.subr.mxu0 0.0
    %2580 = vmatpush2.msra.mxu0 0.0
    %2581 = vmatprep.subr.mxu0 0.0
    %2582 = vmatpush2.msra.mxu0 0.0
    %2583 = vmatprep.subr.mxu0 0.0
    %2584 = vmatpush2.msra.mxu0 0.0
    %2585 = vmatprep.subr.mxu0 0.0
    %2586 = vmatpush2.msra.mxu0 0.0
    %2587 = vmatprep.subr.mxu0 0.0
    %2588 = vmatpush2.msra.mxu0 0.0
    %2589 = vmatprep.subr.mxu0 0.0
    %2590 = vmatpush2.msra.mxu0 0.0
    %2591 = vmatprep.subr.mxu0 0.0
    %2592 = vmatpush2.msra.mxu0 0.0
    %2593 = vmatprep.mubr.f32.mxu0 0.0
    %2594 = vmatmul.mubr.f32.gmra.mxu0 %v2527
    %v2595 = vpop.f32.mrf.mxu0
    %v2596 = vadd.f32 0.0, %v2595
    %v2597 = vpop.f32.mrf.mxu0
    %2598 = vdwg.mxu0
    %v2599 = vlaneseq
    %v2600 = vshrl.u32 %v2599, 7
    %v2601 = vsub.s32 0, %v2600
    %v2602 = vrot.slane %v2525, %v2601
    %v2604 = vsel %vm189, %v2596, 0
    %2606 = vmatprep.subr.mxu0 0.0
    %2607 = vmatpush1.msra.mxu0 0.0
    %2608 = vmatprep.subr.mxu0 0.0
    %2609 = vmatpush1.msra.mxu0 0.0
    %2610 = vmatprep.subr.mxu0 0.0
    %2611 = vmatpush1.msra.mxu0 0.0
    %2612 = vmatprep.subr.mxu0 0.0
    %2613 = vmatpush1.msra.mxu0 0.0
    %2614 = vmatprep.subr.mxu0 0.0
    %2615 = vmatpush1.msra.mxu0 0.0
    %2616 = vmatprep.subr.mxu0 0.0
    %2617 = vmatpush1.msra.mxu0 0.0
    %2618 = vmatprep.subr.mxu0 0.0
    %2619 = vmatpush1.msra.mxu0 0.0
    %2620 = vmatprep.subr.mxu0 0.0
    %2621 = vmatpush1.msra.mxu0 0.0
    %2622 = vmatprep.subr.mxu0 0.0
    %2623 = vmatpush1.msra.mxu0 0.0
    %2624 = vmatprep.subr.mxu0 0.0
    %2625 = vmatpush1.msra.mxu0 0.0
    %2626 = vmatprep.subr.mxu0 0.0
    %2627 = vmatpush1.msra.mxu0 0.0
    %2628 = vmatprep.subr.mxu0 0.0
    %2629 = vmatpush1.msra.mxu0 0.0
    %2630 = vmatprep.subr.mxu0 0.0
    %2631 = vmatpush1.msra.mxu0 %v2524
    %2632 = vmatprep.subr.mxu0 0.0
    %2633 = vmatpush1.msra.mxu0 %v2523
    %2634 = vmatprep.subr.mxu0 0.0
    %2635 = vmatpush1.msra.mxu0 %v2522
    %2636 = vmatprep.subr.mxu0 0.0
    %2637 = vmatpush1.msra.mxu0 %v2521
    %2638 = vmatprep.subr.mxu0 0.0
    %2639 = vmatpush2.msra.mxu0 0.0
    %2640 = vmatprep.subr.mxu0 0.0
    %2641 = vmatpush2.msra.mxu0 0.0
    %2642 = vmatprep.subr.mxu0 0.0
    %2643 = vmatpush2.msra.mxu0 0.0
    %2644 = vmatprep.subr.mxu0 0.0
    %2645 = vmatpush2.msra.mxu0 0.0
    %2646 = vmatprep.subr.mxu0 0.0
    %2647 = vmatpush2.msra.mxu0 0.0
    %2648 = vmatprep.subr.mxu0 0.0
    %2649 = vmatpush2.msra.mxu0 0.0
    %2650 = vmatprep.subr.mxu0 0.0
    %2651 = vmatpush2.msra.mxu0 0.0
    %2652 = vmatprep.subr.mxu0 0.0
    %2653 = vmatpush2.msra.mxu0 0.0
    %2654 = vmatprep.subr.mxu0 0.0
    %2655 = vmatpush2.msra.mxu0 0.0
    %2656 = vmatprep.subr.mxu0 0.0
    %2657 = vmatpush2.msra.mxu0 0.0
    %2658 = vmatprep.subr.mxu0 0.0
    %2659 = vmatpush2.msra.mxu0 0.0
    %2660 = vmatprep.subr.mxu0 0.0
    %2661 = vmatpush2.msra.mxu0 0.0
    %2662 = vmatprep.subr.mxu0 0.0
    %2663 = vmatpush2.msra.mxu0 0.0
    %2664 = vmatprep.subr.mxu0 0.0
    %2665 = vmatpush2.msra.mxu0 0.0
    %2666 = vmatprep.subr.mxu0 0.0
    %2667 = vmatpush2.msra.mxu0 0.0
    %2668 = vmatprep.subr.mxu0 0.0
    %2669 = vmatpush2.msra.mxu0 0.0
    %2670 = vmatprep.mubr.f32.mxu0 0.0
    %2671 = vmatmul.mubr.f32.gmra.mxu0 %v2604
    %v2672 = vpop.f32.mrf.mxu0
    %v2673 = vadd.f32 %v2602, %v2672
    %v2674 = vpop.f32.mrf.mxu0
    %2675 = vdwg.mxu0
    %vm2676 = vcmask 58368
    %2677 = vst.msk [vmem:[#allocation5] sm:$0x3] %vm2676, %v2673
    // Predicated region
    $region30: #{simple_transformer_forward.1} parent=1 // pred_check
      _
    $region31: #{simple_transformer_forward.1} parent=1 // pred_check_branch
      %2679 = sbr.rel (0) target = $region33
    $region32: #{simple_transformer_forward.1} parent=1 // pred_region
      %s2681 = ssub.s32 32, 32
      %2682 = vsyncadd [#allocation4], %s2681
      %s2684 = sshll.u32 [#allocation5], 4
      %s2685 = int_to_ptr.vmem [resolvable:$true] %s2684
      %2687 = dma.vmem_to_hbm [thread:$0]  %s2685, 32, %s6, [#allocation4]
    $region33: #{simple_transformer_forward.1} parent=1 // pred_fallthru
      _
    // Predicated region
    $region34: #{simple_transformer_forward.1} parent=1 // pred_check
      _
    $region35: #{simple_transformer_forward.1} parent=1 // pred_check_branch
      %2689 = sbr.rel (0) target = $region37
    $region36: #{simple_transformer_forward.1} parent=1 // pred_region
      %2690 = dma.done [#allocation4], 32
    $region37: #{simple_transformer_forward.1} parent=1 // pred_fallthru
      _
    %2691 = vsyncpa [#allocation3], 1
    %2692 = vsyncpa [#allocation4], 1

</llo_original>
